<compile_context>
chip_gen: v7x
topology: tpu7x:2x2x1
jax: 0.10.0
libtpu: 0.0.40
codegen_flags: <defaults>
</compile_context>

<pallas_src>
import jax
import jax.numpy as jnp
from jax.experimental import pallas as pl
from jax.experimental.pallas import tpu as pltpu


def _moe_kernel(x_ref, w1f_ref, b1f_ref, w2f_ref, gexp_ref, b2s_ref,
                wg1_ref, bg1_ref, wg2_ref, bg2_ref, out_ref, gates_sc):
    k = pl.program_id(1)                 # chunk index over the fused E*H dimension
    x = x_ref[...]                       # (TB, D_in) in matmul dtype

    @pl.when(k == 0)
    def _():
        # ---- gate: Linear -> ReLU -> Linear -> Softmax(dim=1); f32 elementwise ----
        hg = jnp.maximum(
            jnp.dot(x, wg1_ref[...], preferred_element_type=jnp.float32)
            + bg1_ref[...], 0.0)                                     # (TB, H)  f32
        logits = (jnp.dot(hg.astype(wg2_ref.dtype), wg2_ref[...],
                          preferred_element_type=jnp.float32)
                  + bg2_ref[...])                                    # (TB, E)  f32
        m = jnp.max(logits, axis=1, keepdims=True)
        e = jnp.exp(logits - m)
        # approx=True -> EUP vrcp slot (otherwise idle); ample precision for a softmax.
        gates = e * pl.reciprocal(jnp.sum(e, axis=1, keepdims=True), approx=True)
        gates_sc[...] = gates                                        # reused for k > 0
        # Init the resident f32 output accumulator with the gated expert biases:
        #   sum_e gates[:, e] * b2_e
        out_ref[...] = jnp.dot(gates.astype(b2s_ref.dtype), b2s_ref[...],
                               preferred_element_type=jnp.float32)

    gates = gates_sc[...]                                            # (TB, E) f32

    # ---- this chunk (cols [k*kblk, (k+1)*kblk)) of the fused all-experts hidden dim ----
    # H_all[:, e*H + h] = relu(x @ W1_e + b1_e)[:, h]
    h = jnp.maximum(
        jnp.dot(x, w1f_ref[...], preferred_element_type=jnp.float32)
        + b1f_ref[...], 0.0)                                         # (TB, kblk) f32
    # Broadcast gates to this chunk via the constant expander gexp[e, e*H+h] = 1
    # (tiny MXU matmul; avoids XLU cross-lane slicing / relayouts).
    gates_wide = jnp.dot(gates.astype(gexp_ref.dtype), gexp_ref[...],
                         preferred_element_type=jnp.float32)         # (TB, kblk)
    h_scaled = (h * gates_wide).astype(w2f_ref.dtype)
    # Accumulate directly into the f32 output block (same block index for every k;
    # output stays resident in VMEM across the "arbitrary" reduction axis).
    out_ref[...] += jnp.dot(h_scaled, w2f_ref[...],
                            preferred_element_type=jnp.float32)


def _pick_kblk(eh, block_eh):
    """Chunk width over the fused E*H dim (must divide E*H; multiple of 128)."""
    if eh <= block_eh:
        return eh
    best = eh  # fall back to fully-resident if no 128-multiple of E*H fits the budget
    for cand in range(128, block_eh + 1, 128):
        if eh % cand == 0:
            best = cand
    return best


def fuse_params(params, matmul_dtype=jnp.bfloat16):
    """One-time repack of SimpleMoE weights for the fused kernel.

    Hoisted out of the per-call forward path so the transpose/reshape/cast over every
    expert weight (pure HBM read+write traffic) is paid once, not on each forward."""
    w1, b1, w2, b2, wg1, bg1, wg2, bg2 = params
    E, D_in, H = w1.shape
    D_out = w2.shape[-1]
    md = jnp.dtype(jnp.float32 if matmul_dtype is None else matmul_dtype)
    # w1f[d, e*H+h] = w1[e, d, h]   /   w2f[e*H+h, o] = w2[e, h, o]
    w1f = jnp.transpose(w1, (1, 0, 2)).reshape(D_in, E * H).astype(md)
    b1f = b1.reshape(1, E * H).astype(jnp.float32)
    w2f = w2.reshape(E * H, D_out).astype(md)
    b2s = b2.reshape(E, D_out).astype(md)
    # constant gate expander (exact in bf16): gexp[e, e*H+h] = 1
    col_e = jnp.arange(E * H, dtype=jnp.int32) // H
    gexp = (col_e[None, :] == jnp.arange(E, dtype=jnp.int32)[:, None]).astype(md)
    return dict(w1f=w1f, b1f=b1f, w2f=w2f, b2s=b2s, gexp=gexp,
                wg1=wg1.astype(md), bg1=bg1.astype(jnp.float32),
                wg2=wg2.astype(md), bg2=bg2.astype(jnp.float32),
                dims=(E, D_in, H, D_out), matmul_dtype=md)


def simple_moe_forward(x, fused, *, block_b=1024, block_eh=512):
    E, D_in, H, D_out = fused["dims"]
    md = fused["matmul_dtype"]
    EH = E * H
    B = x.shape[0]
    itemsize = jnp.dtype(md).itemsize
    x_in = x.astype(md)

    # ---- batch tiling: few fat tiles (per-step overhead ~0.35us), sublane-aligned,
    #      and >= 2 (even) tiles so both v7x TensorCores get work on the "parallel" axis.
    #      NOTE: if B % tb != 0 the trailing partial tile computes on padded rows; rows
    #      are independent and the padded results are discarded on writeback. ----
    sub = 16 if itemsize == 2 else 8
    nb = pl.cdiv(B, block_b)
    if B > sub:
        nb = max(nb, 2)
        nb += nb % 2
    tb = min(B, pl.cdiv(pl.cdiv(B, nb), sub) * sub)
    nb = pl.cdiv(B, tb)

    # ---- fused E*H reduction axis: stream w1f/b1f/w2f/gexp in kblk-wide chunks ----
    kblk = _pick_kblk(EH, block_eh)
    nk = EH // kblk
    grid = (nb, nk)

    def _run(single_buffer_weights):
        def resident(arr):
            # Constant index_map => fetched once and kept resident across all grid steps.
            if single_buffer_weights:
                return pl.BlockSpec(arr.shape, lambda i, k: (0,) * arr.ndim,
                                    pipeline_mode=pl.Buffered(1))  # halve weight VMEM
            return pl.BlockSpec(arr.shape, lambda i, k: (0,) * arr.ndim)

        in_specs = [
            pl.BlockSpec((tb, D_in), lambda i, k: (i, 0)),       # x   (resident across k)
            pl.BlockSpec((D_in, kblk), lambda i, k: (0, k)),     # w1f chunk (streamed)
            pl.BlockSpec((1, kblk), lambda i, k: (0, k)),        # b1f chunk
            pl.BlockSpec((kblk, D_out), lambda i, k: (k, 0)),    # w2f chunk (streamed)
            pl.BlockSpec((E, kblk), lambda i, k: (0, k)),        # gexp chunk
            resident(fused["b2s"]),
            resident(fused["wg1"]), resident(fused["bg1"]),
            resident(fused["wg2"]), resident(fused["bg2"]),
        ]
        out_specs = pl.BlockSpec((tb, D_out), lambda i, k: (i, 0))

        # VMEM budget: double-buffered streamed chunks + resident weights + x/out tiles.
        streamed = 2 * (D_in * kblk * itemsize + kblk * 4
                        + kblk * D_out * itemsize + E * kblk * itemsize)
        resident_b = (E * D_out + D_in * H + H * E) * itemsize + (H + E) * 4
        tiles = 2 * tb * D_in * itemsize + 2 * tb * max(D_out, 128) * 4
        scratch_b = tb * 128 * 4
        vmem_limit = int(min(48 << 20,
                             max(32 << 20, 2 * (streamed + resident_b + tiles + scratch_b))))

        flops = 2 * B * (D_in * H + H * E + E            # gate network (+softmax-ish)
                         + D_in * EH + E * EH            # fused 1st matmul + gate expand
                         + EH * D_out + E * D_out)       # fused 2nd matmul + gated bias
        bytes_accessed = (x_in.size * itemsize + B * D_out * 4
                          + nb * sum(fused[n].size * fused[n].dtype.itemsize
                                     for n in ("w1f", "b1f", "w2f", "gexp"))
                          + sum(fused[n].size * fused[n].dtype.itemsize
                                for n in ("b2s", "wg1", "bg1", "wg2", "bg2")))

        return pl.pallas_call(
            _moe_kernel,
            out_shape=jax.ShapeDtypeStruct((B, D_out), jnp.float32),
            grid=grid,
            in_specs=in_specs,
            out_specs=out_specs,
            scratch_shapes=[pltpu.VMEM((tb, E), jnp.float32)],   # gates, reused across k
            compiler_params=pltpu.CompilerParams(
                dimension_semantics=("parallel", "arbitrary"),   # batch // 2 TCs on v7x
                vmem_limit_bytes=vmem_limit),
            cost_estimate=pl.CostEstimate(
                flops=flops, transcendentals=B * (E + 1),
                bytes_accessed=bytes_accessed),
        )(x_in, fused["w1f"], fused["b1f"], fused["w2f"], fused["gexp"], fused["b2s"],
          fused["wg1"], fused["bg1"], fused["wg2"], fused["bg2"])

    try:
        return _run(True)
    except Exception:
        # Fallback for jax versions without BlockSpec(pipeline_mode=pl.Buffered(1)).
        return _run(False)


def init_params(key, input_size, output_size, num_experts, hidden_size):
    ks = jax.random.split(key, 8)
    scale = 0.1
    w1 = scale * jax.random.normal(ks[0], (num_experts, input_size, hidden_size), jnp.float32)
    b1 = scale * jax.random.normal(ks[1], (num_experts, 1, hidden_size), jnp.float32)
    w2 = scale * jax.random.normal(ks[2], (num_experts, hidden_size, output_size), jnp.float32)
    b2 = scale * jax.random.normal(ks[3], (num_experts, 1, output_size), jnp.float32)
    wg1 = scale * jax.random.normal(ks[4], (input_size, hidden_size), jnp.float32)
    bg1 = scale * jax.random.normal(ks[5], (1, hidden_size), jnp.float32)
    wg2 = scale * jax.random.normal(ks[6], (hidden_size, num_experts), jnp.float32)
    bg2 = scale * jax.random.normal(ks[7], (1, num_experts), jnp.float32)
    return (w1, b1, w2, b2, wg1, bg1, wg2, bg2)


def reference_forward(x, params):
    # Pure-JAX f32 reference mirroring the PyTorch module exactly.
    (w1, b1, w2, b2, wg1, bg1, wg2, bg2) = params
    expert_outs = []
    for ex in range(w1.shape[0]):
        h = jnp.maximum(x @ w1[ex] + b1[ex], 0.0)
        expert_outs.append(h @ w2[ex] + b2[ex])
    expert_outs = jnp.stack(expert_outs, axis=1)                 # (B, E, D_out)
    hg = jnp.maximum(x @ wg1 + bg1, 0.0)
    gates = jax.nn.softmax(hg @ wg2 + bg2, axis=1)[..., None]    # (B, E, 1)
    return jnp.sum(expert_outs * gates, axis=1)


if __name__ == "__main__":
    input_size, output_size, num_experts, hidden_size = 32, 32, 4, 64
    batch = 512   # -> 2 batch tiles (both v7x TCs); E*H = 256 -> 2 reduction chunks below

    key = jax.random.PRNGKey(0)
    kx, kp = jax.random.split(key)
    x = jax.random.normal(kx, (batch, input_size), jnp.float32)
    params = init_params(kp, input_size, output_size, num_experts, hidden_size)

    fused = fuse_params(params)                 # bf16 matmul inputs by default (f32 acc)
    # block_eh=128 exercises the E*H streaming/accumulation axis (2 chunks) at demo sizes.
    out = simple_moe_forward(x, fused, block_b=1024, block_eh=128)
    out = jax.block_until_ready(out)

    ref = reference_forward(x, params)
    assert out.shape == (batch, output_size)
    # bf16 matmul inputs (f32 accumulation) + EUP approximate reciprocal in the softmax
    # denominator -> loosened tolerance vs the f32 reference.
    assert jnp.allclose(out, ref, atol=2e-2, rtol=2e-2), "mismatch vs reference"
    print("KERNEL_OK")
</pallas_src>

<mosaic_0001>
module attributes {stable_mosaic.version = 11 : i64} {
  func.func @_moe_kernel(%arg0: i32, %arg1: i32, %arg2: memref<256x32xbf16, #tpu.memory_space<vmem>>, %arg3: memref<32x128xbf16, #tpu.memory_space<vmem>>, %arg4: memref<1x128xf32, #tpu.memory_space<vmem>>, %arg5: memref<128x32xbf16, #tpu.memory_space<vmem>>, %arg6: memref<4x128xbf16, #tpu.memory_space<vmem>>, %arg7: memref<4x32xbf16, #tpu.memory_space<vmem>>, %arg8: memref<32x64xbf16, #tpu.memory_space<vmem>>, %arg9: memref<1x64xf32, #tpu.memory_space<vmem>>, %arg10: memref<64x4xbf16, #tpu.memory_space<vmem>>, %arg11: memref<1x4xf32, #tpu.memory_space<vmem>>, %arg12: memref<256x32xf32, #tpu.memory_space<vmem>>, %arg13: memref<256x4xf32, #tpu.memory_space<vmem>>) attributes {dimension_semantics = [#tpu.dimension_semantics<parallel>, #tpu.dimension_semantics<arbitrary>], iteration_bounds = array<i64: 2, 2>, scalar_prefetch = 0 : i64, scratch_operands = 1 : i64, tpu.core_type = #tpu.core_type<tc>, window_params = [{transform_indices = @transform_0, window_bounds = array<i64: 256, 32>}, {transform_indices = @transform_1, window_bounds = array<i64: 32, 128>}, {transform_indices = @transform_2, window_bounds = array<i64: 1, 128>}, {transform_indices = @transform_3, window_bounds = array<i64: 128, 32>}, {transform_indices = @transform_4, window_bounds = array<i64: 4, 128>}, {pipeline_mode = #tpu.pipeline_mode<synchronous>, transform_indices = @transform_5, window_bounds = array<i64: 4, 32>}, {pipeline_mode = #tpu.pipeline_mode<synchronous>, transform_indices = @transform_6, window_bounds = array<i64: 32, 64>}, {pipeline_mode = #tpu.pipeline_mode<synchronous>, transform_indices = @transform_7, window_bounds = array<i64: 1, 64>}, {pipeline_mode = #tpu.pipeline_mode<synchronous>, transform_indices = @transform_8, window_bounds = array<i64: 64, 4>}, {pipeline_mode = #tpu.pipeline_mode<synchronous>, transform_indices = @transform_9, window_bounds = array<i64: 1, 4>}, {transform_indices = @transform_10, window_bounds = array<i64: 256, 32>}]} {
    %c0 = arith.constant 0 : index
    %c0_0 = arith.constant 0 : index
    %0 = vector.load %arg2[%c0, %c0_0] : memref<256x32xbf16, #tpu.memory_space<vmem>>, vector<256x32xbf16>
    %c0_i32 = arith.constant 0 : i32
    %1 = arith.cmpi eq, %arg1, %c0_i32 : i32
    %2 = arith.extui %1 : i1 to i32
    %c0_i32_1 = arith.constant 0 : i32
    %3 = arith.cmpi ne, %2, %c0_i32_1 : i32
    scf.if %3 {
      %c0_19 = arith.constant 0 : index
      %c0_20 = arith.constant 0 : index
      %22 = vector.load %arg8[%c0_19, %c0_20] : memref<32x64xbf16, #tpu.memory_space<vmem>>, vector<32x64xbf16>
      %cst_21 = arith.constant dense<0.000000e+00> : vector<256x64xf32>
      %23 = tpu.matmul %0, %22, %cst_21 {dimension_numbers = #tpu.dot_dimension_numbers<[1], [0], [0], [1], [0, 0, 1, 1], [], []>} : vector<256x32xbf16>, vector<32x64xbf16>, vector<256x64xf32> -> vector<256x64xf32>
      %c0_22 = arith.constant 0 : index
      %c0_23 = arith.constant 0 : index
      %24 = vector.load %arg9[%c0_22, %c0_23] : memref<1x64xf32, #tpu.memory_space<vmem>>, vector<1x64xf32>
      %25 = vector.broadcast %24 : vector<1x64xf32> to vector<256x64xf32>
      %26 = arith.addf %23, %25 : vector<256x64xf32>
      %cst_24 = arith.constant 0.000000e+00 : f32
      %27 = vector.broadcast %cst_24 : f32 to vector<256x64xf32>
      %28 = arith.maximumf %26, %27 : vector<256x64xf32>
      %29 = arith.truncf %28 : vector<256x64xf32> to vector<256x64xbf16>
      %c0_25 = arith.constant 0 : index
      %c0_26 = arith.constant 0 : index
      %30 = vector.load %arg10[%c0_25, %c0_26] : memref<64x4xbf16, #tpu.memory_space<vmem>>, vector<64x4xbf16>
      %cst_27 = arith.constant dense<0.000000e+00> : vector<256x4xf32>
      %31 = tpu.matmul %29, %30, %cst_27 {dimension_numbers = #tpu.dot_dimension_numbers<[1], [0], [0], [1], [0, 0, 1, 1], [], []>} : vector<256x64xbf16>, vector<64x4xbf16>, vector<256x4xf32> -> vector<256x4xf32>
      %c0_28 = arith.constant 0 : index
      %c0_29 = arith.constant 0 : index
      %32 = vector.load %arg11[%c0_28, %c0_29] : memref<1x4xf32, #tpu.memory_space<vmem>>, vector<1x4xf32>
      %33 = vector.broadcast %32 : vector<1x4xf32> to vector<256x4xf32>
      %34 = arith.addf %31, %33 : vector<256x4xf32>
      %cst_30 = arith.constant dense<0xFF800000> : vector<256xf32>
      %35 = vector.multi_reduction <maximumf>, %34, %cst_30 [1] : vector<256x4xf32> to vector<256xf32>
      %36 = vector.shape_cast %35 : vector<256xf32> to vector<256x1xf32>
      %37 = vector.broadcast %36 : vector<256x1xf32> to vector<256x4xf32>
      %38 = arith.subf %34, %37 : vector<256x4xf32>
      %39 = math.exp %38 : vector<256x4xf32>
      %cst_31 = arith.constant dense<0.000000e+00> : vector<256xf32>
      %40 = vector.multi_reduction <add>, %39, %cst_31 [1] : vector<256x4xf32> to vector<256xf32>
      %41 = vector.shape_cast %40 : vector<256xf32> to vector<256x1xf32>
      %42 = tpu.reciprocal %41 {approx = true} : vector<256x1xf32> -> vector<256x1xf32>
      %43 = vector.broadcast %42 : vector<256x1xf32> to vector<256x4xf32>
      %44 = arith.mulf %39, %43 : vector<256x4xf32>
      %c0_32 = arith.constant 0 : index
      %c0_33 = arith.constant 0 : index
      %45 = vector.load %arg13[%c0_32, %c0_33] : memref<256x4xf32, #tpu.memory_space<vmem>>, vector<256x4xf32>
      tpu.vector_store %arg13[%c0_32, %c0_33], %44 {strides = array<i32>} : memref<256x4xf32, #tpu.memory_space<vmem>>, vector<256x4xf32>,
      %46 = arith.truncf %44 : vector<256x4xf32> to vector<256x4xbf16>
      %c0_34 = arith.constant 0 : index
      %c0_35 = arith.constant 0 : index
      %47 = vector.load %arg7[%c0_34, %c0_35] : memref<4x32xbf16, #tpu.memory_space<vmem>>, vector<4x32xbf16>
      %cst_36 = arith.constant dense<0.000000e+00> : vector<256x32xf32>
      %48 = tpu.matmul %46, %47, %cst_36 {dimension_numbers = #tpu.dot_dimension_numbers<[1], [0], [0], [1], [0, 0, 1, 1], [], []>} : vector<256x4xbf16>, vector<4x32xbf16>, vector<256x32xf32> -> vector<256x32xf32>
      %c0_37 = arith.constant 0 : index
      %c0_38 = arith.constant 0 : index
      %49 = vector.load %arg12[%c0_37, %c0_38] : memref<256x32xf32, #tpu.memory_space<vmem>>, vector<256x32xf32>
      tpu.vector_store %arg12[%c0_37, %c0_38], %48 {strides = array<i32>} : memref<256x32xf32, #tpu.memory_space<vmem>>, vector<256x32xf32>,
    } else {
    }
    %c0_2 = arith.constant 0 : index
    %c0_3 = arith.constant 0 : index
    %4 = vector.load %arg13[%c0_2, %c0_3] : memref<256x4xf32, #tpu.memory_space<vmem>>, vector<256x4xf32>
    %c0_4 = arith.constant 0 : index
    %c0_5 = arith.constant 0 : index
    %5 = vector.load %arg3[%c0_4, %c0_5] : memref<32x128xbf16, #tpu.memory_space<vmem>>, vector<32x128xbf16>
    %cst = arith.constant dense<0.000000e+00> : vector<256x128xf32>
    %6 = tpu.matmul %0, %5, %cst {dimension_numbers = #tpu.dot_dimension_numbers<[1], [0], [0], [1], [0, 0, 1, 1], [], []>} : vector<256x32xbf16>, vector<32x128xbf16>, vector<256x128xf32> -> vector<256x128xf32>
    %c0_6 = arith.constant 0 : index
    %c0_7 = arith.constant 0 : index
    %7 = vector.load %arg4[%c0_6, %c0_7] : memref<1x128xf32, #tpu.memory_space<vmem>>, vector<1x128xf32>
    %8 = vector.broadcast %7 : vector<1x128xf32> to vector<256x128xf32>
    %9 = arith.addf %6, %8 : vector<256x128xf32>
    %cst_8 = arith.constant 0.000000e+00 : f32
    %10 = vector.broadcast %cst_8 : f32 to vector<256x128xf32>
    %11 = arith.maximumf %9, %10 : vector<256x128xf32>
    %12 = arith.truncf %4 : vector<256x4xf32> to vector<256x4xbf16>
    %c0_9 = arith.constant 0 : index
    %c0_10 = arith.constant 0 : index
    %13 = vector.load %arg6[%c0_9, %c0_10] : memref<4x128xbf16, #tpu.memory_space<vmem>>, vector<4x128xbf16>
    %cst_11 = arith.constant dense<0.000000e+00> : vector<256x128xf32>
    %14 = tpu.matmul %12, %13, %cst_11 {dimension_numbers = #tpu.dot_dimension_numbers<[1], [0], [0], [1], [0, 0, 1, 1], [], []>} : vector<256x4xbf16>, vector<4x128xbf16>, vector<256x128xf32> -> vector<256x128xf32>
    %15 = arith.mulf %11, %14 : vector<256x128xf32>
    %16 = arith.truncf %15 : vector<256x128xf32> to vector<256x128xbf16>
    %c0_12 = arith.constant 0 : index
    %c0_13 = arith.constant 0 : index
    %17 = vector.load %arg12[%c0_12, %c0_13] : memref<256x32xf32, #tpu.memory_space<vmem>>, vector<256x32xf32>
    %c0_14 = arith.constant 0 : index
    %c0_15 = arith.constant 0 : index
    %18 = vector.load %arg5[%c0_14, %c0_15] : memref<128x32xbf16, #tpu.memory_space<vmem>>, vector<128x32xbf16>
    %cst_16 = arith.constant dense<0.000000e+00> : vector<256x32xf32>
    %19 = tpu.matmul %16, %18, %cst_16 {dimension_numbers = #tpu.dot_dimension_numbers<[1], [0], [0], [1], [0, 0, 1, 1], [], []>} : vector<256x128xbf16>, vector<128x32xbf16>, vector<256x32xf32> -> vector<256x32xf32>
    %20 = arith.addf %17, %19 : vector<256x32xf32>
    %c0_17 = arith.constant 0 : index
    %c0_18 = arith.constant 0 : index
    %21 = vector.load %arg12[%c0_17, %c0_18] : memref<256x32xf32, #tpu.memory_space<vmem>>, vector<256x32xf32>
    tpu.vector_store %arg12[%c0_17, %c0_18], %20 {strides = array<i32>} : memref<256x32xf32, #tpu.memory_space<vmem>>, vector<256x32xf32>,
    return
  }
  func.func @transform_0(%arg0: i32, %arg1: i32) -> (i32, i32) {
    %c0_i32 = arith.constant 0 : i32
    %c0_i32_0 = arith.constant 0 : i32
    return %arg0, %c0_i32 : i32, i32
  }
  func.func @transform_1(%arg0: i32, %arg1: i32) -> (i32, i32) {
    %c0_i32 = arith.constant 0 : i32
    %c0_i32_0 = arith.constant 0 : i32
    return %c0_i32, %arg1 : i32, i32
  }
  func.func @transform_2(%arg0: i32, %arg1: i32) -> (i32, i32) {
    %c0_i32 = arith.constant 0 : i32
    %c0_i32_0 = arith.constant 0 : i32
    return %c0_i32, %arg1 : i32, i32
  }
  func.func @transform_3(%arg0: i32, %arg1: i32) -> (i32, i32) {
    %c0_i32 = arith.constant 0 : i32
    %c0_i32_0 = arith.constant 0 : i32
    return %arg1, %c0_i32 : i32, i32
  }
  func.func @transform_4(%arg0: i32, %arg1: i32) -> (i32, i32) {
    %c0_i32 = arith.constant 0 : i32
    %c0_i32_0 = arith.constant 0 : i32
    return %c0_i32, %arg1 : i32, i32
  }
  func.func @transform_5(%arg0: i32, %arg1: i32) -> (i32, i32) {
    %c0_i32 = arith.constant 0 : i32
    %c0_i32_0 = arith.constant 0 : i32
    %c0_i32_1 = arith.constant 0 : i32
    return %c0_i32, %c0_i32_0 : i32, i32
  }
  func.func @transform_6(%arg0: i32, %arg1: i32) -> (i32, i32) {
    %c0_i32 = arith.constant 0 : i32
    %c0_i32_0 = arith.constant 0 : i32
    %c0_i32_1 = arith.constant 0 : i32
    return %c0_i32, %c0_i32_0 : i32, i32
  }
  func.func @transform_7(%arg0: i32, %arg1: i32) -> (i32, i32) {
    %c0_i32 = arith.constant 0 : i32
    %c0_i32_0 = arith.constant 0 : i32
    %c0_i32_1 = arith.constant 0 : i32
    return %c0_i32, %c0_i32_0 : i32, i32
  }
  func.func @transform_8(%arg0: i32, %arg1: i32) -> (i32, i32) {
    %c0_i32 = arith.constant 0 : i32
    %c0_i32_0 = arith.constant 0 : i32
    %c0_i32_1 = arith.constant 0 : i32
    return %c0_i32, %c0_i32_0 : i32, i32
  }
  func.func @transform_9(%arg0: i32, %arg1: i32) -> (i32, i32) {
    %c0_i32 = arith.constant 0 : i32
    %c0_i32_0 = arith.constant 0 : i32
    %c0_i32_1 = arith.constant 0 : i32
    return %c0_i32, %c0_i32_0 : i32, i32
  }
  func.func @transform_10(%arg0: i32, %arg1: i32) -> (i32, i32) {
    %c0_i32 = arith.constant 0 : i32
    %c0_i32_0 = arith.constant 0 : i32
    return %arg0, %c0_i32 : i32, i32
  }
}

module attributes {stable_mosaic.version = 11 : i64} {
  func.func @_moe_kernel(%arg0: i32, %arg1: i32, %arg2: memref<256x32xbf16, #tpu.memory_space<vmem>>, %arg3: memref<32x128xbf16, #tpu.memory_space<vmem>>, %arg4: memref<1x128xf32, #tpu.memory_space<vmem>>, %arg5: memref<128x32xbf16, #tpu.memory_space<vmem>>, %arg6: memref<4x128xbf16, #tpu.memory_space<vmem>>, %arg7: memref<4x32xbf16, #tpu.memory_space<vmem>>, %arg8: memref<32x64xbf16, #tpu.memory_space<vmem>>, %arg9: memref<1x64xf32, #tpu.memory_space<vmem>>, %arg10: memref<64x4xbf16, #tpu.memory_space<vmem>>, %arg11: memref<1x4xf32, #tpu.memory_space<vmem>>, %arg12: memref<256x32xf32, #tpu.memory_space<vmem>>, %arg13: memref<256x4xf32, #tpu.memory_space<vmem>>) attributes {dimension_semantics = [#tpu.dimension_semantics<parallel>, #tpu.dimension_semantics<arbitrary>], iteration_bounds = array<i64: 2, 2>, scalar_prefetch = 0 : i64, scratch_operands = 1 : i64, tpu.core_type = #tpu.core_type<tc>, window_params = [{transform_indices = @transform_0, window_bounds = array<i64: 256, 32>}, {transform_indices = @transform_1, window_bounds = array<i64: 32, 128>}, {transform_indices = @transform_2, window_bounds = array<i64: 1, 128>}, {transform_indices = @transform_3, window_bounds = array<i64: 128, 32>}, {transform_indices = @transform_4, window_bounds = array<i64: 4, 128>}, {pipeline_mode = #tpu.pipeline_mode<synchronous>, transform_indices = @transform_5, window_bounds = array<i64: 4, 32>}, {pipeline_mode = #tpu.pipeline_mode<synchronous>, transform_indices = @transform_6, window_bounds = array<i64: 32, 64>}, {pipeline_mode = #tpu.pipeline_mode<synchronous>, transform_indices = @transform_7, window_bounds = array<i64: 1, 64>}, {pipeline_mode = #tpu.pipeline_mode<synchronous>, transform_indices = @transform_8, window_bounds = array<i64: 64, 4>}, {pipeline_mode = #tpu.pipeline_mode<synchronous>, transform_indices = @transform_9, window_bounds = array<i64: 1, 4>}, {transform_indices = @transform_10, window_bounds = array<i64: 256, 32>}]} {
    %c0 = arith.constant 0 : index
    %c0_0 = arith.constant 0 : index
    %0 = vector.load %arg2[%c0, %c0_0] : memref<256x32xbf16, #tpu.memory_space<vmem>>, vector<256x32xbf16>
    %c0_i32 = arith.constant 0 : i32
    %1 = arith.cmpi eq, %arg1, %c0_i32 : i32
    %2 = arith.extui %1 : i1 to i32
    %c0_i32_1 = arith.constant 0 : i32
    %3 = arith.cmpi ne, %2, %c0_i32_1 : i32
    scf.if %3 {
      %c0_19 = arith.constant 0 : index
      %c0_20 = arith.constant 0 : index
      %22 = vector.load %arg8[%c0_19, %c0_20] : memref<32x64xbf16, #tpu.memory_space<vmem>>, vector<32x64xbf16>
      %cst_21 = arith.constant dense<0.000000e+00> : vector<256x64xf32>
      %23 = tpu.matmul %0, %22, %cst_21 {dimension_numbers = #tpu.dot_dimension_numbers<[1], [0], [0], [1], [0, 0, 1, 1], [], []>} : vector<256x32xbf16>, vector<32x64xbf16>, vector<256x64xf32> -> vector<256x64xf32>
      %c0_22 = arith.constant 0 : index
      %c0_23 = arith.constant 0 : index
      %24 = vector.load %arg9[%c0_22, %c0_23] : memref<1x64xf32, #tpu.memory_space<vmem>>, vector<1x64xf32>
      %25 = vector.broadcast %24 : vector<1x64xf32> to vector<256x64xf32>
      %26 = arith.addf %23, %25 : vector<256x64xf32>
      %cst_24 = arith.constant 0.000000e+00 : f32
      %27 = vector.broadcast %cst_24 : f32 to vector<256x64xf32>
      %28 = arith.maximumf %26, %27 : vector<256x64xf32>
      %29 = arith.truncf %28 : vector<256x64xf32> to vector<256x64xbf16>
      %c0_25 = arith.constant 0 : index
      %c0_26 = arith.constant 0 : index
      %30 = vector.load %arg10[%c0_25, %c0_26] : memref<64x4xbf16, #tpu.memory_space<vmem>>, vector<64x4xbf16>
      %cst_27 = arith.constant dense<0.000000e+00> : vector<256x4xf32>
      %31 = tpu.matmul %29, %30, %cst_27 {dimension_numbers = #tpu.dot_dimension_numbers<[1], [0], [0], [1], [0, 0, 1, 1], [], []>} : vector<256x64xbf16>, vector<64x4xbf16>, vector<256x4xf32> -> vector<256x4xf32>
      %c0_28 = arith.constant 0 : index
      %c0_29 = arith.constant 0 : index
      %32 = vector.load %arg11[%c0_28, %c0_29] : memref<1x4xf32, #tpu.memory_space<vmem>>, vector<1x4xf32>
      %33 = vector.broadcast %32 : vector<1x4xf32> to vector<256x4xf32>
      %34 = arith.addf %31, %33 : vector<256x4xf32>
      %cst_30 = arith.constant dense<0xFF800000> : vector<256xf32>
      %35 = vector.multi_reduction <maximumf>, %34, %cst_30 [1] : vector<256x4xf32> to vector<256xf32>
      %36 = vector.shape_cast %35 : vector<256xf32> to vector<256x1xf32>
      %37 = vector.broadcast %36 : vector<256x1xf32> to vector<256x4xf32>
      %38 = arith.subf %34, %37 : vector<256x4xf32>
      %39 = math.exp %38 : vector<256x4xf32>
      %cst_31 = arith.constant dense<0.000000e+00> : vector<256xf32>
      %40 = vector.multi_reduction <add>, %39, %cst_31 [1] : vector<256x4xf32> to vector<256xf32>
      %41 = vector.shape_cast %40 : vector<256xf32> to vector<256x1xf32>
      %42 = tpu.reciprocal %41 {approx = true} : vector<256x1xf32> -> vector<256x1xf32>
      %43 = vector.broadcast %42 : vector<256x1xf32> to vector<256x4xf32>
      %44 = arith.mulf %39, %43 : vector<256x4xf32>
      %c0_32 = arith.constant 0 : index
      %c0_33 = arith.constant 0 : index
      %45 = vector.load %arg13[%c0_32, %c0_33] : memref<256x4xf32, #tpu.memory_space<vmem>>, vector<256x4xf32>
      tpu.vector_store %arg13[%c0_32, %c0_33], %44 {strides = array<i32>} : memref<256x4xf32, #tpu.memory_space<vmem>>, vector<256x4xf32>,
      %46 = arith.truncf %44 : vector<256x4xf32> to vector<256x4xbf16>
      %c0_34 = arith.constant 0 : index
      %c0_35 = arith.constant 0 : index
      %47 = vector.load %arg7[%c0_34, %c0_35] : memref<4x32xbf16, #tpu.memory_space<vmem>>, vector<4x32xbf16>
      %cst_36 = arith.constant dense<0.000000e+00> : vector<256x32xf32>
      %48 = tpu.matmul %46, %47, %cst_36 {dimension_numbers = #tpu.dot_dimension_numbers<[1], [0], [0], [1], [0, 0, 1, 1], [], []>} : vector<256x4xbf16>, vector<4x32xbf16>, vector<256x32xf32> -> vector<256x32xf32>
      %c0_37 = arith.constant 0 : index
      %c0_38 = arith.constant 0 : index
      %49 = vector.load %arg12[%c0_37, %c0_38] : memref<256x32xf32, #tpu.memory_space<vmem>>, vector<256x32xf32>
      tpu.vector_store %arg12[%c0_37, %c0_38], %48 {strides = array<i32>} : memref<256x32xf32, #tpu.memory_space<vmem>>, vector<256x32xf32>,
    } else {
    }
    %c0_2 = arith.constant 0 : index
    %c0_3 = arith.constant 0 : index
    %4 = vector.load %arg13[%c0_2, %c0_3] : memref<256x4xf32, #tpu.memory_space<vmem>>, vector<256x4xf32>
    %c0_4 = arith.constant 0 : index
    %c0_5 = arith.constant 0 : index
    %5 = vector.load %arg3[%c0_4, %c0_5] : memref<32x128xbf16, #tpu.memory_space<vmem>>, vector<32x128xbf16>
    %cst = arith.constant dense<0.000000e+00> : vector<256x128xf32>
    %6 = tpu.matmul %0, %5, %cst {dimension_numbers = #tpu.dot_dimension_numbers<[1], [0], [0], [1], [0, 0, 1, 1], [], []>} : vector<256x32xbf16>, vector<32x128xbf16>, vector<256x128xf32> -> vector<256x128xf32>
    %c0_6 = arith.constant 0 : index
    %c0_7 = arith.constant 0 : index
    %7 = vector.load %arg4[%c0_6, %c0_7] : memref<1x128xf32, #tpu.memory_space<vmem>>, vector<1x128xf32>
    %8 = vector.broadcast %7 : vector<1x128xf32> to vector<256x128xf32>
    %9 = arith.addf %6, %8 : vector<256x128xf32>
    %cst_8 = arith.constant 0.000000e+00 : f32
    %10 = vector.broadcast %cst_8 : f32 to vector<256x128xf32>
    %11 = arith.maximumf %9, %10 : vector<256x128xf32>
    %12 = arith.truncf %4 : vector<256x4xf32> to vector<256x4xbf16>
    %c0_9 = arith.constant 0 : index
    %c0_10 = arith.constant 0 : index
    %13 = vector.load %arg6[%c0_9, %c0_10] : memref<4x128xbf16, #tpu.memory_space<vmem>>, vector<4x128xbf16>
    %cst_11 = arith.constant dense<0.000000e+00> : vector<256x128xf32>
    %14 = tpu.matmul %12, %13, %cst_11 {dimension_numbers = #tpu.dot_dimension_numbers<[1], [0], [0], [1], [0, 0, 1, 1], [], []>} : vector<256x4xbf16>, vector<4x128xbf16>, vector<256x128xf32> -> vector<256x128xf32>
    %15 = arith.mulf %11, %14 : vector<256x128xf32>
    %16 = arith.truncf %15 : vector<256x128xf32> to vector<256x128xbf16>
    %c0_12 = arith.constant 0 : index
    %c0_13 = arith.constant 0 : index
    %17 = vector.load %arg12[%c0_12, %c0_13] : memref<256x32xf32, #tpu.memory_space<vmem>>, vector<256x32xf32>
    %c0_14 = arith.constant 0 : index
    %c0_15 = arith.constant 0 : index
    %18 = vector.load %arg5[%c0_14, %c0_15] : memref<128x32xbf16, #tpu.memory_space<vmem>>, vector<128x32xbf16>
    %cst_16 = arith.constant dense<0.000000e+00> : vector<256x32xf32>
    %19 = tpu.matmul %16, %18, %cst_16 {dimension_numbers = #tpu.dot_dimension_numbers<[1], [0], [0], [1], [0, 0, 1, 1], [], []>} : vector<256x128xbf16>, vector<128x32xbf16>, vector<256x32xf32> -> vector<256x32xf32>
    %20 = arith.addf %17, %19 : vector<256x32xf32>
    %c0_17 = arith.constant 0 : index
    %c0_18 = arith.constant 0 : index
    %21 = vector.load %arg12[%c0_17, %c0_18] : memref<256x32xf32, #tpu.memory_space<vmem>>, vector<256x32xf32>
    tpu.vector_store %arg12[%c0_17, %c0_18], %20 {strides = array<i32>} : memref<256x32xf32, #tpu.memory_space<vmem>>, vector<256x32xf32>,
    return
  }
  func.func @transform_0(%arg0: i32, %arg1: i32) -> (i32, i32) {
    %c0_i32 = arith.constant 0 : i32
    %c0_i32_0 = arith.constant 0 : i32
    return %arg0, %c0_i32 : i32, i32
  }
  func.func @transform_1(%arg0: i32, %arg1: i32) -> (i32, i32) {
    %c0_i32 = arith.constant 0 : i32
    %c0_i32_0 = arith.constant 0 : i32
    return %c0_i32, %arg1 : i32, i32
  }
  func.func @transform_2(%arg0: i32, %arg1: i32) -> (i32, i32) {
    %c0_i32 = arith.constant 0 : i32
    %c0_i32_0 = arith.constant 0 : i32
    return %c0_i32, %arg1 : i32, i32
  }
  func.func @transform_3(%arg0: i32, %arg1: i32) -> (i32, i32) {
    %c0_i32 = arith.constant 0 : i32
    %c0_i32_0 = arith.constant 0 : i32
    return %arg1, %c0_i32 : i32, i32
  }
  func.func @transform_4(%arg0: i32, %arg1: i32) -> (i32, i32) {
    %c0_i32 = arith.constant 0 : i32
    %c0_i32_0 = arith.constant 0 : i32
    return %c0_i32, %arg1 : i32, i32
  }
  func.func @transform_5(%arg0: i32, %arg1: i32) -> (i32, i32) {
    %c0_i32 = arith.constant 0 : i32
    %c0_i32_0 = arith.constant 0 : i32
    %c0_i32_1 = arith.constant 0 : i32
    return %c0_i32, %c0_i32_0 : i32, i32
  }
  func.func @transform_6(%arg0: i32, %arg1: i32) -> (i32, i32) {
    %c0_i32 = arith.constant 0 : i32
    %c0_i32_0 = arith.constant 0 : i32
    %c0_i32_1 = arith.constant 0 : i32
    return %c0_i32, %c0_i32_0 : i32, i32
  }
  func.func @transform_7(%arg0: i32, %arg1: i32) -> (i32, i32) {
    %c0_i32 = arith.constant 0 : i32
    %c0_i32_0 = arith.constant 0 : i32
    %c0_i32_1 = arith.constant 0 : i32
    return %c0_i32, %c0_i32_0 : i32, i32
  }
  func.func @transform_8(%arg0: i32, %arg1: i32) -> (i32, i32) {
    %c0_i32 = arith.constant 0 : i32
    %c0_i32_0 = arith.constant 0 : i32
    %c0_i32_1 = arith.constant 0 : i32
    return %c0_i32, %c0_i32_0 : i32, i32
  }
  func.func @transform_9(%arg0: i32, %arg1: i32) -> (i32, i32) {
    %c0_i32 = arith.constant 0 : i32
    %c0_i32_0 = arith.constant 0 : i32
    %c0_i32_1 = arith.constant 0 : i32
    return %c0_i32, %c0_i32_0 : i32, i32
  }
  func.func @transform_10(%arg0: i32, %arg1: i32) -> (i32, i32) {
    %c0_i32 = arith.constant 0 : i32
    %c0_i32_0 = arith.constant 0 : i32
    return %arg0, %c0_i32 : i32, i32
  }
}

</mosaic_0001>

<llo_original>
// kernel: tpu_custom_call.1
$region0: #{tpu_custom_call.1}
  #allocation0 [shape = 'u32[]', space=smem, size = 0x4, offset = 0x4, fixed_abs, tag = 'smem constant byte address 0x4 - core index']
  #allocation1 [shape = 'u32[144,128]{1,0:T(1,128)}', space=vmem, size = 0x12000, scoped, tag = 'internal scratch']
  #allocation2 [shape = 'f32[256,4]{1,0:T(8,128)}', space=vmem, size = 0x20000, scoped, tag = 'scratch operand']
  %s0 = inlined_call_operand.vmem [shape: bf16[512,32], index: 0, kind: input, shape index: {}]
  %s1 = inlined_call_operand.vmem [shape: bf16[32,256], index: 1, kind: input, shape index: {}]
  %s2 = inlined_call_operand.vmem [shape: f32[1,256], index: 2, kind: input, shape index: {}]
  %s3 = inlined_call_operand.vmem [shape: bf16[256,32], index: 3, kind: input, shape index: {}]
  %s4 = inlined_call_operand.vmem [shape: bf16[4,256], index: 4, kind: input, shape index: {}]
  %s5 = inlined_call_operand.vmem [shape: bf16[4,32], index: 5, kind: input, shape index: {}]
  %s6 = inlined_call_operand.vmem [shape: bf16[32,64], index: 6, kind: input, shape index: {}]
  %s7 = inlined_call_operand.vmem [shape: f32[1,64], index: 7, kind: input, shape index: {}]
  %s8 = inlined_call_operand.vmem [shape: bf16[64,4], index: 8, kind: input, shape index: {}]
  %s9 = inlined_call_operand.vmem [shape: f32[1,4], index: 9, kind: input, shape index: {}]
  %s10 = inlined_call_operand.vmem [shape: f32[512,32], index: 10, kind: output, shape index: {}]
  %s11 = sld [smem:[#allocation0]]
  $region118: #{tpu_custom_call.1} parent=0
    _
  %s13 = ssub.s32 1, %s11
  %s14 = scalar_select 0, %s13, %s11
  $region1: #{tpu_custom_call.1} parent=0
    #allocation3 [shape = 'u8[16384]{0}', space=vmem, size = 0x4000, scoped, tag = 'input window, operand 1']
    loop: start=0, step=1, limit=6
    $region2: #{tpu_custom_call.1} parent=1 // loop_pre_header
      _
    $region3: #{tpu_custom_call.1} parent=1 // loop_header
      %s16 = sphi 0, %s20
      %p17 = scmp.ge.s32.totalorder %s16, 6
      %s23 = sphi 0, %s35
      %s24 = sphi 0, %s31
      %s25 = sphi 0, %s23
      %s26 = sphi 0, %s24
      %s27 = sphi 0, %s25
      %s28 = sphi 0, %s26
      %s38 = sphi 0, %s40
      %s41 = sphi 0, %s38
      %s42 = sphi 0, %s41
      %s58 = sphi 0, %s42
      %s64 = sphi 0, %s66
      %s67 = sphi 0, %s64
      %s68 = sphi 0, %s67
      %s84 = sphi 0, %s68
      %s90 = sphi 0, %s92
      %s93 = sphi 0, %s90
      %s94 = sphi 0, %s93
      %s110 = sphi 0, %s94
      %s116 = sphi 0, %s118
      %s119 = sphi 0, %s116
      %s120 = sphi 0, %s119
      %s136 = sphi 0, %s120
      %s142 = sphi 0, %s144
      %s145 = sphi 0, %s142
      %s146 = sphi 0, %s145
      %s162 = sphi 0, %s146
      %s166 = sphi 0, %s166
      %s168 = sphi 0, %s166
      %s169 = sphi 0, %s168
      %s183 = sphi 0, %s169
      %s187 = sphi 0, %s187
      %s189 = sphi 0, %s187
      %s190 = sphi 0, %s189
      %s204 = sphi 0, %s190
      %s208 = sphi 0, %s208
      %s210 = sphi 0, %s208
      %s211 = sphi 0, %s210
      %s225 = sphi 0, %s211
      %s229 = sphi 0, %s229
      %s231 = sphi 0, %s229
      %s232 = sphi 0, %s231
      %s246 = sphi 0, %s232
      %s250 = sphi 0, %s250
      %s252 = sphi 0, %s250
      %s253 = sphi 0, %s252
      %s267 = sphi 0, %s253
      %s273 = sphi 0, %s275
      %s276 = sphi 0, %s273
      %s277 = sphi 0, %s276
      %s293 = sphi 0, %s277
    $region4: #{tpu_custom_call.1} parent=1 // loop_header_branch
      %19 = sbr.rel (%p17) target = $region8
    $region5: #{tpu_custom_call.1} parent=1 // loop_body
      %s21 = ssub.s32 %s16, 1
      %s22 = ssub.s32 %s16, 2
      %s29 = sadd.s32 1, %s24
      %p30 = scmp.ge.s32.totalorder %s29, 2
      %s31 = scalar_select %p30, 0, %s29
      %s32 = sadd.s32 1, %s23
      %s33 = scalar_select %p30, %s32, %s23
      %p34 = scmp.ge.s32.totalorder %s33, 2
      %s35 = scalar_select %p34, 0, %s33
      %s36 = ssub.s32 %s23, %s35
      %p37 = scmp.eq.s32.totalorder %s36, 0
      %s39 = sadd.s32 %s38, 1
      %s40 = scalar_select %p37, %s38, %s39
      %p43 = pneg %p37
      %p44 = scmp.eq.s32.totalorder %s16, 3
      %p45 = por %p43, %p44
      %p46 = scmp.ne.s32.totalorder %s38, %s41
      %p47 = scmp.eq.s32.totalorder %s16, 0
      %p48 = por %p46, %p47
      %p49 = scmp.ne.s32.totalorder %s38, %s41
      %p50 = scmp.eq.s32.totalorder %s21, 3
      %p51 = por %p49, %p50
      %p52 = scmp.ne.s32.totalorder %s41, %s42
      %p53 = scmp.eq.s32.totalorder %s21, 0
      %p54 = por %p52, %p53
      %p55 = scmp.ne.s32.totalorder %s41, %s42
      %p56 = scmp.eq.s32.totalorder %s22, 3
      %p57 = por %p55, %p56
      %p59 = scmp.ne.s32.totalorder %s42, %s58
      %p60 = scmp.eq.s32.totalorder %s22, 0
      %p61 = por %p59, %p60
      %s62 = ssub.s32 %s24, %s31
      %p63 = scmp.eq.s32.totalorder %s62, 0
      %s65 = sadd.s32 %s64, 1
      %s66 = scalar_select %p63, %s64, %s65
      %p69 = pneg %p63
      %p70 = scmp.eq.s32.totalorder %s16, 3
      %p71 = por %p69, %p70
      %p72 = scmp.ne.s32.totalorder %s64, %s67
      %p73 = scmp.eq.s32.totalorder %s16, 0
      %p74 = por %p72, %p73
      %p75 = scmp.ne.s32.totalorder %s64, %s67
      %p76 = scmp.eq.s32.totalorder %s21, 3
      %p77 = por %p75, %p76
      %p78 = scmp.ne.s32.totalorder %s67, %s68
      %p79 = scmp.eq.s32.totalorder %s21, 0
      %p80 = por %p78, %p79
      %p81 = scmp.ne.s32.totalorder %s67, %s68
      %p82 = scmp.eq.s32.totalorder %s22, 3
      %p83 = por %p81, %p82
      %p85 = scmp.ne.s32.totalorder %s68, %s84
      %p86 = scmp.eq.s32.totalorder %s22, 0
      %p87 = por %p85, %p86
      %s88 = ssub.s32 %s24, %s31
      %p89 = scmp.eq.s32.totalorder %s88, 0
      %s91 = sadd.s32 %s90, 1
      %s92 = scalar_select %p89, %s90, %s91
      %p95 = pneg %p89
      %p96 = scmp.eq.s32.totalorder %s16, 3
      %p97 = por %p95, %p96
      %p98 = scmp.ne.s32.totalorder %s90, %s93
      %p99 = scmp.eq.s32.totalorder %s16, 0
      %p100 = por %p98, %p99
      %p101 = scmp.ne.s32.totalorder %s90, %s93
      %p102 = scmp.eq.s32.totalorder %s21, 3
      %p103 = por %p101, %p102
      %p104 = scmp.ne.s32.totalorder %s93, %s94
      %p105 = scmp.eq.s32.totalorder %s21, 0
      %p106 = por %p104, %p105
      %p107 = scmp.ne.s32.totalorder %s93, %s94
      %p108 = scmp.eq.s32.totalorder %s22, 3
      %p109 = por %p107, %p108
      %p111 = scmp.ne.s32.totalorder %s94, %s110
      %p112 = scmp.eq.s32.totalorder %s22, 0
      %p113 = por %p111, %p112
      %s114 = ssub.s32 %s24, %s31
      %p115 = scmp.eq.s32.totalorder %s114, 0
      %s117 = sadd.s32 %s116, 1
      %s118 = scalar_select %p115, %s116, %s117
      %p121 = pneg %p115
      %p122 = scmp.eq.s32.totalorder %s16, 3
      %p123 = por %p121, %p122
      %p124 = scmp.ne.s32.totalorder %s116, %s119
      %p125 = scmp.eq.s32.totalorder %s16, 0
      %p126 = por %p124, %p125
      %p127 = scmp.ne.s32.totalorder %s116, %s119
      %p128 = scmp.eq.s32.totalorder %s21, 3
      %p129 = por %p127, %p128
      %p130 = scmp.ne.s32.totalorder %s119, %s120
      %p131 = scmp.eq.s32.totalorder %s21, 0
      %p132 = por %p130, %p131
      %p133 = scmp.ne.s32.totalorder %s119, %s120
      %p134 = scmp.eq.s32.totalorder %s22, 3
      %p135 = por %p133, %p134
      %p137 = scmp.ne.s32.totalorder %s120, %s136
      %p138 = scmp.eq.s32.totalorder %s22, 0
      %p139 = por %p137, %p138
      %s140 = ssub.s32 %s24, %s31
      %p141 = scmp.eq.s32.totalorder %s140, 0
      %s143 = sadd.s32 %s142, 1
      %s144 = scalar_select %p141, %s142, %s143
      %p147 = pneg %p141
      %p148 = scmp.eq.s32.totalorder %s16, 3
      %p149 = por %p147, %p148
      %p150 = scmp.ne.s32.totalorder %s142, %s145
      %p151 = scmp.eq.s32.totalorder %s16, 0
      %p152 = por %p150, %p151
      %p153 = scmp.ne.s32.totalorder %s142, %s145
      %p154 = scmp.eq.s32.totalorder %s21, 3
      %p155 = por %p153, %p154
      %p156 = scmp.ne.s32.totalorder %s145, %s146
      %p157 = scmp.eq.s32.totalorder %s21, 0
      %p158 = por %p156, %p157
      %p159 = scmp.ne.s32.totalorder %s145, %s146
      %p160 = scmp.eq.s32.totalorder %s22, 3
      %p161 = por %p159, %p160
      %p163 = scmp.ne.s32.totalorder %s146, %s162
      %p164 = scmp.eq.s32.totalorder %s22, 0
      %p165 = por %p163, %p164
      %s167 = sadd.s32 %s166, 1
      %p170 = scmp.eq.s32.totalorder %s16, 3
      %p171 = scmp.ne.s32.totalorder %s166, %s168
      %p172 = scmp.eq.s32.totalorder %s16, 0
      %p173 = por %p171, %p172
      %p174 = scmp.ne.s32.totalorder %s166, %s168
      %p175 = scmp.eq.s32.totalorder %s21, 3
      %p176 = por %p174, %p175
      %p177 = scmp.ne.s32.totalorder %s168, %s169
      %p178 = scmp.eq.s32.totalorder %s21, 0
      %p179 = por %p177, %p178
      %p180 = scmp.ne.s32.totalorder %s168, %s169
      %p181 = scmp.eq.s32.totalorder %s22, 3
      %p182 = por %p180, %p181
      %p184 = scmp.ne.s32.totalorder %s169, %s183
      %p185 = scmp.eq.s32.totalorder %s22, 0
      %p186 = por %p184, %p185
      %s188 = sadd.s32 %s187, 1
      %p191 = scmp.eq.s32.totalorder %s16, 3
      %p192 = scmp.ne.s32.totalorder %s187, %s189
      %p193 = scmp.eq.s32.totalorder %s16, 0
      %p194 = por %p192, %p193
      %p195 = scmp.ne.s32.totalorder %s187, %s189
      %p196 = scmp.eq.s32.totalorder %s21, 3
      %p197 = por %p195, %p196
      %p198 = scmp.ne.s32.totalorder %s189, %s190
      %p199 = scmp.eq.s32.totalorder %s21, 0
      %p200 = por %p198, %p199
      %p201 = scmp.ne.s32.totalorder %s189, %s190
      %p202 = scmp.eq.s32.totalorder %s22, 3
      %p203 = por %p201, %p202
      %p205 = scmp.ne.s32.totalorder %s190, %s204
      %p206 = scmp.eq.s32.totalorder %s22, 0
      %p207 = por %p205, %p206
      %s209 = sadd.s32 %s208, 1
      %p212 = scmp.eq.s32.totalorder %s16, 3
      %p213 = scmp.ne.s32.totalorder %s208, %s210
      %p214 = scmp.eq.s32.totalorder %s16, 0
      %p215 = por %p213, %p214
      %p216 = scmp.ne.s32.totalorder %s208, %s210
      %p217 = scmp.eq.s32.totalorder %s21, 3
      %p218 = por %p216, %p217
      %p219 = scmp.ne.s32.totalorder %s210, %s211
      %p220 = scmp.eq.s32.totalorder %s21, 0
      %p221 = por %p219, %p220
      %p222 = scmp.ne.s32.totalorder %s210, %s211
      %p223 = scmp.eq.s32.totalorder %s22, 3
      %p224 = por %p222, %p223
      %p226 = scmp.ne.s32.totalorder %s211, %s225
      %p227 = scmp.eq.s32.totalorder %s22, 0
      %p228 = por %p226, %p227
      %s230 = sadd.s32 %s229, 1
      %p233 = scmp.eq.s32.totalorder %s16, 3
      %p234 = scmp.ne.s32.totalorder %s229, %s231
      %p235 = scmp.eq.s32.totalorder %s16, 0
      %p236 = por %p234, %p235
      %p237 = scmp.ne.s32.totalorder %s229, %s231
      %p238 = scmp.eq.s32.totalorder %s21, 3
      %p239 = por %p237, %p238
      %p240 = scmp.ne.s32.totalorder %s231, %s232
      %p241 = scmp.eq.s32.totalorder %s21, 0
      %p242 = por %p240, %p241
      %p243 = scmp.ne.s32.totalorder %s231, %s232
      %p244 = scmp.eq.s32.totalorder %s22, 3
      %p245 = por %p243, %p244
      %p247 = scmp.ne.s32.totalorder %s232, %s246
      %p248 = scmp.eq.s32.totalorder %s22, 0
      %p249 = por %p247, %p248
      %s251 = sadd.s32 %s250, 1
      %p254 = scmp.eq.s32.totalorder %s16, 3
      %p255 = scmp.ne.s32.totalorder %s250, %s252
      %p256 = scmp.eq.s32.totalorder %s16, 0
      %p257 = por %p255, %p256
      %p258 = scmp.ne.s32.totalorder %s250, %s252
      %p259 = scmp.eq.s32.totalorder %s21, 3
      %p260 = por %p258, %p259
      %p261 = scmp.ne.s32.totalorder %s252, %s253
      %p262 = scmp.eq.s32.totalorder %s21, 0
      %p263 = por %p261, %p262
      %p264 = scmp.ne.s32.totalorder %s252, %s253
      %p265 = scmp.eq.s32.totalorder %s22, 3
      %p266 = por %p264, %p265
      %p268 = scmp.ne.s32.totalorder %s253, %s267
      %p269 = scmp.eq.s32.totalorder %s22, 0
      %p270 = por %p268, %p269
      %s271 = ssub.s32 %s23, %s35
      %p272 = scmp.eq.s32.totalorder %s271, 0
      %s274 = sadd.s32 %s273, 1
      %s275 = scalar_select %p272, %s273, %s274
      %p278 = pneg %p272
      %p279 = scmp.eq.s32.totalorder %s16, 3
      %p280 = por %p278, %p279
      %p281 = scmp.ne.s32.totalorder %s273, %s276
      %p282 = scmp.eq.s32.totalorder %s16, 0
      %p283 = por %p281, %p282
      %p284 = scmp.ne.s32.totalorder %s273, %s276
      %p285 = scmp.eq.s32.totalorder %s21, 3
      %p286 = por %p284, %p285
      %p287 = scmp.ne.s32.totalorder %s276, %s277
      %p288 = scmp.eq.s32.totalorder %s21, 0
      %p289 = por %p287, %p288
      %p290 = scmp.ne.s32.totalorder %s276, %s277
      %p291 = scmp.eq.s32.totalorder %s22, 3
      %p292 = por %p290, %p291
      %p294 = scmp.ne.s32.totalorder %s277, %s293
      %p295 = scmp.eq.s32.totalorder %s22, 0
      %p296 = por %p294, %p295
      %p297 = scmp.le.s32.totalorder 1, %s16
      %p298 = scmp.lt.s32.totalorder %s16, 5
      %p299 = pnand %p297, %p298
      %p300 = pneg %p299
      // Predicated region
      $region9: #{tpu_custom_call.1} parent=5 // pred_check
        _
      $region10: #{tpu_custom_call.1} parent=5 // pred_check_branch
        %302 = sbr.rel (%p299) target = $region12
      $region11: #{tpu_custom_call.1} parent=5 // pred_region
        %s303 = ssub.s32 %s16, 1
        // Predicated region
        $region13: #{tpu_custom_call.1} parent=11 // pred_check
          %p304 = pneg %p179
        $region14: #{tpu_custom_call.1} parent=11 // pred_check_branch
          %306 = sbr.rel (%p304) target = $region16
        $region15: #{tpu_custom_call.1} parent=11 // pred_region
          _
        $region16: #{tpu_custom_call.1} parent=11 // pred_fallthru
          _
        // Predicated region
        $region17: #{tpu_custom_call.1} parent=11 // pred_check
          %p307 = pneg %p200
        $region18: #{tpu_custom_call.1} parent=11 // pred_check_branch
          %309 = sbr.rel (%p307) target = $region20
        $region19: #{tpu_custom_call.1} parent=11 // pred_region
          _
        $region20: #{tpu_custom_call.1} parent=11 // pred_fallthru
          _
        // Predicated region
        $region21: #{tpu_custom_call.1} parent=11 // pred_check
          %p310 = pneg %p221
        $region22: #{tpu_custom_call.1} parent=11 // pred_check_branch
          %312 = sbr.rel (%p310) target = $region24
        $region23: #{tpu_custom_call.1} parent=11 // pred_region
          _
        $region24: #{tpu_custom_call.1} parent=11 // pred_fallthru
          _
        // Predicated region
        $region25: #{tpu_custom_call.1} parent=11 // pred_check
          %p313 = pneg %p242
        $region26: #{tpu_custom_call.1} parent=11 // pred_check_branch
          %315 = sbr.rel (%p313) target = $region28
        $region27: #{tpu_custom_call.1} parent=11 // pred_region
          _
        $region28: #{tpu_custom_call.1} parent=11 // pred_fallthru
          _
        // Predicated region
        $region29: #{tpu_custom_call.1} parent=11 // pred_check
          %p316 = pneg %p263
        $region30: #{tpu_custom_call.1} parent=11 // pred_check_branch
          %318 = sbr.rel (%p316) target = $region32
        $region31: #{tpu_custom_call.1} parent=11 // pred_region
          _
        $region32: #{tpu_custom_call.1} parent=11 // pred_fallthru
          _
      $region12: #{tpu_custom_call.1} parent=5 // pred_fallthru
        _
      %p319 = scmp.lt.s32.totalorder %s16, 4
      // Predicated region
      $region33: #{tpu_custom_call.1} parent=5 // pred_check
        %p320 = pneg %p319
      $region34: #{tpu_custom_call.1} parent=5 // pred_check_branch
        %322 = sbr.rel (%p320) target = $region36
      $region35: #{tpu_custom_call.1} parent=5 // pred_region
        // Predicated region
        $region37: #{tpu_custom_call.1} parent=35 // pred_check
          %p323 = pneg %p48
        $region38: #{tpu_custom_call.1} parent=35 // pred_check_branch
          %325 = sbr.rel (%p323) target = $region40
        $region39: #{tpu_custom_call.1} parent=35 // pred_region
          %s326 = smul.u32 32, %s23
          %p327 = scmp.lt.s32.totalorder %s326, 63
          %s328 = scalar_select %p327, %s326, 63
          %s329 = smul.addr %s328, 4
          %s330 = scalar_lea.vmem %s0, %s329
          %s331 = smul.u32 32, %s23
        $region40: #{tpu_custom_call.1} parent=35 // pred_fallthru
          _
        // Predicated region
        $region41: #{tpu_custom_call.1} parent=35 // pred_check
          %p332 = pneg %p74
        $region42: #{tpu_custom_call.1} parent=35 // pred_check_branch
          %334 = sbr.rel (%p332) target = $region44
        $region43: #{tpu_custom_call.1} parent=35 // pred_region
          %s335 = sand.u32 %s64, 1
          %s336 = sand.u32 %s64, 1
          %s337 = smul.addr %s336, 16
          %s338 = scalar_lea.vmem [#allocation3], %s337
          %s339 = smul.addr %s24, 4
          %s340 = scalar_lea.vmem %s1, %s339
          // Predicated region
          $region45: #{tpu_custom_call.1} parent=43 // pred_check
            _
          $region46: #{tpu_custom_call.1} parent=43 // pred_check_branch
            %342 = sbr.rel (0) target = $region48
          $region47: #{tpu_custom_call.1} parent=43 // pred_region
            // Predicated region
            $region49: #{tpu_custom_call.1} parent=47 // pred_check
              _
            $region50: #{tpu_custom_call.1} parent=47 // pred_check_branch
              %344 = sbr.rel target = $region52
            $region51: #{tpu_custom_call.1} parent=47 // pred_region
              // Predicated region
              $region64: #{tpu_custom_call.1} parent=51 // pred_check
                _
              $region65: #{tpu_custom_call.1} parent=51 // pred_check_branch
                %365 = sbr.rel (0) target = $region67
              $region66: #{tpu_custom_call.1} parent=51 // pred_region
                loop: start=0, step=1, limit=1
                $region68: #{tpu_custom_call.1} parent=66 // loop_pre_header
                  _
                $region69: #{tpu_custom_call.1} parent=66 // loop_header
                  %s367 = sphi 0, %s371
                  %p368 = scmp.ge.s32.totalorder %s367, 1
                  %s372 = sphi %s340, %s340
                  %s373 = sphi %s338, %s338
                $region70: #{tpu_custom_call.1} parent=66 // loop_header_branch
                  %370 = sbr.rel (%p368) target = $region74
                $region71: #{tpu_custom_call.1} parent=66 // loop_body
                  _
                $region72: #{tpu_custom_call.1} parent=66 // loop_footer
                  %s371 = sadd.s32 1, %s367
                $region73: #{tpu_custom_call.1} parent=66 // loop_footer_branch
                  %366 = sbr.rel target = $region69
                $region74: #{tpu_custom_call.1} parent=66 // loop_exit
                  _
                loop: start=0, step=1, limit=1
                $region75: #{tpu_custom_call.1} parent=66 // loop_pre_header
                  _
                $region76: #{tpu_custom_call.1} parent=66 // loop_header
                  %s376 = sphi 0, %s380
                  %p377 = scmp.ge.s32.totalorder %s376, 1
                  %s381 = sphi %s340, %s340
                  %s382 = sphi %s338, %s338
                $region77: #{tpu_custom_call.1} parent=66 // loop_header_branch
                  %379 = sbr.rel (%p377) target = $region81
                $region78: #{tpu_custom_call.1} parent=66 // loop_body
                  %v383 = vld [vmem:[%s381] sm:$0xf]
                  %384 = vst [vmem:[%s382] sm:$0xf] %v383
                  %v385 = vld [vmem:[%s381 + $0x8] sm:$0xf]
                  %386 = vst [vmem:[%s382 + $0x4] sm:$0xf] %v385
                  %v387 = vld [vmem:[%s381 + $0x10] sm:$0xf]
                  %388 = vst [vmem:[%s382 + $0x8] sm:$0xf] %v387
                  %v389 = vld [vmem:[%s381 + $0x18] sm:$0xf]
                  %390 = vst [vmem:[%s382 + $0xc] sm:$0xf] %v389
                $region79: #{tpu_custom_call.1} parent=66 // loop_footer
                  %s380 = sadd.s32 1, %s376
                $region80: #{tpu_custom_call.1} parent=66 // loop_footer_branch
                  %375 = sbr.rel target = $region76
                $region81: #{tpu_custom_call.1} parent=66 // loop_exit
                  _
              $region67: #{tpu_custom_call.1} parent=51 // pred_fallthru
                _
            $region52: #{tpu_custom_call.1} parent=47 // pred_fallthru
              _
            // Predicated region
            $region53: #{tpu_custom_call.1} parent=47 // pred_check
              _
            $region54: #{tpu_custom_call.1} parent=47 // pred_check_branch
              %346 = sbr.rel (0) target = $region56
            $region55: #{tpu_custom_call.1} parent=47 // pred_region
              loop: start=0, step=1, limit=1
              $region57: #{tpu_custom_call.1} parent=55 // loop_pre_header
                _
              $region58: #{tpu_custom_call.1} parent=55 // loop_header
                %s349 = sphi 0, %s353
                %p350 = scmp.ge.s32.totalorder %s349, 1
                %s354 = sphi %s340, %s340
                %s355 = sphi %s338, %s338
              $region59: #{tpu_custom_call.1} parent=55 // loop_header_branch
                %352 = sbr.rel (%p350) target = $region63
              $region60: #{tpu_custom_call.1} parent=55 // loop_body
                %v356 = vld [vmem:[%s354] sm:$0xf]
                %357 = vst [vmem:[%s355] sm:$0xf] %v356
                %v358 = vld [vmem:[%s354 + $0x8] sm:$0xf]
                %359 = vst [vmem:[%s355 + $0x4] sm:$0xf] %v358
                %v360 = vld [vmem:[%s354 + $0x10] sm:$0xf]
                %361 = vst [vmem:[%s355 + $0x8] sm:$0xf] %v360
                %v362 = vld [vmem:[%s354 + $0x18] sm:$0xf]
                %363 = vst [vmem:[%s355 + $0xc] sm:$0xf] %v362
              $region61: #{tpu_custom_call.1} parent=55 // loop_footer
                %s353 = sadd.s32 1, %s349
              $region62: #{tpu_custom_call.1} parent=55 // loop_footer_branch
                %348 = sbr.rel target = $region58
              $region63: #{tpu_custom_call.1} parent=55 // loop_exit
                _
            $region56: #{tpu_custom_call.1} parent=47 // pred_fallthru
              _
          $region48: #{tpu_custom_call.1} parent=43 // pred_fallthru
            _
          %391 = vnop
        $region44: #{tpu_custom_call.1} parent=35 // pred_fallthru
          _
        // Predicated region
        $region82: #{tpu_custom_call.1} parent=35 // pred_check
          %p392 = pneg %p100
        $region83: #{tpu_custom_call.1} parent=35 // pred_check_branch
          %394 = sbr.rel (%p392) target = $region85
        $region84: #{tpu_custom_call.1} parent=35 // pred_region
          %p395 = scmp.lt.s32.totalorder %s24, 1
          %s396 = scalar_select %p395, %s24, 1
          %s397 = scalar_lea.vmem %s2, %s396
        $region85: #{tpu_custom_call.1} parent=35 // pred_fallthru
          _
        // Predicated region
        $region86: #{tpu_custom_call.1} parent=35 // pred_check
          %p398 = pneg %p126
        $region87: #{tpu_custom_call.1} parent=35 // pred_check_branch
          %400 = sbr.rel (%p398) target = $region89
        $region88: #{tpu_custom_call.1} parent=35 // pred_region
          %s401 = smul.u32 16, %s24
          %p402 = scmp.lt.s32.totalorder %s401, 31
          %s403 = scalar_select %p402, %s401, 31
          %s404 = smul.addr %s403, 4
          %s405 = scalar_lea.vmem %s3, %s404
          %s406 = smul.u32 16, %s24
        $region89: #{tpu_custom_call.1} parent=35 // pred_fallthru
          _
        // Predicated region
        $region90: #{tpu_custom_call.1} parent=35 // pred_check
          %p407 = pneg %p152
        $region91: #{tpu_custom_call.1} parent=35 // pred_check_branch
          %409 = sbr.rel (%p407) target = $region93
        $region92: #{tpu_custom_call.1} parent=35 // pred_region
          %p410 = scmp.lt.s32.totalorder %s24, 1
          %s411 = scalar_select %p410, %s24, 1
          %s412 = smul.addr %s411, 2
          %s413 = scalar_lea.vmem %s4, %s412
        $region93: #{tpu_custom_call.1} parent=35 // pred_fallthru
          _
      $region36: #{tpu_custom_call.1} parent=5 // pred_fallthru
        _
      %p414 = scmp.le.s32.totalorder 1, %s16
      %p415 = scmp.lt.s32.totalorder %s16, 5
      %p416 = pnand %p414, %p415
      %p417 = pneg %p416
      // Predicated region
      $region94: #{tpu_custom_call.1} parent=5 // pred_check
        _
      $region95: #{tpu_custom_call.1} parent=5 // pred_check_branch
        %419 = sbr.rel (%p416) target = $region97
      $region96: #{tpu_custom_call.1} parent=5 // pred_region
        %s420 = ssub.s32 %s16, 1
        %s421 = sand.u32 %s67, 1
        %s422 = sand.u32 %s67, 1
        %s423 = smul.addr %s422, 16
        %s424 = scalar_lea.vmem [#allocation3], %s423
        // Predicated region
        $region98: #{tpu_custom_call.1} parent=96 // pred_check
          %p425 = pneg %p80
        $region99: #{tpu_custom_call.1} parent=96 // pred_check_branch
          %427 = sbr.rel (%p425) target = $region101
        $region100: #{tpu_custom_call.1} parent=96 // pred_region
          _
        $region101: #{tpu_custom_call.1} parent=96 // pred_fallthru
          _
        %s428 = smul.u32 32, %s25
        %p429 = scmp.lt.s32.totalorder %s428, 63
        %s430 = scalar_select %p429, %s428, 63
        %s431 = smul.addr %s430, 4
        %s432 = scalar_lea.vmem %s0, %s431
        %p433 = pneg %p54
        %p434 = pneg %p51
        %s435 = sand.u32 %s67, 1
        %s436 = sand.u32 %s67, 1
        %s437 = smul.addr %s436, 16
        %s438 = scalar_lea.vmem [#allocation3], %s437
        %p439 = pneg %p80
        %p440 = pneg %p77
        %p441 = scmp.lt.s32.totalorder %s26, 1
        %s442 = scalar_select %p441, %s26, 1
        %s443 = scalar_lea.vmem %s2, %s442
        %p444 = pneg %p106
        %p445 = pneg %p103
        %s446 = smul.u32 16, %s26
        %p447 = scmp.lt.s32.totalorder %s446, 31
        %s448 = scalar_select %p447, %s446, 31
        %s449 = smul.addr %s448, 4
        %s450 = scalar_lea.vmem %s3, %s449
        %p451 = pneg %p132
        %p452 = pneg %p129
        %p453 = scmp.lt.s32.totalorder %s26, 1
        %s454 = scalar_select %p453, %s26, 1
        %s455 = smul.addr %s454, 2
        %s456 = scalar_lea.vmem %s4, %s455
        %p457 = pneg %p158
        %p458 = pneg %p155
        %p459 = pneg %p179
        %p460 = pneg %p176
        %p461 = pneg %p200
        %p462 = pneg %p197
        %p463 = pneg %p221
        %p464 = pneg %p218
        %p465 = pneg %p242
        %p466 = pneg %p239
        %p467 = pneg %p263
        %p468 = pneg %p260
        %p469 = pneg %p289
        %p470 = pneg %p286
        %s471 = smul.u32 32, %s25
        %p472 = scmp.lt.s32.totalorder %s471, 63
        %s473 = scalar_select %p472, %s471, 63
        %s474 = smul.addr %s473, 8
        %s475 = scalar_lea.vmem %s10, %s474
        %s476 = smul.u32 32, %s25
        %p477 = scmp.lt.s32.totalorder %s476, 63
        %s478 = scalar_select %p477, %s476, 63
        %s479 = smul.addr %s478, 4
        %s480 = scalar_lea.vmem %s0, %s479
        %s481 = smul.u32 32, %s25
        %p482 = scmp.lt.s32.totalorder %s26, 1
        %s483 = scalar_select %p482, %s26, 1
        %s484 = scalar_lea.vmem %s2, %s483
        %s485 = smul.u32 16, %s26
        %p486 = scmp.lt.s32.totalorder %s485, 31
        %s487 = scalar_select %p486, %s485, 31
        %s488 = smul.addr %s487, 4
        %s489 = scalar_lea.vmem %s3, %s488
        %s490 = smul.u32 16, %s26
        %p491 = scmp.lt.s32.totalorder %s26, 1
        %s492 = scalar_select %p491, %s26, 1
        %s493 = smul.addr %s492, 2
        %s494 = scalar_lea.vmem %s4, %s493
        %s495 = smul.u32 32, %s25
        %p496 = scmp.lt.s32.totalorder %s495, 63
        %s497 = scalar_select %p496, %s495, 63
        %s498 = smul.addr %s497, 8
        %s499 = scalar_lea.vmem %s10, %s498
        %s500 = smul.u32 32, %s25
        %v502 = vld [vmem:[%s480] sm:$0xf]
        %v503 = vld [vmem:[%s480 + $0x4] sm:$0xf]
        %v504 = vld [vmem:[%s480 + $0x8] sm:$0xf]
        %v505 = vld [vmem:[%s480 + $0xc] sm:$0xf]
        %v506 = vld [vmem:[%s480 + $0x10] sm:$0xf]
        %v507 = vld [vmem:[%s480 + $0x14] sm:$0xf]
        %v508 = vld [vmem:[%s480 + $0x18] sm:$0xf]
        %v509 = vld [vmem:[%s480 + $0x1c] sm:$0xf]
        %v510 = vld [vmem:[%s480 + $0x20] sm:$0xf]
        %v511 = vld [vmem:[%s480 + $0x24] sm:$0xf]
        %v512 = vld [vmem:[%s480 + $0x28] sm:$0xf]
        %v513 = vld [vmem:[%s480 + $0x2c] sm:$0xf]
        %v514 = vld [vmem:[%s480 + $0x30] sm:$0xf]
        %v515 = vld [vmem:[%s480 + $0x34] sm:$0xf]
        %v516 = vld [vmem:[%s480 + $0x38] sm:$0xf]
        %v517 = vld [vmem:[%s480 + $0x3c] sm:$0xf]
        %v518 = vld [vmem:[%s480 + $0x40] sm:$0xf]
        %v519 = vld [vmem:[%s480 + $0x44] sm:$0xf]
        %v520 = vld [vmem:[%s480 + $0x48] sm:$0xf]
        %v521 = vld [vmem:[%s480 + $0x4c] sm:$0xf]
        %v522 = vld [vmem:[%s480 + $0x50] sm:$0xf]
        %v523 = vld [vmem:[%s480 + $0x54] sm:$0xf]
        %v524 = vld [vmem:[%s480 + $0x58] sm:$0xf]
        %v525 = vld [vmem:[%s480 + $0x5c] sm:$0xf]
        %v526 = vld [vmem:[%s480 + $0x60] sm:$0xf]
        %v527 = vld [vmem:[%s480 + $0x64] sm:$0xf]
        %v528 = vld [vmem:[%s480 + $0x68] sm:$0xf]
        %v529 = vld [vmem:[%s480 + $0x6c] sm:$0xf]
        %v530 = vld [vmem:[%s480 + $0x70] sm:$0xf]
        %v531 = vld [vmem:[%s480 + $0x74] sm:$0xf]
        %v532 = vld [vmem:[%s480 + $0x78] sm:$0xf]
        %v533 = vld [vmem:[%s480 + $0x7c] sm:$0xf]
        %p534 = scmp.eq.s32.totalorder %s26, 0
        // Predicated region
        $region102: #{tpu_custom_call.1} parent=96 // pred_check
          %p535 = pneg %p534
        $region103: #{tpu_custom_call.1} parent=96 // pred_check_branch
          %537 = sbr.rel (%p535) target = $region105
        $region104: #{tpu_custom_call.1} parent=96 // pred_region
          %v538 = vld [vmem:[%s6] sm:$0xf]
          %v539 = vld [vmem:[%s6 + $0x4] sm:$0xf]
          %v540 = vld [vmem:[%s6 + $0x8] sm:$0xf]
          %v541 = vld [vmem:[%s6 + $0xc] sm:$0xf]
          %v542 = vld [vmem:[%s7] sm:$0x1]
          %v544 = vlaneseq
          %v545 = vshrl.u32 %v544, 7
          %v546 = vsub.s32 0, %v545
          %v547 = vrot.slane %v542, %v546
          %v581 = vunpack.c.l.b16 %v502
          %v582 = vunpack.c.l.b16 %v503
          %v583 = vunpack.c.l.b16 %v504
          %v584 = vunpack.c.l.b16 %v505
          %v585 = vunpack.c.l.b16 %v506
          %v586 = vunpack.c.l.b16 %v507
          %v587 = vunpack.c.l.b16 %v508
          %v588 = vunpack.c.l.b16 %v509
          %v589 = vunpack.c.l.b16 %v510
          %v590 = vunpack.c.l.b16 %v511
          %v591 = vunpack.c.l.b16 %v512
          %v592 = vunpack.c.l.b16 %v513
          %v593 = vunpack.c.l.b16 %v514
          %v594 = vunpack.c.l.b16 %v515
          %v595 = vunpack.c.l.b16 %v516
          %v596 = vunpack.c.l.b16 %v517
          %v597 = vunpack.c.l.b16 %v518
          %v598 = vunpack.c.l.b16 %v519
          %v599 = vunpack.c.l.b16 %v520
          %v600 = vunpack.c.l.b16 %v521
          %v601 = vunpack.c.l.b16 %v522
          %v602 = vunpack.c.l.b16 %v523
          %v603 = vunpack.c.l.b16 %v524
          %v604 = vunpack.c.l.b16 %v525
          %v605 = vunpack.c.l.b16 %v526
          %v606 = vunpack.c.l.b16 %v527
          %v607 = vunpack.c.l.b16 %v528
          %v608 = vunpack.c.l.b16 %v529
          %v609 = vunpack.c.l.b16 %v530
          %v610 = vunpack.c.l.b16 %v531
          %v611 = vunpack.c.l.b16 %v532
          %v612 = vunpack.c.l.b16 %v533
          %v613 = vpack.c.b16 %v582, %v581
          %v614 = vpack.c.b16 %v584, %v583
          %v615 = vpack.c.b16 %v586, %v585
          %v616 = vpack.c.b16 %v588, %v587
          %v617 = vpack.c.b16 %v590, %v589
          %v618 = vpack.c.b16 %v592, %v591
          %v619 = vpack.c.b16 %v594, %v593
          %v620 = vpack.c.b16 %v596, %v595
          %v621 = vpack.c.b16 %v598, %v597
          %v622 = vpack.c.b16 %v600, %v599
          %v623 = vpack.c.b16 %v602, %v601
          %v624 = vpack.c.b16 %v604, %v603
          %v625 = vpack.c.b16 %v606, %v605
          %v626 = vpack.c.b16 %v608, %v607
          %v627 = vpack.c.b16 %v610, %v609
          %v628 = vpack.c.b16 %v612, %v611
          %v633 = vunpack.c.l.b16 %v538
          %v634 = vunpack.c.l.b16 %v539
          %v635 = vunpack.c.l.b16 %v540
          %v636 = vunpack.c.l.b16 %v541
          %v637 = vpack.c.b16 %v634, %v633
          %v638 = vpack.c.b16 %v636, %v635
          %vm641 = vcmask 261120
          %v643 = vsel %vm641, %v613, 0
          %v646 = vsel %vm641, %v614, 0
          %v649 = vsel %vm641, %v615, 0
          %v652 = vsel %vm641, %v616, 0
          %v655 = vsel %vm641, %v617, 0
          %v658 = vsel %vm641, %v618, 0
          %v661 = vsel %vm641, %v619, 0
          %v664 = vsel %vm641, %v620, 0
          %v667 = vsel %vm641, %v621, 0
          %v670 = vsel %vm641, %v622, 0
          %v673 = vsel %vm641, %v623, 0
          %v676 = vsel %vm641, %v624, 0
          %v679 = vsel %vm641, %v625, 0
          %v682 = vsel %vm641, %v626, 0
          %v685 = vsel %vm641, %v627, 0
          %v688 = vsel %vm641, %v628, 0
          %690 = vmatprep.subr.bf16.mxu0 0
          %691 = vmatpush1.bf16.msra.mxu0 %v637
          %692 = vmatprep.subr.bf16.mxu0 0
          %693 = vmatpush1.bf16.msra.mxu0 %v638
          %694 = vmatprep.subr.bf16.mxu0 0
          %695 = vmatpush1.bf16.msra.mxu0 0
          %696 = vmatprep.subr.bf16.mxu0 0
          %697 = vmatpush1.bf16.msra.mxu0 0
          %698 = vmatprep.subr.bf16.mxu0 0
          %699 = vmatpush1.bf16.msra.mxu0 0
          %700 = vmatprep.subr.bf16.mxu0 0
          %701 = vmatpush1.bf16.msra.mxu0 0
          %702 = vmatprep.subr.bf16.mxu0 0
          %703 = vmatpush1.bf16.msra.mxu0 0
          %704 = vmatprep.subr.bf16.mxu0 0
          %705 = vmatpush1.bf16.msra.mxu0 0
          %706 = vmatprep.subr.bf16.mxu0 0
          %707 = vmatpush1.bf16.msra.mxu0 0
          %708 = vmatprep.subr.bf16.mxu0 0
          %709 = vmatpush1.bf16.msra.mxu0 0
          %710 = vmatprep.subr.bf16.mxu0 0
          %711 = vmatpush1.bf16.msra.mxu0 0
          %712 = vmatprep.subr.bf16.mxu0 0
          %713 = vmatpush1.bf16.msra.mxu0 0
          %714 = vmatprep.subr.bf16.mxu0 0
          %715 = vmatpush1.bf16.msra.mxu0 0
          %716 = vmatprep.subr.bf16.mxu0 0
          %717 = vmatpush1.bf16.msra.mxu0 0
          %718 = vmatprep.subr.bf16.mxu0 0
          %719 = vmatpush1.bf16.msra.mxu0 0
          %720 = vmatprep.subr.bf16.mxu0 0
          %721 = vmatpush1.bf16.msra.mxu0 0
          %722 = vmatprep.mubr.bf16.mxu0 0
          %723 = vmatmul.mubr.bf16.gmra.mrb[0].mxu0 %v643
          %v724 = vpop.f32.mrb[0].mxu0
          %v725 = vadd.f32 %v547, %v724
          %v726 = vpop.f32.mrb[0].mxu0
          %v727 = vpop.f32.mrb[0].mxu0
          %v728 = vadd.f32 %v547, %v727
          %v729 = vpop.f32.mrb[0].mxu0
          %730 = vmatprep.mubr.bf16.mxu0 0
          %731 = vmatmul.mubr.bf16.gmra.mrb[0].mxu0 %v646
          %v732 = vpop.f32.mrb[0].mxu0
          %v733 = vadd.f32 %v547, %v732
          %v734 = vpop.f32.mrb[0].mxu0
          %v735 = vpop.f32.mrb[0].mxu0
          %v736 = vadd.f32 %v547, %v735
          %v737 = vpop.f32.mrb[0].mxu0
          %738 = vmatprep.mubr.bf16.mxu0 0
          %739 = vmatmul.mubr.bf16.gmra.mrb[0].mxu0 %v649
          %v740 = vpop.f32.mrb[0].mxu0
          %v741 = vadd.f32 %v547, %v740
          %v742 = vpop.f32.mrb[0].mxu0
          %v743 = vpop.f32.mrb[0].mxu0
          %v744 = vadd.f32 %v547, %v743
          %v745 = vpop.f32.mrb[0].mxu0
          %746 = vmatprep.mubr.bf16.mxu0 0
          %747 = vmatmul.mubr.bf16.gmra.mrb[0].mxu0 %v652
          %v748 = vpop.f32.mrb[0].mxu0
          %v749 = vadd.f32 %v547, %v748
          %v750 = vpop.f32.mrb[0].mxu0
          %v751 = vpop.f32.mrb[0].mxu0
          %v752 = vadd.f32 %v547, %v751
          %v753 = vpop.f32.mrb[0].mxu0
          %754 = vmatprep.mubr.bf16.mxu0 0
          %755 = vmatmul.mubr.bf16.gmra.mrb[0].mxu0 %v655
          %v756 = vpop.f32.mrb[0].mxu0
          %v757 = vadd.f32 %v547, %v756
          %v758 = vpop.f32.mrb[0].mxu0
          %v759 = vpop.f32.mrb[0].mxu0
          %v760 = vadd.f32 %v547, %v759
          %v761 = vpop.f32.mrb[0].mxu0
          %762 = vmatprep.mubr.bf16.mxu0 0
          %763 = vmatmul.mubr.bf16.gmra.mrb[0].mxu0 %v658
          %v764 = vpop.f32.mrb[0].mxu0
          %v765 = vadd.f32 %v547, %v764
          %v766 = vpop.f32.mrb[0].mxu0
          %v767 = vpop.f32.mrb[0].mxu0
          %v768 = vadd.f32 %v547, %v767
          %v769 = vpop.f32.mrb[0].mxu0
          %770 = vmatprep.mubr.bf16.mxu0 0
          %771 = vmatmul.mubr.bf16.gmra.mrb[0].mxu0 %v661
          %v772 = vpop.f32.mrb[0].mxu0
          %v773 = vadd.f32 %v547, %v772
          %v774 = vpop.f32.mrb[0].mxu0
          %v775 = vpop.f32.mrb[0].mxu0
          %v776 = vadd.f32 %v547, %v775
          %v777 = vpop.f32.mrb[0].mxu0
          %778 = vmatprep.mubr.bf16.mxu0 0
          %779 = vmatmul.mubr.bf16.gmra.mrb[0].mxu0 %v664
          %v780 = vpop.f32.mrb[0].mxu0
          %v781 = vadd.f32 %v547, %v780
          %v782 = vpop.f32.mrb[0].mxu0
          %v783 = vpop.f32.mrb[0].mxu0
          %v784 = vadd.f32 %v547, %v783
          %v785 = vpop.f32.mrb[0].mxu0
          %786 = vmatprep.mubr.bf16.mxu0 0
          %787 = vmatmul.mubr.bf16.gmra.mrb[0].mxu0 %v667
          %v788 = vpop.f32.mrb[0].mxu0
          %v789 = vadd.f32 %v547, %v788
          %v790 = vpop.f32.mrb[0].mxu0
          %v791 = vpop.f32.mrb[0].mxu0
          %v792 = vadd.f32 %v547, %v791
          %v793 = vpop.f32.mrb[0].mxu0
          %794 = vmatprep.mubr.bf16.mxu0 0
          %795 = vmatmul.mubr.bf16.gmra.mrb[0].mxu0 %v670
          %v796 = vpop.f32.mrb[0].mxu0
          %v797 = vadd.f32 %v547, %v796
          %v798 = vpop.f32.mrb[0].mxu0
          %v799 = vpop.f32.mrb[0].mxu0
          %v800 = vadd.f32 %v547, %v799
          %v801 = vpop.f32.mrb[0].mxu0
          %802 = vmatprep.mubr.bf16.mxu0 0
          %803 = vmatmul.mubr.bf16.gmra.mrb[0].mxu0 %v673
          %v804 = vpop.f32.mrb[0].mxu0
          %v805 = vadd.f32 %v547, %v804
          %v806 = vpop.f32.mrb[0].mxu0
          %v807 = vpop.f32.mrb[0].mxu0
          %v808 = vadd.f32 %v547, %v807
          %v809 = vpop.f32.mrb[0].mxu0
          %810 = vmatprep.mubr.bf16.mxu0 0
          %811 = vmatmul.mubr.bf16.gmra.mrb[0].mxu0 %v676
          %v812 = vpop.f32.mrb[0].mxu0
          %v813 = vadd.f32 %v547, %v812
          %v814 = vpop.f32.mrb[0].mxu0
          %v815 = vpop.f32.mrb[0].mxu0
          %v816 = vadd.f32 %v547, %v815
          %v817 = vpop.f32.mrb[0].mxu0
          %818 = vmatprep.mubr.bf16.mxu0 0
          %819 = vmatmul.mubr.bf16.gmra.mrb[0].mxu0 %v679
          %v820 = vpop.f32.mrb[0].mxu0
          %v821 = vadd.f32 %v547, %v820
          %v822 = vpop.f32.mrb[0].mxu0
          %v823 = vpop.f32.mrb[0].mxu0
          %v824 = vadd.f32 %v547, %v823
          %v825 = vpop.f32.mrb[0].mxu0
          %826 = vmatprep.mubr.bf16.mxu0 0
          %827 = vmatmul.mubr.bf16.gmra.mrb[0].mxu0 %v682
          %v828 = vpop.f32.mrb[0].mxu0
          %v829 = vadd.f32 %v547, %v828
          %v830 = vpop.f32.mrb[0].mxu0
          %v831 = vpop.f32.mrb[0].mxu0
          %v832 = vadd.f32 %v547, %v831
          %v833 = vpop.f32.mrb[0].mxu0
          %834 = vmatprep.mubr.bf16.mxu0 0
          %835 = vmatmul.mubr.bf16.gmra.mrb[0].mxu0 %v685
          %v836 = vpop.f32.mrb[0].mxu0
          %v837 = vadd.f32 %v547, %v836
          %v838 = vpop.f32.mrb[0].mxu0
          %v839 = vpop.f32.mrb[0].mxu0
          %v840 = vadd.f32 %v547, %v839
          %v841 = vpop.f32.mrb[0].mxu0
          %842 = vmatprep.mubr.bf16.mxu0 0
          %843 = vmatmul.mubr.bf16.gmra.mrb[0].mxu0 %v688
          %v844 = vpop.f32.mrb[0].mxu0
          %v845 = vadd.f32 %v547, %v844
          %v846 = vpop.f32.mrb[0].mxu0
          %v847 = vpop.f32.mrb[0].mxu0
          %v848 = vadd.f32 %v547, %v847
          %v849 = vpop.f32.mrb[0].mxu0
          %850 = vdwg.mxu0
          %v851 = vmax.f32 %v725, 0.0
          %v852 = vmax.f32 %v728, 0.0
          %v853 = vmax.f32 %v733, 0.0
          %v854 = vmax.f32 %v736, 0.0
          %v855 = vmax.f32 %v741, 0.0
          %v856 = vmax.f32 %v744, 0.0
          %v857 = vmax.f32 %v749, 0.0
          %v858 = vmax.f32 %v752, 0.0
          %v859 = vmax.f32 %v757, 0.0
          %v860 = vmax.f32 %v760, 0.0
          %v861 = vmax.f32 %v765, 0.0
          %v862 = vmax.f32 %v768, 0.0
          %v863 = vmax.f32 %v773, 0.0
          %v864 = vmax.f32 %v776, 0.0
          %v865 = vmax.f32 %v781, 0.0
          %v866 = vmax.f32 %v784, 0.0
          %v867 = vmax.f32 %v789, 0.0
          %v868 = vmax.f32 %v792, 0.0
          %v869 = vmax.f32 %v797, 0.0
          %v870 = vmax.f32 %v800, 0.0
          %v871 = vmax.f32 %v805, 0.0
          %v872 = vmax.f32 %v808, 0.0
          %v873 = vmax.f32 %v813, 0.0
          %v874 = vmax.f32 %v816, 0.0
          %v875 = vmax.f32 %v821, 0.0
          %v876 = vmax.f32 %v824, 0.0
          %v877 = vmax.f32 %v829, 0.0
          %v878 = vmax.f32 %v832, 0.0
          %v879 = vmax.f32 %v837, 0.0
          %v880 = vmax.f32 %v840, 0.0
          %v881 = vmax.f32 %v845, 0.0
          %v882 = vmax.f32 %v848, 0.0
          %v883 = vpack.c.bf16 %v852, %v851
          %v884 = vpack.c.bf16 %v854, %v853
          %v885 = vpack.c.bf16 %v856, %v855
          %v886 = vpack.c.bf16 %v858, %v857
          %v887 = vpack.c.bf16 %v860, %v859
          %v888 = vpack.c.bf16 %v862, %v861
          %v889 = vpack.c.bf16 %v864, %v863
          %v890 = vpack.c.bf16 %v866, %v865
          %v891 = vpack.c.bf16 %v868, %v867
          %v892 = vpack.c.bf16 %v870, %v869
          %v893 = vpack.c.bf16 %v872, %v871
          %v894 = vpack.c.bf16 %v874, %v873
          %v895 = vpack.c.bf16 %v876, %v875
          %v896 = vpack.c.bf16 %v878, %v877
          %v897 = vpack.c.bf16 %v880, %v879
          %v898 = vpack.c.bf16 %v882, %v881
          %v899 = vld [vmem:[%s8] sm:$0xf]
          %v900 = vld [vmem:[%s8 + $0x4] sm:$0xf]
          %v901 = vld [vmem:[%s8 + $0x8] sm:$0xf]
          %v902 = vld [vmem:[%s8 + $0xc] sm:$0xf]
          %v903 = vld [vmem:[%s8 + $0x10] sm:$0xf]
          %v904 = vld [vmem:[%s8 + $0x14] sm:$0xf]
          %v905 = vld [vmem:[%s8 + $0x18] sm:$0xf]
          %v906 = vld [vmem:[%s8 + $0x1c] sm:$0xf]
          %v907 = vld [vmem:[%s9] sm:$0x1]
          %v909 = vlaneseq
          %v910 = vshrl.u32 %v909, 7
          %v911 = vsub.s32 0, %v910
          %v912 = vrot.slane %v907, %v911
          %v922 = vunpack.c.l.b16 %v899
          %v923 = vunpack.c.l.b16 %v900
          %v924 = vunpack.c.l.b16 %v901
          %v925 = vunpack.c.l.b16 %v902
          %v926 = vunpack.c.l.b16 %v903
          %v927 = vunpack.c.l.b16 %v904
          %v928 = vunpack.c.l.b16 %v905
          %v929 = vunpack.c.l.b16 %v906
          %v930 = vpack.c.b16 %v923, %v922
          %v931 = vpack.c.b16 %v925, %v924
          %v932 = vpack.c.b16 %v927, %v926
          %v933 = vpack.c.b16 %v929, %v928
          %vm938 = vcmask 523264
          %v940 = vsel %vm938, %v883, 0
          %v943 = vsel %vm938, %v884, 0
          %v946 = vsel %vm938, %v885, 0
          %v949 = vsel %vm938, %v886, 0
          %v952 = vsel %vm938, %v887, 0
          %v955 = vsel %vm938, %v888, 0
          %v958 = vsel %vm938, %v889, 0
          %v961 = vsel %vm938, %v890, 0
          %v964 = vsel %vm938, %v891, 0
          %v967 = vsel %vm938, %v892, 0
          %v970 = vsel %vm938, %v893, 0
          %v973 = vsel %vm938, %v894, 0
          %v976 = vsel %vm938, %v895, 0
          %v979 = vsel %vm938, %v896, 0
          %v982 = vsel %vm938, %v897, 0
          %v985 = vsel %vm938, %v898, 0
          %987 = vmatprep.subr.bf16.mxu0 0
          %988 = vmatpush1.bf16.msra.mxu0 %v930
          %989 = vmatprep.subr.bf16.mxu0 0
          %990 = vmatpush1.bf16.msra.mxu0 %v931
          %991 = vmatprep.subr.bf16.mxu0 0
          %992 = vmatpush1.bf16.msra.mxu0 %v932
          %993 = vmatprep.subr.bf16.mxu0 0
          %994 = vmatpush1.bf16.msra.mxu0 %v933
          %995 = vmatprep.subr.bf16.mxu0 0
          %996 = vmatpush1.bf16.msra.mxu0 0
          %997 = vmatprep.subr.bf16.mxu0 0
          %998 = vmatpush1.bf16.msra.mxu0 0
          %999 = vmatprep.subr.bf16.mxu0 0
          %1000 = vmatpush1.bf16.msra.mxu0 0
          %1001 = vmatprep.subr.bf16.mxu0 0
          %1002 = vmatpush1.bf16.msra.mxu0 0
          %1003 = vmatprep.subr.bf16.mxu0 0
          %1004 = vmatpush1.bf16.msra.mxu0 0
          %1005 = vmatprep.subr.bf16.mxu0 0
          %1006 = vmatpush1.bf16.msra.mxu0 0
          %1007 = vmatprep.subr.bf16.mxu0 0
          %1008 = vmatpush1.bf16.msra.mxu0 0
          %1009 = vmatprep.subr.bf16.mxu0 0
          %1010 = vmatpush1.bf16.msra.mxu0 0
          %1011 = vmatprep.subr.bf16.mxu0 0
          %1012 = vmatpush1.bf16.msra.mxu0 0
          %1013 = vmatprep.subr.bf16.mxu0 0
          %1014 = vmatpush1.bf16.msra.mxu0 0
          %1015 = vmatprep.subr.bf16.mxu0 0
          %1016 = vmatpush1.bf16.msra.mxu0 0
          %1017 = vmatprep.subr.bf16.mxu0 0
          %1018 = vmatpush1.bf16.msra.mxu0 0
          %1019 = vmatprep.mubr.bf16.mxu0 0
          %1020 = vmatmul.mubr.bf16.gmra.mrb[0].mxu0 %v940
          %v1021 = vpop.f32.mrb[0].mxu0
          %v1022 = vadd.f32 %v912, %v1021
          %v1023 = vpop.f32.mrb[0].mxu0
          %v1024 = vpop.f32.mrb[0].mxu0
          %v1025 = vadd.f32 %v912, %v1024
          %v1026 = vpop.f32.mrb[0].mxu0
          %1027 = vmatprep.mubr.bf16.mxu0 0
          %1028 = vmatmul.mubr.bf16.gmra.mrb[0].mxu0 %v943
          %v1029 = vpop.f32.mrb[0].mxu0
          %v1030 = vadd.f32 %v912, %v1029
          %v1031 = vpop.f32.mrb[0].mxu0
          %v1032 = vpop.f32.mrb[0].mxu0
          %v1033 = vadd.f32 %v912, %v1032
          %v1034 = vpop.f32.mrb[0].mxu0
          %1035 = vmatprep.mubr.bf16.mxu0 0
          %1036 = vmatmul.mubr.bf16.gmra.mrb[0].mxu0 %v946
          %v1037 = vpop.f32.mrb[0].mxu0
          %v1038 = vadd.f32 %v912, %v1037
          %v1039 = vpop.f32.mrb[0].mxu0
          %v1040 = vpop.f32.mrb[0].mxu0
          %v1041 = vadd.f32 %v912, %v1040
          %v1042 = vpop.f32.mrb[0].mxu0
          %1043 = vmatprep.mubr.bf16.mxu0 0
          %1044 = vmatmul.mubr.bf16.gmra.mrb[0].mxu0 %v949
          %v1045 = vpop.f32.mrb[0].mxu0
          %v1046 = vadd.f32 %v912, %v1045
          %v1047 = vpop.f32.mrb[0].mxu0
          %v1048 = vpop.f32.mrb[0].mxu0
          %v1049 = vadd.f32 %v912, %v1048
          %v1050 = vpop.f32.mrb[0].mxu0
          %1051 = vmatprep.mubr.bf16.mxu0 0
          %1052 = vmatmul.mubr.bf16.gmra.mrb[0].mxu0 %v952
          %v1053 = vpop.f32.mrb[0].mxu0
          %v1054 = vadd.f32 %v912, %v1053
          %v1055 = vpop.f32.mrb[0].mxu0
          %v1056 = vpop.f32.mrb[0].mxu0
          %v1057 = vadd.f32 %v912, %v1056
          %v1058 = vpop.f32.mrb[0].mxu0
          %1059 = vmatprep.mubr.bf16.mxu0 0
          %1060 = vmatmul.mubr.bf16.gmra.mrb[0].mxu0 %v955
          %v1061 = vpop.f32.mrb[0].mxu0
          %v1062 = vadd.f32 %v912, %v1061
          %v1063 = vpop.f32.mrb[0].mxu0
          %v1064 = vpop.f32.mrb[0].mxu0
          %v1065 = vadd.f32 %v912, %v1064
          %v1066 = vpop.f32.mrb[0].mxu0
          %1067 = vmatprep.mubr.bf16.mxu0 0
          %1068 = vmatmul.mubr.bf16.gmra.mrb[0].mxu0 %v958
          %v1069 = vpop.f32.mrb[0].mxu0
          %v1070 = vadd.f32 %v912, %v1069
          %v1071 = vpop.f32.mrb[0].mxu0
          %v1072 = vpop.f32.mrb[0].mxu0
          %v1073 = vadd.f32 %v912, %v1072
          %v1074 = vpop.f32.mrb[0].mxu0
          %1075 = vmatprep.mubr.bf16.mxu0 0
          %1076 = vmatmul.mubr.bf16.gmra.mrb[0].mxu0 %v961
          %v1077 = vpop.f32.mrb[0].mxu0
          %v1078 = vadd.f32 %v912, %v1077
          %v1079 = vpop.f32.mrb[0].mxu0
          %v1080 = vpop.f32.mrb[0].mxu0
          %v1081 = vadd.f32 %v912, %v1080
          %v1082 = vpop.f32.mrb[0].mxu0
          %1083 = vmatprep.mubr.bf16.mxu0 0
          %1084 = vmatmul.mubr.bf16.gmra.mrb[0].mxu0 %v964
          %v1085 = vpop.f32.mrb[0].mxu0
          %v1086 = vadd.f32 %v912, %v1085
          %v1087 = vpop.f32.mrb[0].mxu0
          %v1088 = vpop.f32.mrb[0].mxu0
          %v1089 = vadd.f32 %v912, %v1088
          %v1090 = vpop.f32.mrb[0].mxu0
          %1091 = vmatprep.mubr.bf16.mxu0 0
          %1092 = vmatmul.mubr.bf16.gmra.mrb[0].mxu0 %v967
          %v1093 = vpop.f32.mrb[0].mxu0
          %v1094 = vadd.f32 %v912, %v1093
          %v1095 = vpop.f32.mrb[0].mxu0
          %v1096 = vpop.f32.mrb[0].mxu0
          %v1097 = vadd.f32 %v912, %v1096
          %v1098 = vpop.f32.mrb[0].mxu0
          %1099 = vmatprep.mubr.bf16.mxu0 0
          %1100 = vmatmul.mubr.bf16.gmra.mrb[0].mxu0 %v970
          %v1101 = vpop.f32.mrb[0].mxu0
          %v1102 = vadd.f32 %v912, %v1101
          %v1103 = vpop.f32.mrb[0].mxu0
          %v1104 = vpop.f32.mrb[0].mxu0
          %v1105 = vadd.f32 %v912, %v1104
          %v1106 = vpop.f32.mrb[0].mxu0
          %1107 = vmatprep.mubr.bf16.mxu0 0
          %1108 = vmatmul.mubr.bf16.gmra.mrb[0].mxu0 %v973
          %v1109 = vpop.f32.mrb[0].mxu0
          %v1110 = vadd.f32 %v912, %v1109
          %v1111 = vpop.f32.mrb[0].mxu0
          %v1112 = vpop.f32.mrb[0].mxu0
          %v1113 = vadd.f32 %v912, %v1112
          %v1114 = vpop.f32.mrb[0].mxu0
          %1115 = vmatprep.mubr.bf16.mxu0 0
          %1116 = vmatmul.mubr.bf16.gmra.mrb[0].mxu0 %v976
          %v1117 = vpop.f32.mrb[0].mxu0
          %v1118 = vadd.f32 %v912, %v1117
          %v1119 = vpop.f32.mrb[0].mxu0
          %v1120 = vpop.f32.mrb[0].mxu0
          %v1121 = vadd.f32 %v912, %v1120
          %v1122 = vpop.f32.mrb[0].mxu0
          %1123 = vmatprep.mubr.bf16.mxu0 0
          %1124 = vmatmul.mubr.bf16.gmra.mrb[0].mxu0 %v979
          %v1125 = vpop.f32.mrb[0].mxu0
          %v1126 = vadd.f32 %v912, %v1125
          %v1127 = vpop.f32.mrb[0].mxu0
          %v1128 = vpop.f32.mrb[0].mxu0
          %v1129 = vadd.f32 %v912, %v1128
          %v1130 = vpop.f32.mrb[0].mxu0
          %1131 = vmatprep.mubr.bf16.mxu0 0
          %1132 = vmatmul.mubr.bf16.gmra.mrb[0].mxu0 %v982
          %v1133 = vpop.f32.mrb[0].mxu0
          %v1134 = vadd.f32 %v912, %v1133
          %v1135 = vpop.f32.mrb[0].mxu0
          %v1136 = vpop.f32.mrb[0].mxu0
          %v1137 = vadd.f32 %v912, %v1136
          %v1138 = vpop.f32.mrb[0].mxu0
          %1139 = vmatprep.mubr.bf16.mxu0 0
          %1140 = vmatmul.mubr.bf16.gmra.mrb[0].mxu0 %v985
          %v1141 = vpop.f32.mrb[0].mxu0
          %v1142 = vadd.f32 %v912, %v1141
          %v1143 = vpop.f32.mrb[0].mxu0
          %v1144 = vpop.f32.mrb[0].mxu0
          %v1145 = vadd.f32 %v912, %v1144
          %v1146 = vpop.f32.mrb[0].mxu0
          %1147 = vdwg.mxu0
          %vm1148 = vcmask 31744
          %v1149 = vsel %vm1148, %v1022, -inf
          %1150 = vmax.xlane.f32.xlu0 %v1149
          %v1151 = vpop.xlane.xlu0 %1150
          %v1152 = vsel %vm1148, %v1025, -inf
          %1153 = vmax.xlane.f32.xlu0 %v1152
          %v1154 = vpop.xlane.xlu0 %1153
          %v1155 = vsel %vm1148, %v1030, -inf
          %1156 = vmax.xlane.f32.xlu0 %v1155
          %v1157 = vpop.xlane.xlu0 %1156
          %v1158 = vsel %vm1148, %v1033, -inf
          %1159 = vmax.xlane.f32.xlu0 %v1158
          %v1160 = vpop.xlane.xlu0 %1159
          %v1161 = vsel %vm1148, %v1038, -inf
          %1162 = vmax.xlane.f32.xlu0 %v1161
          %v1163 = vpop.xlane.xlu0 %1162
          %v1164 = vsel %vm1148, %v1041, -inf
          %1165 = vmax.xlane.f32.xlu0 %v1164
          %v1166 = vpop.xlane.xlu0 %1165
          %v1167 = vsel %vm1148, %v1046, -inf
          %1168 = vmax.xlane.f32.xlu0 %v1167
          %v1169 = vpop.xlane.xlu0 %1168
          %v1170 = vsel %vm1148, %v1049, -inf
          %1171 = vmax.xlane.f32.xlu0 %v1170
          %v1172 = vpop.xlane.xlu0 %1171
          %v1173 = vsel %vm1148, %v1054, -inf
          %1174 = vmax.xlane.f32.xlu0 %v1173
          %v1175 = vpop.xlane.xlu0 %1174
          %v1176 = vsel %vm1148, %v1057, -inf
          %1177 = vmax.xlane.f32.xlu0 %v1176
          %v1178 = vpop.xlane.xlu0 %1177
          %v1179 = vsel %vm1148, %v1062, -inf
          %1180 = vmax.xlane.f32.xlu0 %v1179
          %v1181 = vpop.xlane.xlu0 %1180
          %v1182 = vsel %vm1148, %v1065, -inf
          %1183 = vmax.xlane.f32.xlu0 %v1182
          %v1184 = vpop.xlane.xlu0 %1183
          %v1185 = vsel %vm1148, %v1070, -inf
          %1186 = vmax.xlane.f32.xlu0 %v1185
          %v1187 = vpop.xlane.xlu0 %1186
          %v1188 = vsel %vm1148, %v1073, -inf
          %1189 = vmax.xlane.f32.xlu0 %v1188
          %v1190 = vpop.xlane.xlu0 %1189
          %v1191 = vsel %vm1148, %v1078, -inf
          %1192 = vmax.xlane.f32.xlu0 %v1191
          %v1193 = vpop.xlane.xlu0 %1192
          %v1194 = vsel %vm1148, %v1081, -inf
          %1195 = vmax.xlane.f32.xlu0 %v1194
          %v1196 = vpop.xlane.xlu0 %1195
          %v1197 = vsel %vm1148, %v1086, -inf
          %1198 = vmax.xlane.f32.xlu0 %v1197
          %v1199 = vpop.xlane.xlu0 %1198
          %v1200 = vsel %vm1148, %v1089, -inf
          %1201 = vmax.xlane.f32.xlu0 %v1200
          %v1202 = vpop.xlane.xlu0 %1201
          %v1203 = vsel %vm1148, %v1094, -inf
          %1204 = vmax.xlane.f32.xlu0 %v1203
          %v1205 = vpop.xlane.xlu0 %1204
          %v1206 = vsel %vm1148, %v1097, -inf
          %1207 = vmax.xlane.f32.xlu0 %v1206
          %v1208 = vpop.xlane.xlu0 %1207
          %v1209 = vsel %vm1148, %v1102, -inf
          %1210 = vmax.xlane.f32.xlu0 %v1209
          %v1211 = vpop.xlane.xlu0 %1210
          %v1212 = vsel %vm1148, %v1105, -inf
          %1213 = vmax.xlane.f32.xlu0 %v1212
          %v1214 = vpop.xlane.xlu0 %1213
          %v1215 = vsel %vm1148, %v1110, -inf
          %1216 = vmax.xlane.f32.xlu0 %v1215
          %v1217 = vpop.xlane.xlu0 %1216
          %v1218 = vsel %vm1148, %v1113, -inf
          %1219 = vmax.xlane.f32.xlu0 %v1218
          %v1220 = vpop.xlane.xlu0 %1219
          %v1221 = vsel %vm1148, %v1118, -inf
          %1222 = vmax.xlane.f32.xlu0 %v1221
          %v1223 = vpop.xlane.xlu0 %1222
          %v1224 = vsel %vm1148, %v1121, -inf
          %1225 = vmax.xlane.f32.xlu0 %v1224
          %v1226 = vpop.xlane.xlu0 %1225
          %v1227 = vsel %vm1148, %v1126, -inf
          %1228 = vmax.xlane.f32.xlu0 %v1227
          %v1229 = vpop.xlane.xlu0 %1228
          %v1230 = vsel %vm1148, %v1129, -inf
          %1231 = vmax.xlane.f32.xlu0 %v1230
          %v1232 = vpop.xlane.xlu0 %1231
          %v1233 = vsel %vm1148, %v1134, -inf
          %1234 = vmax.xlane.f32.xlu0 %v1233
          %v1235 = vpop.xlane.xlu0 %1234
          %v1236 = vsel %vm1148, %v1137, -inf
          %1237 = vmax.xlane.f32.xlu0 %v1236
          %v1238 = vpop.xlane.xlu0 %1237
          %v1239 = vsel %vm1148, %v1142, -inf
          %1240 = vmax.xlane.f32.xlu0 %v1239
          %v1241 = vpop.xlane.xlu0 %1240
          %v1242 = vsel %vm1148, %v1145, -inf
          %1243 = vmax.xlane.f32.xlu0 %v1242
          %v1244 = vpop.xlane.xlu0 %1243
          %v1245 = vsub.f32 %v1022, %v1151
          %v1246 = vsub.f32 %v1025, %v1154
          %v1247 = vsub.f32 %v1030, %v1157
          %v1248 = vsub.f32 %v1033, %v1160
          %v1249 = vsub.f32 %v1038, %v1163
          %v1250 = vsub.f32 %v1041, %v1166
          %v1251 = vsub.f32 %v1046, %v1169
          %v1252 = vsub.f32 %v1049, %v1172
          %v1253 = vsub.f32 %v1054, %v1175
          %v1254 = vsub.f32 %v1057, %v1178
          %v1255 = vsub.f32 %v1062, %v1181
          %v1256 = vsub.f32 %v1065, %v1184
          %v1257 = vsub.f32 %v1070, %v1187
          %v1258 = vsub.f32 %v1073, %v1190
          %v1259 = vsub.f32 %v1078, %v1193
          %v1260 = vsub.f32 %v1081, %v1196
          %v1261 = vsub.f32 %v1086, %v1199
          %v1262 = vsub.f32 %v1089, %v1202
          %v1263 = vsub.f32 %v1094, %v1205
          %v1264 = vsub.f32 %v1097, %v1208
          %v1265 = vsub.f32 %v1102, %v1211
          %v1266 = vsub.f32 %v1105, %v1214
          %v1267 = vsub.f32 %v1110, %v1217
          %v1268 = vsub.f32 %v1113, %v1220
          %v1269 = vsub.f32 %v1118, %v1223
          %v1270 = vsub.f32 %v1121, %v1226
          %v1271 = vsub.f32 %v1126, %v1229
          %v1272 = vsub.f32 %v1129, %v1232
          %v1273 = vsub.f32 %v1134, %v1235
          %v1274 = vsub.f32 %v1137, %v1238
          %v1275 = vsub.f32 %v1142, %v1241
          %v1276 = vsub.f32 %v1145, %v1244
          %v1277 = vmul.f32 %v1245, 1.442695
          %v1278 = vpow.pop %v1277
          %v1279 = vmul.f32 %v1246, 1.442695
          %v1280 = vpow.pop %v1279
          %v1281 = vmul.f32 %v1247, 1.442695
          %v1282 = vpow.pop %v1281
          %v1283 = vmul.f32 %v1248, 1.442695
          %v1284 = vpow.pop %v1283
          %v1285 = vmul.f32 %v1249, 1.442695
          %v1286 = vpow.pop %v1285
          %v1287 = vmul.f32 %v1250, 1.442695
          %v1288 = vpow.pop %v1287
          %v1289 = vmul.f32 %v1251, 1.442695
          %v1290 = vpow.pop %v1289
          %v1291 = vmul.f32 %v1252, 1.442695
          %v1292 = vpow.pop %v1291
          %v1293 = vmul.f32 %v1253, 1.442695
          %v1294 = vpow.pop %v1293
          %v1295 = vmul.f32 %v1254, 1.442695
          %v1296 = vpow.pop %v1295
          %v1297 = vmul.f32 %v1255, 1.442695
          %v1298 = vpow.pop %v1297
          %v1299 = vmul.f32 %v1256, 1.442695
          %v1300 = vpow.pop %v1299
          %v1301 = vmul.f32 %v1257, 1.442695
          %v1302 = vpow.pop %v1301
          %v1303 = vmul.f32 %v1258, 1.442695
          %v1304 = vpow.pop %v1303
          %v1305 = vmul.f32 %v1259, 1.442695
          %v1306 = vpow.pop %v1305
          %v1307 = vmul.f32 %v1260, 1.442695
          %v1308 = vpow.pop %v1307
          %v1309 = vmul.f32 %v1261, 1.442695
          %v1310 = vpow.pop %v1309
          %v1311 = vmul.f32 %v1262, 1.442695
          %v1312 = vpow.pop %v1311
          %v1313 = vmul.f32 %v1263, 1.442695
          %v1314 = vpow.pop %v1313
          %v1315 = vmul.f32 %v1264, 1.442695
          %v1316 = vpow.pop %v1315
          %v1317 = vmul.f32 %v1265, 1.442695
          %v1318 = vpow.pop %v1317
          %v1319 = vmul.f32 %v1266, 1.442695
          %v1320 = vpow.pop %v1319
          %v1321 = vmul.f32 %v1267, 1.442695
          %v1322 = vpow.pop %v1321
          %v1323 = vmul.f32 %v1268, 1.442695
          %v1324 = vpow.pop %v1323
          %v1325 = vmul.f32 %v1269, 1.442695
          %v1326 = vpow.pop %v1325
          %v1327 = vmul.f32 %v1270, 1.442695
          %v1328 = vpow.pop %v1327
          %v1329 = vmul.f32 %v1271, 1.442695
          %v1330 = vpow.pop %v1329
          %v1331 = vmul.f32 %v1272, 1.442695
          %v1332 = vpow.pop %v1331
          %v1333 = vmul.f32 %v1273, 1.442695
          %v1334 = vpow.pop %v1333
          %v1335 = vmul.f32 %v1274, 1.442695
          %v1336 = vpow.pop %v1335
          %v1337 = vmul.f32 %v1275, 1.442695
          %v1338 = vpow.pop %v1337
          %v1339 = vmul.f32 %v1276, 1.442695
          %v1340 = vpow.pop %v1339
          %v1341 = vsel %vm1148, %v1278, 0.0
          %1342 = vadd.xlane.f32.xlu0 %v1341
          %v1343 = vpop.xlane.xlu0 %1342
          %v1344 = vsel %vm1148, %v1280, 0.0
          %1345 = vadd.xlane.f32.xlu0 %v1344
          %v1346 = vpop.xlane.xlu0 %1345
          %v1347 = vsel %vm1148, %v1282, 0.0
          %1348 = vadd.xlane.f32.xlu0 %v1347
          %v1349 = vpop.xlane.xlu0 %1348
          %v1350 = vsel %vm1148, %v1284, 0.0
          %1351 = vadd.xlane.f32.xlu0 %v1350
          %v1352 = vpop.xlane.xlu0 %1351
          %v1353 = vsel %vm1148, %v1286, 0.0
          %1354 = vadd.xlane.f32.xlu0 %v1353
          %v1355 = vpop.xlane.xlu0 %1354
          %v1356 = vsel %vm1148, %v1288, 0.0
          %1357 = vadd.xlane.f32.xlu0 %v1356
          %v1358 = vpop.xlane.xlu0 %1357
          %v1359 = vsel %vm1148, %v1290, 0.0
          %1360 = vadd.xlane.f32.xlu0 %v1359
          %v1361 = vpop.xlane.xlu0 %1360
          %v1362 = vsel %vm1148, %v1292, 0.0
          %1363 = vadd.xlane.f32.xlu0 %v1362
          %v1364 = vpop.xlane.xlu0 %1363
          %v1365 = vsel %vm1148, %v1294, 0.0
          %1366 = vadd.xlane.f32.xlu0 %v1365
          %v1367 = vpop.xlane.xlu0 %1366
          %v1368 = vsel %vm1148, %v1296, 0.0
          %1369 = vadd.xlane.f32.xlu0 %v1368
          %v1370 = vpop.xlane.xlu0 %1369
          %v1371 = vsel %vm1148, %v1298, 0.0
          %1372 = vadd.xlane.f32.xlu0 %v1371
          %v1373 = vpop.xlane.xlu0 %1372
          %v1374 = vsel %vm1148, %v1300, 0.0
          %1375 = vadd.xlane.f32.xlu0 %v1374
          %v1376 = vpop.xlane.xlu0 %1375
          %v1377 = vsel %vm1148, %v1302, 0.0
          %1378 = vadd.xlane.f32.xlu0 %v1377
          %v1379 = vpop.xlane.xlu0 %1378
          %v1380 = vsel %vm1148, %v1304, 0.0
          %1381 = vadd.xlane.f32.xlu0 %v1380
          %v1382 = vpop.xlane.xlu0 %1381
          %v1383 = vsel %vm1148, %v1306, 0.0
          %1384 = vadd.xlane.f32.xlu0 %v1383
          %v1385 = vpop.xlane.xlu0 %1384
          %v1386 = vsel %vm1148, %v1308, 0.0
          %1387 = vadd.xlane.f32.xlu0 %v1386
          %v1388 = vpop.xlane.xlu0 %1387
          %v1389 = vsel %vm1148, %v1310, 0.0
          %1390 = vadd.xlane.f32.xlu0 %v1389
          %v1391 = vpop.xlane.xlu0 %1390
          %v1392 = vsel %vm1148, %v1312, 0.0
          %1393 = vadd.xlane.f32.xlu0 %v1392
          %v1394 = vpop.xlane.xlu0 %1393
          %v1395 = vsel %vm1148, %v1314, 0.0
          %1396 = vadd.xlane.f32.xlu0 %v1395
          %v1397 = vpop.xlane.xlu0 %1396
          %v1398 = vsel %vm1148, %v1316, 0.0
          %1399 = vadd.xlane.f32.xlu0 %v1398
          %v1400 = vpop.xlane.xlu0 %1399
          %v1401 = vsel %vm1148, %v1318, 0.0
          %1402 = vadd.xlane.f32.xlu0 %v1401
          %v1403 = vpop.xlane.xlu0 %1402
          %v1404 = vsel %vm1148, %v1320, 0.0
          %1405 = vadd.xlane.f32.xlu0 %v1404
          %v1406 = vpop.xlane.xlu0 %1405
          %v1407 = vsel %vm1148, %v1322, 0.0
          %1408 = vadd.xlane.f32.xlu0 %v1407
          %v1409 = vpop.xlane.xlu0 %1408
          %v1410 = vsel %vm1148, %v1324, 0.0
          %1411 = vadd.xlane.f32.xlu0 %v1410
          %v1412 = vpop.xlane.xlu0 %1411
          %v1413 = vsel %vm1148, %v1326, 0.0
          %1414 = vadd.xlane.f32.xlu0 %v1413
          %v1415 = vpop.xlane.xlu0 %1414
          %v1416 = vsel %vm1148, %v1328, 0.0
          %1417 = vadd.xlane.f32.xlu0 %v1416
          %v1418 = vpop.xlane.xlu0 %1417
          %v1419 = vsel %vm1148, %v1330, 0.0
          %1420 = vadd.xlane.f32.xlu0 %v1419
          %v1421 = vpop.xlane.xlu0 %1420
          %v1422 = vsel %vm1148, %v1332, 0.0
          %1423 = vadd.xlane.f32.xlu0 %v1422
          %v1424 = vpop.xlane.xlu0 %1423
          %v1425 = vsel %vm1148, %v1334, 0.0
          %1426 = vadd.xlane.f32.xlu0 %v1425
          %v1427 = vpop.xlane.xlu0 %1426
          %v1428 = vsel %vm1148, %v1336, 0.0
          %1429 = vadd.xlane.f32.xlu0 %v1428
          %v1430 = vpop.xlane.xlu0 %1429
          %v1431 = vsel %vm1148, %v1338, 0.0
          %1432 = vadd.xlane.f32.xlu0 %v1431
          %v1433 = vpop.xlane.xlu0 %1432
          %v1434 = vsel %vm1148, %v1340, 0.0
          %1435 = vadd.xlane.f32.xlu0 %v1434
          %v1436 = vpop.xlane.xlu0 %1435
          %v1437 = vrcp.pop %v1343
          %v1438 = vrcp.pop %v1346
          %v1439 = vrcp.pop %v1349
          %v1440 = vrcp.pop %v1352
          %v1441 = vrcp.pop %v1355
          %v1442 = vrcp.pop %v1358
          %v1443 = vrcp.pop %v1361
          %v1444 = vrcp.pop %v1364
          %v1445 = vrcp.pop %v1367
          %v1446 = vrcp.pop %v1370
          %v1447 = vrcp.pop %v1373
          %v1448 = vrcp.pop %v1376
          %v1449 = vrcp.pop %v1379
          %v1450 = vrcp.pop %v1382
          %v1451 = vrcp.pop %v1385
          %v1452 = vrcp.pop %v1388
          %v1453 = vrcp.pop %v1391
          %v1454 = vrcp.pop %v1394
          %v1455 = vrcp.pop %v1397
          %v1456 = vrcp.pop %v1400
          %v1457 = vrcp.pop %v1403
          %v1458 = vrcp.pop %v1406
          %v1459 = vrcp.pop %v1409
          %v1460 = vrcp.pop %v1412
          %v1461 = vrcp.pop %v1415
          %v1462 = vrcp.pop %v1418
          %v1463 = vrcp.pop %v1421
          %v1464 = vrcp.pop %v1424
          %v1465 = vrcp.pop %v1427
          %v1466 = vrcp.pop %v1430
          %v1467 = vrcp.pop %v1433
          %v1468 = vrcp.pop %v1436
          %v1469 = vmul.f32 %v1278, %v1437
          %v1470 = vmul.f32 %v1280, %v1438
          %v1471 = vmul.f32 %v1282, %v1439
          %v1472 = vmul.f32 %v1284, %v1440
          %v1473 = vmul.f32 %v1286, %v1441
          %v1474 = vmul.f32 %v1288, %v1442
          %v1475 = vmul.f32 %v1290, %v1443
          %v1476 = vmul.f32 %v1292, %v1444
          %v1477 = vmul.f32 %v1294, %v1445
          %v1478 = vmul.f32 %v1296, %v1446
          %v1479 = vmul.f32 %v1298, %v1447
          %v1480 = vmul.f32 %v1300, %v1448
          %v1481 = vmul.f32 %v1302, %v1449
          %v1482 = vmul.f32 %v1304, %v1450
          %v1483 = vmul.f32 %v1306, %v1451
          %v1484 = vmul.f32 %v1308, %v1452
          %v1485 = vmul.f32 %v1310, %v1453
          %v1486 = vmul.f32 %v1312, %v1454
          %v1487 = vmul.f32 %v1314, %v1455
          %v1488 = vmul.f32 %v1316, %v1456
          %v1489 = vmul.f32 %v1318, %v1457
          %v1490 = vmul.f32 %v1320, %v1458
          %v1491 = vmul.f32 %v1322, %v1459
          %v1492 = vmul.f32 %v1324, %v1460
          %v1493 = vmul.f32 %v1326, %v1461
          %v1494 = vmul.f32 %v1328, %v1462
          %v1495 = vmul.f32 %v1330, %v1463
          %v1496 = vmul.f32 %v1332, %v1464
          %v1497 = vmul.f32 %v1334, %v1465
          %v1498 = vmul.f32 %v1336, %v1466
          %v1499 = vmul.f32 %v1338, %v1467
          %v1500 = vmul.f32 %v1340, %v1468
          %1501 = vst.msk [vmem:[#allocation2] sm:$0xff] %vm1148, %v1469
          %1502 = vst.msk [vmem:[#allocation2 + $0x8] sm:$0xff] %vm1148, %v1470
          %1503 = vst.msk [vmem:[#allocation2 + $0x10] sm:$0xff] %vm1148, %v1471
          %1504 = vst.msk [vmem:[#allocation2 + $0x18] sm:$0xff] %vm1148, %v1472
          %1505 = vst.msk [vmem:[#allocation2 + $0x20] sm:$0xff] %vm1148, %v1473
          %1506 = vst.msk [vmem:[#allocation2 + $0x28] sm:$0xff] %vm1148, %v1474
          %1507 = vst.msk [vmem:[#allocation2 + $0x30] sm:$0xff] %vm1148, %v1475
          %1508 = vst.msk [vmem:[#allocation2 + $0x38] sm:$0xff] %vm1148, %v1476
          %1509 = vst.msk [vmem:[#allocation2 + $0x40] sm:$0xff] %vm1148, %v1477
          %1510 = vst.msk [vmem:[#allocation2 + $0x48] sm:$0xff] %vm1148, %v1478
          %1511 = vst.msk [vmem:[#allocation2 + $0x50] sm:$0xff] %vm1148, %v1479
          %1512 = vst.msk [vmem:[#allocation2 + $0x58] sm:$0xff] %vm1148, %v1480
          %1513 = vst.msk [vmem:[#allocation2 + $0x60] sm:$0xff] %vm1148, %v1481
          %1514 = vst.msk [vmem:[#allocation2 + $0x68] sm:$0xff] %vm1148, %v1482
          %1515 = vst.msk [vmem:[#allocation2 + $0x70] sm:$0xff] %vm1148, %v1483
          %1516 = vst.msk [vmem:[#allocation2 + $0x78] sm:$0xff] %vm1148, %v1484
          %1517 = vst.msk [vmem:[#allocation2 + $0x80] sm:$0xff] %vm1148, %v1485
          %1518 = vst.msk [vmem:[#allocation2 + $0x88] sm:$0xff] %vm1148, %v1486
          %1519 = vst.msk [vmem:[#allocation2 + $0x90] sm:$0xff] %vm1148, %v1487
          %1520 = vst.msk [vmem:[#allocation2 + $0x98] sm:$0xff] %vm1148, %v1488
          %1521 = vst.msk [vmem:[#allocation2 + $0xa0] sm:$0xff] %vm1148, %v1489
          %1522 = vst.msk [vmem:[#allocation2 + $0xa8] sm:$0xff] %vm1148, %v1490
          %1523 = vst.msk [vmem:[#allocation2 + $0xb0] sm:$0xff] %vm1148, %v1491
          %1524 = vst.msk [vmem:[#allocation2 + $0xb8] sm:$0xff] %vm1148, %v1492
          %1525 = vst.msk [vmem:[#allocation2 + $0xc0] sm:$0xff] %vm1148, %v1493
          %1526 = vst.msk [vmem:[#allocation2 + $0xc8] sm:$0xff] %vm1148, %v1494
          %1527 = vst.msk [vmem:[#allocation2 + $0xd0] sm:$0xff] %vm1148, %v1495
          %1528 = vst.msk [vmem:[#allocation2 + $0xd8] sm:$0xff] %vm1148, %v1496
          %1529 = vst.msk [vmem:[#allocation2 + $0xe0] sm:$0xff] %vm1148, %v1497
          %1530 = vst.msk [vmem:[#allocation2 + $0xe8] sm:$0xff] %vm1148, %v1498
          %1531 = vst.msk [vmem:[#allocation2 + $0xf0] sm:$0xff] %vm1148, %v1499
          %1532 = vst.msk [vmem:[#allocation2 + $0xf8] sm:$0xff] %vm1148, %v1500
          %v1533 = vpack.c.bf16 %v1470, %v1469
          %v1534 = vpack.c.bf16 %v1472, %v1471
          %v1535 = vpack.c.bf16 %v1474, %v1473
          %v1536 = vpack.c.bf16 %v1476, %v1475
          %v1537 = vpack.c.bf16 %v1478, %v1477
          %v1538 = vpack.c.bf16 %v1480, %v1479
          %v1539 = vpack.c.bf16 %v1482, %v1481
          %v1540 = vpack.c.bf16 %v1484, %v1483
          %v1541 = vpack.c.bf16 %v1486, %v1485
          %v1542 = vpack.c.bf16 %v1488, %v1487
          %v1543 = vpack.c.bf16 %v1490, %v1489
          %v1544 = vpack.c.bf16 %v1492, %v1491
          %v1545 = vpack.c.bf16 %v1494, %v1493
          %v1546 = vpack.c.bf16 %v1496, %v1495
          %v1547 = vpack.c.bf16 %v1498, %v1497
          %v1548 = vpack.c.bf16 %v1500, %v1499
          %v1549 = vld [vmem:[%s5] sm:$0x3]
          %v1551 = vsel %vm1148, %v1533, 0
          %v1554 = vsel %vm1148, %v1534, 0
          %v1557 = vsel %vm1148, %v1535, 0
          %v1560 = vsel %vm1148, %v1536, 0
          %v1563 = vsel %vm1148, %v1537, 0
          %v1566 = vsel %vm1148, %v1538, 0
          %v1569 = vsel %vm1148, %v1539, 0
          %v1572 = vsel %vm1148, %v1540, 0
          %v1575 = vsel %vm1148, %v1541, 0
          %v1578 = vsel %vm1148, %v1542, 0
          %v1581 = vsel %vm1148, %v1543, 0
          %v1584 = vsel %vm1148, %v1544, 0
          %v1587 = vsel %vm1148, %v1545, 0
          %v1590 = vsel %vm1148, %v1546, 0
          %v1593 = vsel %vm1148, %v1547, 0
          %v1596 = vsel %vm1148, %v1548, 0
          %vm1598 = vcmask 1041408
          %v1600 = vsel %vm1598, %v1549, 0
          %1602 = vmatprep.subr.bf16.mxu0 0
          %1603 = vmatpush1.bf16.msra.mxu0 %v1600
          %1604 = vmatprep.subr.bf16.mxu0 0
          %1605 = vmatpush1.bf16.msra.mxu0 0
          %1606 = vmatprep.subr.bf16.mxu0 0
          %1607 = vmatpush1.bf16.msra.mxu0 0
          %1608 = vmatprep.subr.bf16.mxu0 0
          %1609 = vmatpush1.bf16.msra.mxu0 0
          %1610 = vmatprep.subr.bf16.mxu0 0
          %1611 = vmatpush1.bf16.msra.mxu0 0
          %1612 = vmatprep.subr.bf16.mxu0 0
          %1613 = vmatpush1.bf16.msra.mxu0 0
          %1614 = vmatprep.subr.bf16.mxu0 0
          %1615 = vmatpush1.bf16.msra.mxu0 0
          %1616 = vmatprep.subr.bf16.mxu0 0
          %1617 = vmatpush1.bf16.msra.mxu0 0
          %1618 = vmatprep.subr.bf16.mxu0 0
          %1619 = vmatpush1.bf16.msra.mxu0 0
          %1620 = vmatprep.subr.bf16.mxu0 0
          %1621 = vmatpush1.bf16.msra.mxu0 0
          %1622 = vmatprep.subr.bf16.mxu0 0
          %1623 = vmatpush1.bf16.msra.mxu0 0
          %1624 = vmatprep.subr.bf16.mxu0 0
          %1625 = vmatpush1.bf16.msra.mxu0 0
          %1626 = vmatprep.subr.bf16.mxu0 0
          %1627 = vmatpush1.bf16.msra.mxu0 0
          %1628 = vmatprep.subr.bf16.mxu0 0
          %1629 = vmatpush1.bf16.msra.mxu0 0
          %1630 = vmatprep.subr.bf16.mxu0 0
          %1631 = vmatpush1.bf16.msra.mxu0 0
          %1632 = vmatprep.subr.bf16.mxu0 0
          %1633 = vmatpush1.bf16.msra.mxu0 0
          %1634 = vmatprep.mubr.bf16.mxu0 0
          %1635 = vmatmul.mubr.bf16.gmra.mrb[0].mxu0 %v1551
          %v1636 = vpop.f32.mrb[0].mxu0
          %v1637 = vadd.f32 0.0, %v1636
          %v1638 = vpop.f32.mrb[0].mxu0
          %v1639 = vpop.f32.mrb[0].mxu0
          %v1640 = vadd.f32 0.0, %v1639
          %v1641 = vpop.f32.mrb[0].mxu0
          %1642 = vmatprep.mubr.bf16.mxu0 0
          %1643 = vmatmul.mubr.bf16.gmra.mrb[0].mxu0 %v1554
          %v1644 = vpop.f32.mrb[0].mxu0
          %v1645 = vadd.f32 0.0, %v1644
          %v1646 = vpop.f32.mrb[0].mxu0
          %v1647 = vpop.f32.mrb[0].mxu0
          %v1648 = vadd.f32 0.0, %v1647
          %v1649 = vpop.f32.mrb[0].mxu0
          %1650 = vmatprep.mubr.bf16.mxu0 0
          %1651 = vmatmul.mubr.bf16.gmra.mrb[0].mxu0 %v1557
          %v1652 = vpop.f32.mrb[0].mxu0
          %v1653 = vadd.f32 0.0, %v1652
          %v1654 = vpop.f32.mrb[0].mxu0
          %v1655 = vpop.f32.mrb[0].mxu0
          %v1656 = vadd.f32 0.0, %v1655
          %v1657 = vpop.f32.mrb[0].mxu0
          %1658 = vmatprep.mubr.bf16.mxu0 0
          %1659 = vmatmul.mubr.bf16.gmra.mrb[0].mxu0 %v1560
          %v1660 = vpop.f32.mrb[0].mxu0
          %v1661 = vadd.f32 0.0, %v1660
          %v1662 = vpop.f32.mrb[0].mxu0
          %v1663 = vpop.f32.mrb[0].mxu0
          %v1664 = vadd.f32 0.0, %v1663
          %v1665 = vpop.f32.mrb[0].mxu0
          %1666 = vmatprep.mubr.bf16.mxu0 0
          %1667 = vmatmul.mubr.bf16.gmra.mrb[0].mxu0 %v1563
          %v1668 = vpop.f32.mrb[0].mxu0
          %v1669 = vadd.f32 0.0, %v1668
          %v1670 = vpop.f32.mrb[0].mxu0
          %v1671 = vpop.f32.mrb[0].mxu0
          %v1672 = vadd.f32 0.0, %v1671
          %v1673 = vpop.f32.mrb[0].mxu0
          %1674 = vmatprep.mubr.bf16.mxu0 0
          %1675 = vmatmul.mubr.bf16.gmra.mrb[0].mxu0 %v1566
          %v1676 = vpop.f32.mrb[0].mxu0
          %v1677 = vadd.f32 0.0, %v1676
          %v1678 = vpop.f32.mrb[0].mxu0
          %v1679 = vpop.f32.mrb[0].mxu0
          %v1680 = vadd.f32 0.0, %v1679
          %v1681 = vpop.f32.mrb[0].mxu0
          %1682 = vmatprep.mubr.bf16.mxu0 0
          %1683 = vmatmul.mubr.bf16.gmra.mrb[0].mxu0 %v1569
          %v1684 = vpop.f32.mrb[0].mxu0
          %v1685 = vadd.f32 0.0, %v1684
          %v1686 = vpop.f32.mrb[0].mxu0
          %v1687 = vpop.f32.mrb[0].mxu0
          %v1688 = vadd.f32 0.0, %v1687
          %v1689 = vpop.f32.mrb[0].mxu0
          %1690 = vmatprep.mubr.bf16.mxu0 0
          %1691 = vmatmul.mubr.bf16.gmra.mrb[0].mxu0 %v1572
          %v1692 = vpop.f32.mrb[0].mxu0
          %v1693 = vadd.f32 0.0, %v1692
          %v1694 = vpop.f32.mrb[0].mxu0
          %v1695 = vpop.f32.mrb[0].mxu0
          %v1696 = vadd.f32 0.0, %v1695
          %v1697 = vpop.f32.mrb[0].mxu0
          %1698 = vmatprep.mubr.bf16.mxu0 0
          %1699 = vmatmul.mubr.bf16.gmra.mrb[0].mxu0 %v1575
          %v1700 = vpop.f32.mrb[0].mxu0
          %v1701 = vadd.f32 0.0, %v1700
          %v1702 = vpop.f32.mrb[0].mxu0
          %v1703 = vpop.f32.mrb[0].mxu0
          %v1704 = vadd.f32 0.0, %v1703
          %v1705 = vpop.f32.mrb[0].mxu0
          %1706 = vmatprep.mubr.bf16.mxu0 0
          %1707 = vmatmul.mubr.bf16.gmra.mrb[0].mxu0 %v1578
          %v1708 = vpop.f32.mrb[0].mxu0
          %v1709 = vadd.f32 0.0, %v1708
          %v1710 = vpop.f32.mrb[0].mxu0
          %v1711 = vpop.f32.mrb[0].mxu0
          %v1712 = vadd.f32 0.0, %v1711
          %v1713 = vpop.f32.mrb[0].mxu0
          %1714 = vmatprep.mubr.bf16.mxu0 0
          %1715 = vmatmul.mubr.bf16.gmra.mrb[0].mxu0 %v1581
          %v1716 = vpop.f32.mrb[0].mxu0
          %v1717 = vadd.f32 0.0, %v1716
          %v1718 = vpop.f32.mrb[0].mxu0
          %v1719 = vpop.f32.mrb[0].mxu0
          %v1720 = vadd.f32 0.0, %v1719
          %v1721 = vpop.f32.mrb[0].mxu0
          %1722 = vmatprep.mubr.bf16.mxu0 0
          %1723 = vmatmul.mubr.bf16.gmra.mrb[0].mxu0 %v1584
          %v1724 = vpop.f32.mrb[0].mxu0
          %v1725 = vadd.f32 0.0, %v1724
          %v1726 = vpop.f32.mrb[0].mxu0
          %v1727 = vpop.f32.mrb[0].mxu0
          %v1728 = vadd.f32 0.0, %v1727
          %v1729 = vpop.f32.mrb[0].mxu0
          %1730 = vmatprep.mubr.bf16.mxu0 0
          %1731 = vmatmul.mubr.bf16.gmra.mrb[0].mxu0 %v1587
          %v1732 = vpop.f32.mrb[0].mxu0
          %v1733 = vadd.f32 0.0, %v1732
          %v1734 = vpop.f32.mrb[0].mxu0
          %v1735 = vpop.f32.mrb[0].mxu0
          %v1736 = vadd.f32 0.0, %v1735
          %v1737 = vpop.f32.mrb[0].mxu0
          %1738 = vmatprep.mubr.bf16.mxu0 0
          %1739 = vmatmul.mubr.bf16.gmra.mrb[0].mxu0 %v1590
          %v1740 = vpop.f32.mrb[0].mxu0
          %v1741 = vadd.f32 0.0, %v1740
          %v1742 = vpop.f32.mrb[0].mxu0
          %v1743 = vpop.f32.mrb[0].mxu0
          %v1744 = vadd.f32 0.0, %v1743
          %v1745 = vpop.f32.mrb[0].mxu0
          %1746 = vmatprep.mubr.bf16.mxu0 0
          %1747 = vmatmul.mubr.bf16.gmra.mrb[0].mxu0 %v1593
          %v1748 = vpop.f32.mrb[0].mxu0
          %v1749 = vadd.f32 0.0, %v1748
          %v1750 = vpop.f32.mrb[0].mxu0
          %v1751 = vpop.f32.mrb[0].mxu0
          %v1752 = vadd.f32 0.0, %v1751
          %v1753 = vpop.f32.mrb[0].mxu0
          %1754 = vmatprep.mubr.bf16.mxu0 0
          %1755 = vmatmul.mubr.bf16.gmra.mrb[0].mxu0 %v1596
          %v1756 = vpop.f32.mrb[0].mxu0
          %v1757 = vadd.f32 0.0, %v1756
          %v1758 = vpop.f32.mrb[0].mxu0
          %v1759 = vpop.f32.mrb[0].mxu0
          %v1760 = vadd.f32 0.0, %v1759
          %v1761 = vpop.f32.mrb[0].mxu0
          %1762 = vdwg.mxu0
          %1763 = vst.msk [vmem:[%s499] sm:$0xff] %vm641, %v1637
          %1764 = vst.msk [vmem:[%s499 + $0x8] sm:$0xff] %vm641, %v1640
          %1765 = vst.msk [vmem:[%s499 + $0x10] sm:$0xff] %vm641, %v1645
          %1766 = vst.msk [vmem:[%s499 + $0x18] sm:$0xff] %vm641, %v1648
          %1767 = vst.msk [vmem:[%s499 + $0x20] sm:$0xff] %vm641, %v1653
          %1768 = vst.msk [vmem:[%s499 + $0x28] sm:$0xff] %vm641, %v1656
          %1769 = vst.msk [vmem:[%s499 + $0x30] sm:$0xff] %vm641, %v1661
          %1770 = vst.msk [vmem:[%s499 + $0x38] sm:$0xff] %vm641, %v1664
          %1771 = vst.msk [vmem:[%s499 + $0x40] sm:$0xff] %vm641, %v1669
          %1772 = vst.msk [vmem:[%s499 + $0x48] sm:$0xff] %vm641, %v1672
          %1773 = vst.msk [vmem:[%s499 + $0x50] sm:$0xff] %vm641, %v1677
          %1774 = vst.msk [vmem:[%s499 + $0x58] sm:$0xff] %vm641, %v1680
          %1775 = vst.msk [vmem:[%s499 + $0x60] sm:$0xff] %vm641, %v1685
          %1776 = vst.msk [vmem:[%s499 + $0x68] sm:$0xff] %vm641, %v1688
          %1777 = vst.msk [vmem:[%s499 + $0x70] sm:$0xff] %vm641, %v1693
          %1778 = vst.msk [vmem:[%s499 + $0x78] sm:$0xff] %vm641, %v1696
          %1779 = vst.msk [vmem:[%s499 + $0x80] sm:$0xff] %vm641, %v1701
          %1780 = vst.msk [vmem:[%s499 + $0x88] sm:$0xff] %vm641, %v1704
          %1781 = vst.msk [vmem:[%s499 + $0x90] sm:$0xff] %vm641, %v1709
          %1782 = vst.msk [vmem:[%s499 + $0x98] sm:$0xff] %vm641, %v1712
          %1783 = vst.msk [vmem:[%s499 + $0xa0] sm:$0xff] %vm641, %v1717
          %1784 = vst.msk [vmem:[%s499 + $0xa8] sm:$0xff] %vm641, %v1720
          %1785 = vst.msk [vmem:[%s499 + $0xb0] sm:$0xff] %vm641, %v1725
          %1786 = vst.msk [vmem:[%s499 + $0xb8] sm:$0xff] %vm641, %v1728
          %1787 = vst.msk [vmem:[%s499 + $0xc0] sm:$0xff] %vm641, %v1733
          %1788 = vst.msk [vmem:[%s499 + $0xc8] sm:$0xff] %vm641, %v1736
          %1789 = vst.msk [vmem:[%s499 + $0xd0] sm:$0xff] %vm641, %v1741
          %1790 = vst.msk [vmem:[%s499 + $0xd8] sm:$0xff] %vm641, %v1744
          %1791 = vst.msk [vmem:[%s499 + $0xe0] sm:$0xff] %vm641, %v1749
          %1792 = vst.msk [vmem:[%s499 + $0xe8] sm:$0xff] %vm641, %v1752
          %1793 = vst.msk [vmem:[%s499 + $0xf0] sm:$0xff] %vm641, %v1757
          %1794 = vst.msk [vmem:[%s499 + $0xf8] sm:$0xff] %vm641, %v1760
        $region105: #{tpu_custom_call.1} parent=96 // pred_fallthru
          _
        %v1795 = vld [vmem:[#allocation2] sm:$0xff]
        %v1796 = vld [vmem:[#allocation2 + $0x8] sm:$0xff]
        %v1797 = vld [vmem:[#allocation2 + $0x10] sm:$0xff]
        %v1798 = vld [vmem:[#allocation2 + $0x18] sm:$0xff]
        %v1799 = vld [vmem:[#allocation2 + $0x20] sm:$0xff]
        %v1800 = vld [vmem:[#allocation2 + $0x28] sm:$0xff]
        %v1801 = vld [vmem:[#allocation2 + $0x30] sm:$0xff]
        %v1802 = vld [vmem:[#allocation2 + $0x38] sm:$0xff]
        %v1803 = vld [vmem:[#allocation2 + $0x40] sm:$0xff]
        %v1804 = vld [vmem:[#allocation2 + $0x48] sm:$0xff]
        %v1805 = vld [vmem:[#allocation2 + $0x50] sm:$0xff]
        %v1806 = vld [vmem:[#allocation2 + $0x58] sm:$0xff]
        %v1807 = vld [vmem:[#allocation2 + $0x60] sm:$0xff]
        %v1808 = vld [vmem:[#allocation2 + $0x68] sm:$0xff]
        %v1809 = vld [vmem:[#allocation2 + $0x70] sm:$0xff]
        %v1810 = vld [vmem:[#allocation2 + $0x78] sm:$0xff]
        %v1811 = vld [vmem:[#allocation2 + $0x80] sm:$0xff]
        %v1812 = vld [vmem:[#allocation2 + $0x88] sm:$0xff]
        %v1813 = vld [vmem:[#allocation2 + $0x90] sm:$0xff]
        %v1814 = vld [vmem:[#allocation2 + $0x98] sm:$0xff]
        %v1815 = vld [vmem:[#allocation2 + $0xa0] sm:$0xff]
        %v1816 = vld [vmem:[#allocation2 + $0xa8] sm:$0xff]
        %v1817 = vld [vmem:[#allocation2 + $0xb0] sm:$0xff]
        %v1818 = vld [vmem:[#allocation2 + $0xb8] sm:$0xff]
        %v1819 = vld [vmem:[#allocation2 + $0xc0] sm:$0xff]
        %v1820 = vld [vmem:[#allocation2 + $0xc8] sm:$0xff]
        %v1821 = vld [vmem:[#allocation2 + $0xd0] sm:$0xff]
        %v1822 = vld [vmem:[#allocation2 + $0xd8] sm:$0xff]
        %v1823 = vld [vmem:[#allocation2 + $0xe0] sm:$0xff]
        %v1824 = vld [vmem:[#allocation2 + $0xe8] sm:$0xff]
        %v1825 = vld [vmem:[#allocation2 + $0xf0] sm:$0xff]
        %v1826 = vld [vmem:[#allocation2 + $0xf8] sm:$0xff]
        %v1827 = vld [vmem:[%s424] sm:$0xf]
        %v1828 = vld [vmem:[%s424 + $0x4] sm:$0xf]
        %v1829 = vld [vmem:[%s424 + $0x8] sm:$0xf]
        %v1830 = vld [vmem:[%s424 + $0xc] sm:$0xf]
        %v1831 = vld [vmem:[%s484] sm:$0x1]
        %v1833 = vlaneseq
        %v1834 = vshrl.u32 %v1833, 7
        %v1835 = vsub.s32 0, %v1834
        %v1836 = vrot.slane %v1831, %v1835
        %v1870 = vunpack.c.l.b16 %v502
        %v1871 = vunpack.c.l.b16 %v503
        %v1872 = vunpack.c.l.b16 %v504
        %v1873 = vunpack.c.l.b16 %v505
        %v1874 = vunpack.c.l.b16 %v506
        %v1875 = vunpack.c.l.b16 %v507
        %v1876 = vunpack.c.l.b16 %v508
        %v1877 = vunpack.c.l.b16 %v509
        %v1878 = vunpack.c.l.b16 %v510
        %v1879 = vunpack.c.l.b16 %v511
        %v1880 = vunpack.c.l.b16 %v512
        %v1881 = vunpack.c.l.b16 %v513
        %v1882 = vunpack.c.l.b16 %v514
        %v1883 = vunpack.c.l.b16 %v515
        %v1884 = vunpack.c.l.b16 %v516
        %v1885 = vunpack.c.l.b16 %v517
        %v1886 = vunpack.c.l.b16 %v518
        %v1887 = vunpack.c.l.b16 %v519
        %v1888 = vunpack.c.l.b16 %v520
        %v1889 = vunpack.c.l.b16 %v521
        %v1890 = vunpack.c.l.b16 %v522
        %v1891 = vunpack.c.l.b16 %v523
        %v1892 = vunpack.c.l.b16 %v524
        %v1893 = vunpack.c.l.b16 %v525
        %v1894 = vunpack.c.l.b16 %v526
        %v1895 = vunpack.c.l.b16 %v527
        %v1896 = vunpack.c.l.b16 %v528
        %v1897 = vunpack.c.l.b16 %v529
        %v1898 = vunpack.c.l.b16 %v530
        %v1899 = vunpack.c.l.b16 %v531
        %v1900 = vunpack.c.l.b16 %v532
        %v1901 = vunpack.c.l.b16 %v533
        %v1902 = vpack.c.b16 %v1871, %v1870
        %v1903 = vpack.c.b16 %v1873, %v1872
        %v1904 = vpack.c.b16 %v1875, %v1874
        %v1905 = vpack.c.b16 %v1877, %v1876
        %v1906 = vpack.c.b16 %v1879, %v1878
        %v1907 = vpack.c.b16 %v1881, %v1880
        %v1908 = vpack.c.b16 %v1883, %v1882
        %v1909 = vpack.c.b16 %v1885, %v1884
        %v1910 = vpack.c.b16 %v1887, %v1886
        %v1911 = vpack.c.b16 %v1889, %v1888
        %v1912 = vpack.c.b16 %v1891, %v1890
        %v1913 = vpack.c.b16 %v1893, %v1892
        %v1914 = vpack.c.b16 %v1895, %v1894
        %v1915 = vpack.c.b16 %v1897, %v1896
        %v1916 = vpack.c.b16 %v1899, %v1898
        %v1917 = vpack.c.b16 %v1901, %v1900
        %v1922 = vunpack.c.l.b16 %v1827
        %v1923 = vunpack.c.l.b16 %v1828
        %v1924 = vunpack.c.l.b16 %v1829
        %v1925 = vunpack.c.l.b16 %v1830
        %v1926 = vpack.c.b16 %v1923, %v1922
        %v1927 = vpack.c.b16 %v1925, %v1924
        %vm1930 = vcmask 261120
        %v1932 = vsel %vm1930, %v1902, 0
        %v1935 = vsel %vm1930, %v1903, 0
        %v1938 = vsel %vm1930, %v1904, 0
        %v1941 = vsel %vm1930, %v1905, 0
        %v1944 = vsel %vm1930, %v1906, 0
        %v1947 = vsel %vm1930, %v1907, 0
        %v1950 = vsel %vm1930, %v1908, 0
        %v1953 = vsel %vm1930, %v1909, 0
        %v1956 = vsel %vm1930, %v1910, 0
        %v1959 = vsel %vm1930, %v1911, 0
        %v1962 = vsel %vm1930, %v1912, 0
        %v1965 = vsel %vm1930, %v1913, 0
        %v1968 = vsel %vm1930, %v1914, 0
        %v1971 = vsel %vm1930, %v1915, 0
        %v1974 = vsel %vm1930, %v1916, 0
        %v1977 = vsel %vm1930, %v1917, 0
        %1979 = vmatprep.subr.bf16.mxu0 0
        %1980 = vmatpush1.bf16.msra.mxu0 %v1926
        %1981 = vmatprep.subr.bf16.mxu0 0
        %1982 = vmatpush1.bf16.msra.mxu0 %v1927
        %1983 = vmatprep.subr.bf16.mxu0 0
        %1984 = vmatpush1.bf16.msra.mxu0 0
        %1985 = vmatprep.subr.bf16.mxu0 0
        %1986 = vmatpush1.bf16.msra.mxu0 0
        %1987 = vmatprep.subr.bf16.mxu0 0
        %1988 = vmatpush1.bf16.msra.mxu0 0
        %1989 = vmatprep.subr.bf16.mxu0 0
        %1990 = vmatpush1.bf16.msra.mxu0 0
        %1991 = vmatprep.subr.bf16.mxu0 0
        %1992 = vmatpush1.bf16.msra.mxu0 0
        %1993 = vmatprep.subr.bf16.mxu0 0
        %1994 = vmatpush1.bf16.msra.mxu0 0
        %1995 = vmatprep.subr.bf16.mxu0 0
        %1996 = vmatpush1.bf16.msra.mxu0 0
        %1997 = vmatprep.subr.bf16.mxu0 0
        %1998 = vmatpush1.bf16.msra.mxu0 0
        %1999 = vmatprep.subr.bf16.mxu0 0
        %2000 = vmatpush1.bf16.msra.mxu0 0
        %2001 = vmatprep.subr.bf16.mxu0 0
        %2002 = vmatpush1.bf16.msra.mxu0 0
        %2003 = vmatprep.subr.bf16.mxu0 0
        %2004 = vmatpush1.bf16.msra.mxu0 0
        %2005 = vmatprep.subr.bf16.mxu0 0
        %2006 = vmatpush1.bf16.msra.mxu0 0
        %2007 = vmatprep.subr.bf16.mxu0 0
        %2008 = vmatpush1.bf16.msra.mxu0 0
        %2009 = vmatprep.subr.bf16.mxu0 0
        %2010 = vmatpush1.bf16.msra.mxu0 0
        %2011 = vmatprep.mubr.bf16.mxu0 0
        %2012 = vmatmul.mubr.bf16.gmra.mrb[0].mxu0 %v1932
        %v2013 = vpop.f32.mrb[0].mxu0
        %v2014 = vadd.f32 %v1836, %v2013
        %v2015 = vpop.f32.mrb[0].mxu0
        %v2016 = vpop.f32.mrb[0].mxu0
        %v2017 = vadd.f32 %v1836, %v2016
        %v2018 = vpop.f32.mrb[0].mxu0
        %2019 = vmatprep.mubr.bf16.mxu0 0
        %2020 = vmatmul.mubr.bf16.gmra.mrb[0].mxu0 %v1935
        %v2021 = vpop.f32.mrb[0].mxu0
        %v2022 = vadd.f32 %v1836, %v2021
        %v2023 = vpop.f32.mrb[0].mxu0
        %v2024 = vpop.f32.mrb[0].mxu0
        %v2025 = vadd.f32 %v1836, %v2024
        %v2026 = vpop.f32.mrb[0].mxu0
        %2027 = vmatprep.mubr.bf16.mxu0 0
        %2028 = vmatmul.mubr.bf16.gmra.mrb[0].mxu0 %v1938
        %v2029 = vpop.f32.mrb[0].mxu0
        %v2030 = vadd.f32 %v1836, %v2029
        %v2031 = vpop.f32.mrb[0].mxu0
        %v2032 = vpop.f32.mrb[0].mxu0
        %v2033 = vadd.f32 %v1836, %v2032
        %v2034 = vpop.f32.mrb[0].mxu0
        %2035 = vmatprep.mubr.bf16.mxu0 0
        %2036 = vmatmul.mubr.bf16.gmra.mrb[0].mxu0 %v1941
        %v2037 = vpop.f32.mrb[0].mxu0
        %v2038 = vadd.f32 %v1836, %v2037
        %v2039 = vpop.f32.mrb[0].mxu0
        %v2040 = vpop.f32.mrb[0].mxu0
        %v2041 = vadd.f32 %v1836, %v2040
        %v2042 = vpop.f32.mrb[0].mxu0
        %2043 = vmatprep.mubr.bf16.mxu0 0
        %2044 = vmatmul.mubr.bf16.gmra.mrb[0].mxu0 %v1944
        %v2045 = vpop.f32.mrb[0].mxu0
        %v2046 = vadd.f32 %v1836, %v2045
        %v2047 = vpop.f32.mrb[0].mxu0
        %v2048 = vpop.f32.mrb[0].mxu0
        %v2049 = vadd.f32 %v1836, %v2048
        %v2050 = vpop.f32.mrb[0].mxu0
        %2051 = vmatprep.mubr.bf16.mxu0 0
        %2052 = vmatmul.mubr.bf16.gmra.mrb[0].mxu0 %v1947
        %v2053 = vpop.f32.mrb[0].mxu0
        %v2054 = vadd.f32 %v1836, %v2053
        %v2055 = vpop.f32.mrb[0].mxu0
        %v2056 = vpop.f32.mrb[0].mxu0
        %v2057 = vadd.f32 %v1836, %v2056
        %v2058 = vpop.f32.mrb[0].mxu0
        %2059 = vmatprep.mubr.bf16.mxu0 0
        %2060 = vmatmul.mubr.bf16.gmra.mrb[0].mxu0 %v1950
        %v2061 = vpop.f32.mrb[0].mxu0
        %v2062 = vadd.f32 %v1836, %v2061
        %v2063 = vpop.f32.mrb[0].mxu0
        %v2064 = vpop.f32.mrb[0].mxu0
        %v2065 = vadd.f32 %v1836, %v2064
        %v2066 = vpop.f32.mrb[0].mxu0
        %2067 = vmatprep.mubr.bf16.mxu0 0
        %2068 = vmatmul.mubr.bf16.gmra.mrb[0].mxu0 %v1953
        %v2069 = vpop.f32.mrb[0].mxu0
        %v2070 = vadd.f32 %v1836, %v2069
        %v2071 = vpop.f32.mrb[0].mxu0
        %v2072 = vpop.f32.mrb[0].mxu0
        %v2073 = vadd.f32 %v1836, %v2072
        %v2074 = vpop.f32.mrb[0].mxu0
        %2075 = vmatprep.mubr.bf16.mxu0 0
        %2076 = vmatmul.mubr.bf16.gmra.mrb[0].mxu0 %v1956
        %v2077 = vpop.f32.mrb[0].mxu0
        %v2078 = vadd.f32 %v1836, %v2077
        %v2079 = vpop.f32.mrb[0].mxu0
        %v2080 = vpop.f32.mrb[0].mxu0
        %v2081 = vadd.f32 %v1836, %v2080
        %v2082 = vpop.f32.mrb[0].mxu0
        %2083 = vmatprep.mubr.bf16.mxu0 0
        %2084 = vmatmul.mubr.bf16.gmra.mrb[0].mxu0 %v1959
        %v2085 = vpop.f32.mrb[0].mxu0
        %v2086 = vadd.f32 %v1836, %v2085
        %v2087 = vpop.f32.mrb[0].mxu0
        %v2088 = vpop.f32.mrb[0].mxu0
        %v2089 = vadd.f32 %v1836, %v2088
        %v2090 = vpop.f32.mrb[0].mxu0
        %2091 = vmatprep.mubr.bf16.mxu0 0
        %2092 = vmatmul.mubr.bf16.gmra.mrb[0].mxu0 %v1962
        %v2093 = vpop.f32.mrb[0].mxu0
        %v2094 = vadd.f32 %v1836, %v2093
        %v2095 = vpop.f32.mrb[0].mxu0
        %v2096 = vpop.f32.mrb[0].mxu0
        %v2097 = vadd.f32 %v1836, %v2096
        %v2098 = vpop.f32.mrb[0].mxu0
        %2099 = vmatprep.mubr.bf16.mxu0 0
        %2100 = vmatmul.mubr.bf16.gmra.mrb[0].mxu0 %v1965
        %v2101 = vpop.f32.mrb[0].mxu0
        %v2102 = vadd.f32 %v1836, %v2101
        %v2103 = vpop.f32.mrb[0].mxu0
        %v2104 = vpop.f32.mrb[0].mxu0
        %v2105 = vadd.f32 %v1836, %v2104
        %v2106 = vpop.f32.mrb[0].mxu0
        %2107 = vmatprep.mubr.bf16.mxu0 0
        %2108 = vmatmul.mubr.bf16.gmra.mrb[0].mxu0 %v1968
        %v2109 = vpop.f32.mrb[0].mxu0
        %v2110 = vadd.f32 %v1836, %v2109
        %v2111 = vpop.f32.mrb[0].mxu0
        %v2112 = vpop.f32.mrb[0].mxu0
        %v2113 = vadd.f32 %v1836, %v2112
        %v2114 = vpop.f32.mrb[0].mxu0
        %2115 = vmatprep.mubr.bf16.mxu0 0
        %2116 = vmatmul.mubr.bf16.gmra.mrb[0].mxu0 %v1971
        %v2117 = vpop.f32.mrb[0].mxu0
        %v2118 = vadd.f32 %v1836, %v2117
        %v2119 = vpop.f32.mrb[0].mxu0
        %v2120 = vpop.f32.mrb[0].mxu0
        %v2121 = vadd.f32 %v1836, %v2120
        %v2122 = vpop.f32.mrb[0].mxu0
        %2123 = vmatprep.mubr.bf16.mxu0 0
        %2124 = vmatmul.mubr.bf16.gmra.mrb[0].mxu0 %v1974
        %v2125 = vpop.f32.mrb[0].mxu0
        %v2126 = vadd.f32 %v1836, %v2125
        %v2127 = vpop.f32.mrb[0].mxu0
        %v2128 = vpop.f32.mrb[0].mxu0
        %v2129 = vadd.f32 %v1836, %v2128
        %v2130 = vpop.f32.mrb[0].mxu0
        %2131 = vmatprep.mubr.bf16.mxu0 0
        %2132 = vmatmul.mubr.bf16.gmra.mrb[0].mxu0 %v1977
        %v2133 = vpop.f32.mrb[0].mxu0
        %v2134 = vadd.f32 %v1836, %v2133
        %v2135 = vpop.f32.mrb[0].mxu0
        %v2136 = vpop.f32.mrb[0].mxu0
        %v2137 = vadd.f32 %v1836, %v2136
        %v2138 = vpop.f32.mrb[0].mxu0
        %2139 = vdwg.mxu0
        %v2140 = vmax.f32 %v2014, 0.0
        %v2141 = vmax.f32 %v2017, 0.0
        %v2142 = vmax.f32 %v2022, 0.0
        %v2143 = vmax.f32 %v2025, 0.0
        %v2144 = vmax.f32 %v2030, 0.0
        %v2145 = vmax.f32 %v2033, 0.0
        %v2146 = vmax.f32 %v2038, 0.0
        %v2147 = vmax.f32 %v2041, 0.0
        %v2148 = vmax.f32 %v2046, 0.0
        %v2149 = vmax.f32 %v2049, 0.0
        %v2150 = vmax.f32 %v2054, 0.0
        %v2151 = vmax.f32 %v2057, 0.0
        %v2152 = vmax.f32 %v2062, 0.0
        %v2153 = vmax.f32 %v2065, 0.0
        %v2154 = vmax.f32 %v2070, 0.0
        %v2155 = vmax.f32 %v2073, 0.0
        %v2156 = vmax.f32 %v2078, 0.0
        %v2157 = vmax.f32 %v2081, 0.0
        %v2158 = vmax.f32 %v2086, 0.0
        %v2159 = vmax.f32 %v2089, 0.0
        %v2160 = vmax.f32 %v2094, 0.0
        %v2161 = vmax.f32 %v2097, 0.0
        %v2162 = vmax.f32 %v2102, 0.0
        %v2163 = vmax.f32 %v2105, 0.0
        %v2164 = vmax.f32 %v2110, 0.0
        %v2165 = vmax.f32 %v2113, 0.0
        %v2166 = vmax.f32 %v2118, 0.0
        %v2167 = vmax.f32 %v2121, 0.0
        %v2168 = vmax.f32 %v2126, 0.0
        %v2169 = vmax.f32 %v2129, 0.0
        %v2170 = vmax.f32 %v2134, 0.0
        %v2171 = vmax.f32 %v2137, 0.0
        %v2172 = vpack.c.bf16 %v1796, %v1795
        %v2173 = vpack.c.bf16 %v1798, %v1797
        %v2174 = vpack.c.bf16 %v1800, %v1799
        %v2175 = vpack.c.bf16 %v1802, %v1801
        %v2176 = vpack.c.bf16 %v1804, %v1803
        %v2177 = vpack.c.bf16 %v1806, %v1805
        %v2178 = vpack.c.bf16 %v1808, %v1807
        %v2179 = vpack.c.bf16 %v1810, %v1809
        %v2180 = vpack.c.bf16 %v1812, %v1811
        %v2181 = vpack.c.bf16 %v1814, %v1813
        %v2182 = vpack.c.bf16 %v1816, %v1815
        %v2183 = vpack.c.bf16 %v1818, %v1817
        %v2184 = vpack.c.bf16 %v1820, %v1819
        %v2185 = vpack.c.bf16 %v1822, %v1821
        %v2186 = vpack.c.bf16 %v1824, %v1823
        %v2187 = vpack.c.bf16 %v1826, %v1825
        %v2188 = vld [vmem:[%s494] sm:$0x3]
        %vm2189 = vcmask 31744
        %v2191 = vsel %vm2189, %v2172, 0
        %v2194 = vsel %vm2189, %v2173, 0
        %v2197 = vsel %vm2189, %v2174, 0
        %v2200 = vsel %vm2189, %v2175, 0
        %v2203 = vsel %vm2189, %v2176, 0
        %v2206 = vsel %vm2189, %v2177, 0
        %v2209 = vsel %vm2189, %v2178, 0
        %v2212 = vsel %vm2189, %v2179, 0
        %v2215 = vsel %vm2189, %v2180, 0
        %v2218 = vsel %vm2189, %v2181, 0
        %v2221 = vsel %vm2189, %v2182, 0
        %v2224 = vsel %vm2189, %v2183, 0
        %v2227 = vsel %vm2189, %v2184, 0
        %v2230 = vsel %vm2189, %v2185, 0
        %v2233 = vsel %vm2189, %v2186, 0
        %v2236 = vsel %vm2189, %v2187, 0
        %vm2238 = vcmask 1041408
        %v2240 = vsel %vm2238, %v2188, 0
        %2242 = vmatprep.subr.bf16.mxu0 0
        %2243 = vmatpush1.bf16.msra.mxu0 %v2240
        %2244 = vmatprep.subr.bf16.mxu0 0
        %2245 = vmatpush1.bf16.msra.mxu0 0
        %2246 = vmatprep.subr.bf16.mxu0 0
        %2247 = vmatpush1.bf16.msra.mxu0 0
        %2248 = vmatprep.subr.bf16.mxu0 0
        %2249 = vmatpush1.bf16.msra.mxu0 0
        %2250 = vmatprep.subr.bf16.mxu0 0
        %2251 = vmatpush1.bf16.msra.mxu0 0
        %2252 = vmatprep.subr.bf16.mxu0 0
        %2253 = vmatpush1.bf16.msra.mxu0 0
        %2254 = vmatprep.subr.bf16.mxu0 0
        %2255 = vmatpush1.bf16.msra.mxu0 0
        %2256 = vmatprep.subr.bf16.mxu0 0
        %2257 = vmatpush1.bf16.msra.mxu0 0
        %2258 = vmatprep.subr.bf16.mxu0 0
        %2259 = vmatpush1.bf16.msra.mxu0 0
        %2260 = vmatprep.subr.bf16.mxu0 0
        %2261 = vmatpush1.bf16.msra.mxu0 0
        %2262 = vmatprep.subr.bf16.mxu0 0
        %2263 = vmatpush1.bf16.msra.mxu0 0
        %2264 = vmatprep.subr.bf16.mxu0 0
        %2265 = vmatpush1.bf16.msra.mxu0 0
        %2266 = vmatprep.subr.bf16.mxu0 0
        %2267 = vmatpush1.bf16.msra.mxu0 0
        %2268 = vmatprep.subr.bf16.mxu0 0
        %2269 = vmatpush1.bf16.msra.mxu0 0
        %2270 = vmatprep.subr.bf16.mxu0 0
        %2271 = vmatpush1.bf16.msra.mxu0 0
        %2272 = vmatprep.subr.bf16.mxu0 0
        %2273 = vmatpush1.bf16.msra.mxu0 0
        %2274 = vmatprep.mubr.bf16.mxu0 0
        %2275 = vmatmul.mubr.bf16.gmra.mrb[0].mxu0 %v2191
        %v2276 = vpop.f32.mrb[0].mxu0
        %v2277 = vadd.f32 0.0, %v2276
        %v2278 = vpop.f32.mrb[0].mxu0
        %v2279 = vpop.f32.mrb[0].mxu0
        %v2280 = vadd.f32 0.0, %v2279
        %v2281 = vpop.f32.mrb[0].mxu0
        %2282 = vmatprep.mubr.bf16.mxu0 0
        %2283 = vmatmul.mubr.bf16.gmra.mrb[0].mxu0 %v2194
        %v2284 = vpop.f32.mrb[0].mxu0
        %v2285 = vadd.f32 0.0, %v2284
        %v2286 = vpop.f32.mrb[0].mxu0
        %v2287 = vpop.f32.mrb[0].mxu0
        %v2288 = vadd.f32 0.0, %v2287
        %v2289 = vpop.f32.mrb[0].mxu0
        %2290 = vmatprep.mubr.bf16.mxu0 0
        %2291 = vmatmul.mubr.bf16.gmra.mrb[0].mxu0 %v2197
        %v2292 = vpop.f32.mrb[0].mxu0
        %v2293 = vadd.f32 0.0, %v2292
        %v2294 = vpop.f32.mrb[0].mxu0
        %v2295 = vpop.f32.mrb[0].mxu0
        %v2296 = vadd.f32 0.0, %v2295
        %v2297 = vpop.f32.mrb[0].mxu0
        %2298 = vmatprep.mubr.bf16.mxu0 0
        %2299 = vmatmul.mubr.bf16.gmra.mrb[0].mxu0 %v2200
        %v2300 = vpop.f32.mrb[0].mxu0
        %v2301 = vadd.f32 0.0, %v2300
        %v2302 = vpop.f32.mrb[0].mxu0
        %v2303 = vpop.f32.mrb[0].mxu0
        %v2304 = vadd.f32 0.0, %v2303
        %v2305 = vpop.f32.mrb[0].mxu0
        %2306 = vmatprep.mubr.bf16.mxu0 0
        %2307 = vmatmul.mubr.bf16.gmra.mrb[0].mxu0 %v2203
        %v2308 = vpop.f32.mrb[0].mxu0
        %v2309 = vadd.f32 0.0, %v2308
        %v2310 = vpop.f32.mrb[0].mxu0
        %v2311 = vpop.f32.mrb[0].mxu0
        %v2312 = vadd.f32 0.0, %v2311
        %v2313 = vpop.f32.mrb[0].mxu0
        %2314 = vmatprep.mubr.bf16.mxu0 0
        %2315 = vmatmul.mubr.bf16.gmra.mrb[0].mxu0 %v2206
        %v2316 = vpop.f32.mrb[0].mxu0
        %v2317 = vadd.f32 0.0, %v2316
        %v2318 = vpop.f32.mrb[0].mxu0
        %v2319 = vpop.f32.mrb[0].mxu0
        %v2320 = vadd.f32 0.0, %v2319
        %v2321 = vpop.f32.mrb[0].mxu0
        %2322 = vmatprep.mubr.bf16.mxu0 0
        %2323 = vmatmul.mubr.bf16.gmra.mrb[0].mxu0 %v2209
        %v2324 = vpop.f32.mrb[0].mxu0
        %v2325 = vadd.f32 0.0, %v2324
        %v2326 = vpop.f32.mrb[0].mxu0
        %v2327 = vpop.f32.mrb[0].mxu0
        %v2328 = vadd.f32 0.0, %v2327
        %v2329 = vpop.f32.mrb[0].mxu0
        %2330 = vmatprep.mubr.bf16.mxu0 0
        %2331 = vmatmul.mubr.bf16.gmra.mrb[0].mxu0 %v2212
        %v2332 = vpop.f32.mrb[0].mxu0
        %v2333 = vadd.f32 0.0, %v2332
        %v2334 = vpop.f32.mrb[0].mxu0
        %v2335 = vpop.f32.mrb[0].mxu0
        %v2336 = vadd.f32 0.0, %v2335
        %v2337 = vpop.f32.mrb[0].mxu0
        %2338 = vmatprep.mubr.bf16.mxu0 0
        %2339 = vmatmul.mubr.bf16.gmra.mrb[0].mxu0 %v2215
        %v2340 = vpop.f32.mrb[0].mxu0
        %v2341 = vadd.f32 0.0, %v2340
        %v2342 = vpop.f32.mrb[0].mxu0
        %v2343 = vpop.f32.mrb[0].mxu0
        %v2344 = vadd.f32 0.0, %v2343
        %v2345 = vpop.f32.mrb[0].mxu0
        %2346 = vmatprep.mubr.bf16.mxu0 0
        %2347 = vmatmul.mubr.bf16.gmra.mrb[0].mxu0 %v2218
        %v2348 = vpop.f32.mrb[0].mxu0
        %v2349 = vadd.f32 0.0, %v2348
        %v2350 = vpop.f32.mrb[0].mxu0
        %v2351 = vpop.f32.mrb[0].mxu0
        %v2352 = vadd.f32 0.0, %v2351
        %v2353 = vpop.f32.mrb[0].mxu0
        %2354 = vmatprep.mubr.bf16.mxu0 0
        %2355 = vmatmul.mubr.bf16.gmra.mrb[0].mxu0 %v2221
        %v2356 = vpop.f32.mrb[0].mxu0
        %v2357 = vadd.f32 0.0, %v2356
        %v2358 = vpop.f32.mrb[0].mxu0
        %v2359 = vpop.f32.mrb[0].mxu0
        %v2360 = vadd.f32 0.0, %v2359
        %v2361 = vpop.f32.mrb[0].mxu0
        %2362 = vmatprep.mubr.bf16.mxu0 0
        %2363 = vmatmul.mubr.bf16.gmra.mrb[0].mxu0 %v2224
        %v2364 = vpop.f32.mrb[0].mxu0
        %v2365 = vadd.f32 0.0, %v2364
        %v2366 = vpop.f32.mrb[0].mxu0
        %v2367 = vpop.f32.mrb[0].mxu0
        %v2368 = vadd.f32 0.0, %v2367
        %v2369 = vpop.f32.mrb[0].mxu0
        %2370 = vmatprep.mubr.bf16.mxu0 0
        %2371 = vmatmul.mubr.bf16.gmra.mrb[0].mxu0 %v2227
        %v2372 = vpop.f32.mrb[0].mxu0
        %v2373 = vadd.f32 0.0, %v2372
        %v2374 = vpop.f32.mrb[0].mxu0
        %v2375 = vpop.f32.mrb[0].mxu0
        %v2376 = vadd.f32 0.0, %v2375
        %v2377 = vpop.f32.mrb[0].mxu0
        %2378 = vmatprep.mubr.bf16.mxu0 0
        %2379 = vmatmul.mubr.bf16.gmra.mrb[0].mxu0 %v2230
        %v2380 = vpop.f32.mrb[0].mxu0
        %v2381 = vadd.f32 0.0, %v2380
        %v2382 = vpop.f32.mrb[0].mxu0
        %v2383 = vpop.f32.mrb[0].mxu0
        %v2384 = vadd.f32 0.0, %v2383
        %v2385 = vpop.f32.mrb[0].mxu0
        %2386 = vmatprep.mubr.bf16.mxu0 0
        %2387 = vmatmul.mubr.bf16.gmra.mrb[0].mxu0 %v2233
        %v2388 = vpop.f32.mrb[0].mxu0
        %v2389 = vadd.f32 0.0, %v2388
        %v2390 = vpop.f32.mrb[0].mxu0
        %v2391 = vpop.f32.mrb[0].mxu0
        %v2392 = vadd.f32 0.0, %v2391
        %v2393 = vpop.f32.mrb[0].mxu0
        %2394 = vmatprep.mubr.bf16.mxu0 0
        %2395 = vmatmul.mubr.bf16.gmra.mrb[0].mxu0 %v2236
        %v2396 = vpop.f32.mrb[0].mxu0
        %v2397 = vadd.f32 0.0, %v2396
        %v2398 = vpop.f32.mrb[0].mxu0
        %v2399 = vpop.f32.mrb[0].mxu0
        %v2400 = vadd.f32 0.0, %v2399
        %v2401 = vpop.f32.mrb[0].mxu0
        %2402 = vdwg.mxu0
        %v2403 = vmul.f32 %v2140, %v2277
        %v2404 = vmul.f32 %v2141, %v2280
        %v2405 = vmul.f32 %v2142, %v2285
        %v2406 = vmul.f32 %v2143, %v2288
        %v2407 = vmul.f32 %v2144, %v2293
        %v2408 = vmul.f32 %v2145, %v2296
        %v2409 = vmul.f32 %v2146, %v2301
        %v2410 = vmul.f32 %v2147, %v2304
        %v2411 = vmul.f32 %v2148, %v2309
        %v2412 = vmul.f32 %v2149, %v2312
        %v2413 = vmul.f32 %v2150, %v2317
        %v2414 = vmul.f32 %v2151, %v2320
        %v2415 = vmul.f32 %v2152, %v2325
        %v2416 = vmul.f32 %v2153, %v2328
        %v2417 = vmul.f32 %v2154, %v2333
        %v2418 = vmul.f32 %v2155, %v2336
        %v2419 = vmul.f32 %v2156, %v2341
        %v2420 = vmul.f32 %v2157, %v2344
        %v2421 = vmul.f32 %v2158, %v2349
        %v2422 = vmul.f32 %v2159, %v2352
        %v2423 = vmul.f32 %v2160, %v2357
        %v2424 = vmul.f32 %v2161, %v2360
        %v2425 = vmul.f32 %v2162, %v2365
        %v2426 = vmul.f32 %v2163, %v2368
        %v2427 = vmul.f32 %v2164, %v2373
        %v2428 = vmul.f32 %v2165, %v2376
        %v2429 = vmul.f32 %v2166, %v2381
        %v2430 = vmul.f32 %v2167, %v2384
        %v2431 = vmul.f32 %v2168, %v2389
        %v2432 = vmul.f32 %v2169, %v2392
        %v2433 = vmul.f32 %v2170, %v2397
        %v2434 = vmul.f32 %v2171, %v2400
        %v2435 = vpack.c.bf16 %v2404, %v2403
        %v2436 = vpack.c.bf16 %v2406, %v2405
        %v2437 = vpack.c.bf16 %v2408, %v2407
        %v2438 = vpack.c.bf16 %v2410, %v2409
        %v2439 = vpack.c.bf16 %v2412, %v2411
        %v2440 = vpack.c.bf16 %v2414, %v2413
        %v2441 = vpack.c.bf16 %v2416, %v2415
        %v2442 = vpack.c.bf16 %v2418, %v2417
        %v2443 = vpack.c.bf16 %v2420, %v2419
        %v2444 = vpack.c.bf16 %v2422, %v2421
        %v2445 = vpack.c.bf16 %v2424, %v2423
        %v2446 = vpack.c.bf16 %v2426, %v2425
        %v2447 = vpack.c.bf16 %v2428, %v2427
        %v2448 = vpack.c.bf16 %v2430, %v2429
        %v2449 = vpack.c.bf16 %v2432, %v2431
        %v2450 = vpack.c.bf16 %v2434, %v2433
        %v2451 = vld [vmem:[%s499] sm:$0xff]
        %v2452 = vld [vmem:[%s499 + $0x8] sm:$0xff]
        %v2453 = vld [vmem:[%s499 + $0x10] sm:$0xff]
        %v2454 = vld [vmem:[%s499 + $0x18] sm:$0xff]
        %v2455 = vld [vmem:[%s499 + $0x20] sm:$0xff]
        %v2456 = vld [vmem:[%s499 + $0x28] sm:$0xff]
        %v2457 = vld [vmem:[%s499 + $0x30] sm:$0xff]
        %v2458 = vld [vmem:[%s499 + $0x38] sm:$0xff]
        %v2459 = vld [vmem:[%s499 + $0x40] sm:$0xff]
        %v2460 = vld [vmem:[%s499 + $0x48] sm:$0xff]
        %v2461 = vld [vmem:[%s499 + $0x50] sm:$0xff]
        %v2462 = vld [vmem:[%s499 + $0x58] sm:$0xff]
        %v2463 = vld [vmem:[%s499 + $0x60] sm:$0xff]
        %v2464 = vld [vmem:[%s499 + $0x68] sm:$0xff]
        %v2465 = vld [vmem:[%s499 + $0x70] sm:$0xff]
        %v2466 = vld [vmem:[%s499 + $0x78] sm:$0xff]
        %v2467 = vld [vmem:[%s499 + $0x80] sm:$0xff]
        %v2468 = vld [vmem:[%s499 + $0x88] sm:$0xff]
        %v2469 = vld [vmem:[%s499 + $0x90] sm:$0xff]
        %v2470 = vld [vmem:[%s499 + $0x98] sm:$0xff]
        %v2471 = vld [vmem:[%s499 + $0xa0] sm:$0xff]
        %v2472 = vld [vmem:[%s499 + $0xa8] sm:$0xff]
        %v2473 = vld [vmem:[%s499 + $0xb0] sm:$0xff]
        %v2474 = vld [vmem:[%s499 + $0xb8] sm:$0xff]
        %v2475 = vld [vmem:[%s499 + $0xc0] sm:$0xff]
        %v2476 = vld [vmem:[%s499 + $0xc8] sm:$0xff]
        %v2477 = vld [vmem:[%s499 + $0xd0] sm:$0xff]
        %v2478 = vld [vmem:[%s499 + $0xd8] sm:$0xff]
        %v2479 = vld [vmem:[%s499 + $0xe0] sm:$0xff]
        %v2480 = vld [vmem:[%s499 + $0xe8] sm:$0xff]
        %v2481 = vld [vmem:[%s499 + $0xf0] sm:$0xff]
        %v2482 = vld [vmem:[%s499 + $0xf8] sm:$0xff]
        %v2483 = vld [vmem:[%s489] sm:$0xf]
        %v2484 = vld [vmem:[%s489 + $0x4] sm:$0xf]
        %v2485 = vld [vmem:[%s489 + $0x8] sm:$0xf]
        %v2486 = vld [vmem:[%s489 + $0xc] sm:$0xf]
        %v2487 = vld [vmem:[%s489 + $0x10] sm:$0xf]
        %v2488 = vld [vmem:[%s489 + $0x14] sm:$0xf]
        %v2489 = vld [vmem:[%s489 + $0x18] sm:$0xf]
        %v2490 = vld [vmem:[%s489 + $0x1c] sm:$0xf]
        %v2491 = vld [vmem:[%s489 + $0x20] sm:$0xf]
        %v2492 = vld [vmem:[%s489 + $0x24] sm:$0xf]
        %v2493 = vld [vmem:[%s489 + $0x28] sm:$0xf]
        %v2494 = vld [vmem:[%s489 + $0x2c] sm:$0xf]
        %v2495 = vld [vmem:[%s489 + $0x30] sm:$0xf]
        %v2496 = vld [vmem:[%s489 + $0x34] sm:$0xf]
        %v2497 = vld [vmem:[%s489 + $0x38] sm:$0xf]
        %v2498 = vld [vmem:[%s489 + $0x3c] sm:$0xf]
        %v2515 = vunpack.c.l.b16 %v2483
        %v2516 = vunpack.c.l.b16 %v2484
        %v2517 = vunpack.c.l.b16 %v2485
        %v2518 = vunpack.c.l.b16 %v2486
        %v2519 = vunpack.c.l.b16 %v2487
        %v2520 = vunpack.c.l.b16 %v2488
        %v2521 = vunpack.c.l.b16 %v2489
        %v2522 = vunpack.c.l.b16 %v2490
        %v2523 = vunpack.c.l.b16 %v2491
        %v2524 = vunpack.c.l.b16 %v2492
        %v2525 = vunpack.c.l.b16 %v2493
        %v2526 = vunpack.c.l.b16 %v2494
        %v2527 = vunpack.c.l.b16 %v2495
        %v2528 = vunpack.c.l.b16 %v2496
        %v2529 = vunpack.c.l.b16 %v2497
        %v2530 = vunpack.c.l.b16 %v2498
        %v2531 = vpack.c.b16 %v2516, %v2515
        %v2532 = vpack.c.b16 %v2518, %v2517
        %v2533 = vpack.c.b16 %v2520, %v2519
        %v2534 = vpack.c.b16 %v2522, %v2521
        %v2535 = vpack.c.b16 %v2524, %v2523
        %v2536 = vpack.c.b16 %v2526, %v2525
        %v2537 = vpack.c.b16 %v2528, %v2527
        %v2538 = vpack.c.b16 %v2530, %v2529
        %2547 = vmatprep.subr.bf16.mxu0 0
        %2548 = vmatpush1.bf16.msra.mxu0 %v2531
        %2549 = vmatprep.subr.bf16.mxu0 0
        %2550 = vmatpush1.bf16.msra.mxu0 %v2532
        %2551 = vmatprep.subr.bf16.mxu0 0
        %2552 = vmatpush1.bf16.msra.mxu0 %v2533
        %2553 = vmatprep.subr.bf16.mxu0 0
        %2554 = vmatpush1.bf16.msra.mxu0 %v2534
        %2555 = vmatprep.subr.bf16.mxu0 0
        %2556 = vmatpush1.bf16.msra.mxu0 %v2535
        %2557 = vmatprep.subr.bf16.mxu0 0
        %2558 = vmatpush1.bf16.msra.mxu0 %v2536
        %2559 = vmatprep.subr.bf16.mxu0 0
        %2560 = vmatpush1.bf16.msra.mxu0 %v2537
        %2561 = vmatprep.subr.bf16.mxu0 0
        %2562 = vmatpush1.bf16.msra.mxu0 %v2538
        %2563 = vmatprep.subr.bf16.mxu0 0
        %2564 = vmatpush1.bf16.msra.mxu0 0
        %2565 = vmatprep.subr.bf16.mxu0 0
        %2566 = vmatpush1.bf16.msra.mxu0 0
        %2567 = vmatprep.subr.bf16.mxu0 0
        %2568 = vmatpush1.bf16.msra.mxu0 0
        %2569 = vmatprep.subr.bf16.mxu0 0
        %2570 = vmatpush1.bf16.msra.mxu0 0
        %2571 = vmatprep.subr.bf16.mxu0 0
        %2572 = vmatpush1.bf16.msra.mxu0 0
        %2573 = vmatprep.subr.bf16.mxu0 0
        %2574 = vmatpush1.bf16.msra.mxu0 0
        %2575 = vmatprep.subr.bf16.mxu0 0
        %2576 = vmatpush1.bf16.msra.mxu0 0
        %2577 = vmatprep.subr.bf16.mxu0 0
        %2578 = vmatpush1.bf16.msra.mxu0 0
        %2579 = vmatprep.mubr.bf16.mxu0 0
        %2580 = vmatmul.mubr.bf16.gmra.mrb[0].mxu0 %v2435
        %v2581 = vpop.f32.mrb[0].mxu0
        %v2582 = vadd.f32 0.0, %v2581
        %v2583 = vpop.f32.mrb[0].mxu0
        %v2584 = vpop.f32.mrb[0].mxu0
        %v2585 = vadd.f32 0.0, %v2584
        %v2586 = vpop.f32.mrb[0].mxu0
        %2587 = vmatprep.mubr.bf16.mxu0 0
        %2588 = vmatmul.mubr.bf16.gmra.mrb[0].mxu0 %v2436
        %v2589 = vpop.f32.mrb[0].mxu0
        %v2590 = vadd.f32 0.0, %v2589
        %v2591 = vpop.f32.mrb[0].mxu0
        %v2592 = vpop.f32.mrb[0].mxu0
        %v2593 = vadd.f32 0.0, %v2592
        %v2594 = vpop.f32.mrb[0].mxu0
        %2595 = vmatprep.mubr.bf16.mxu0 0
        %2596 = vmatmul.mubr.bf16.gmra.mrb[0].mxu0 %v2437
        %v2597 = vpop.f32.mrb[0].mxu0
        %v2598 = vadd.f32 0.0, %v2597
        %v2599 = vpop.f32.mrb[0].mxu0
        %v2600 = vpop.f32.mrb[0].mxu0
        %v2601 = vadd.f32 0.0, %v2600
        %v2602 = vpop.f32.mrb[0].mxu0
        %2603 = vmatprep.mubr.bf16.mxu0 0
        %2604 = vmatmul.mubr.bf16.gmra.mrb[0].mxu0 %v2438
        %v2605 = vpop.f32.mrb[0].mxu0
        %v2606 = vadd.f32 0.0, %v2605
        %v2607 = vpop.f32.mrb[0].mxu0
        %v2608 = vpop.f32.mrb[0].mxu0
        %v2609 = vadd.f32 0.0, %v2608
        %v2610 = vpop.f32.mrb[0].mxu0
        %2611 = vmatprep.mubr.bf16.mxu0 0
        %2612 = vmatmul.mubr.bf16.gmra.mrb[0].mxu0 %v2439
        %v2613 = vpop.f32.mrb[0].mxu0
        %v2614 = vadd.f32 0.0, %v2613
        %v2615 = vpop.f32.mrb[0].mxu0
        %v2616 = vpop.f32.mrb[0].mxu0
        %v2617 = vadd.f32 0.0, %v2616
        %v2618 = vpop.f32.mrb[0].mxu0
        %2619 = vmatprep.mubr.bf16.mxu0 0
        %2620 = vmatmul.mubr.bf16.gmra.mrb[0].mxu0 %v2440
        %v2621 = vpop.f32.mrb[0].mxu0
        %v2622 = vadd.f32 0.0, %v2621
        %v2623 = vpop.f32.mrb[0].mxu0
        %v2624 = vpop.f32.mrb[0].mxu0
        %v2625 = vadd.f32 0.0, %v2624
        %v2626 = vpop.f32.mrb[0].mxu0
        %2627 = vmatprep.mubr.bf16.mxu0 0
        %2628 = vmatmul.mubr.bf16.gmra.mrb[0].mxu0 %v2441
        %v2629 = vpop.f32.mrb[0].mxu0
        %v2630 = vadd.f32 0.0, %v2629
        %v2631 = vpop.f32.mrb[0].mxu0
        %v2632 = vpop.f32.mrb[0].mxu0
        %v2633 = vadd.f32 0.0, %v2632
        %v2634 = vpop.f32.mrb[0].mxu0
        %2635 = vmatprep.mubr.bf16.mxu0 0
        %2636 = vmatmul.mubr.bf16.gmra.mrb[0].mxu0 %v2442
        %v2637 = vpop.f32.mrb[0].mxu0
        %v2638 = vadd.f32 0.0, %v2637
        %v2639 = vpop.f32.mrb[0].mxu0
        %v2640 = vpop.f32.mrb[0].mxu0
        %v2641 = vadd.f32 0.0, %v2640
        %v2642 = vpop.f32.mrb[0].mxu0
        %2643 = vmatprep.mubr.bf16.mxu0 0
        %2644 = vmatmul.mubr.bf16.gmra.mrb[0].mxu0 %v2443
        %v2645 = vpop.f32.mrb[0].mxu0
        %v2646 = vadd.f32 0.0, %v2645
        %v2647 = vpop.f32.mrb[0].mxu0
        %v2648 = vpop.f32.mrb[0].mxu0
        %v2649 = vadd.f32 0.0, %v2648
        %v2650 = vpop.f32.mrb[0].mxu0
        %2651 = vmatprep.mubr.bf16.mxu0 0
        %2652 = vmatmul.mubr.bf16.gmra.mrb[0].mxu0 %v2444
        %v2653 = vpop.f32.mrb[0].mxu0
        %v2654 = vadd.f32 0.0, %v2653
        %v2655 = vpop.f32.mrb[0].mxu0
        %v2656 = vpop.f32.mrb[0].mxu0
        %v2657 = vadd.f32 0.0, %v2656
        %v2658 = vpop.f32.mrb[0].mxu0
        %2659 = vmatprep.mubr.bf16.mxu0 0
        %2660 = vmatmul.mubr.bf16.gmra.mrb[0].mxu0 %v2445
        %v2661 = vpop.f32.mrb[0].mxu0
        %v2662 = vadd.f32 0.0, %v2661
        %v2663 = vpop.f32.mrb[0].mxu0
        %v2664 = vpop.f32.mrb[0].mxu0
        %v2665 = vadd.f32 0.0, %v2664
        %v2666 = vpop.f32.mrb[0].mxu0
        %2667 = vmatprep.mubr.bf16.mxu0 0
        %2668 = vmatmul.mubr.bf16.gmra.mrb[0].mxu0 %v2446
        %v2669 = vpop.f32.mrb[0].mxu0
        %v2670 = vadd.f32 0.0, %v2669
        %v2671 = vpop.f32.mrb[0].mxu0
        %v2672 = vpop.f32.mrb[0].mxu0
        %v2673 = vadd.f32 0.0, %v2672
        %v2674 = vpop.f32.mrb[0].mxu0
        %2675 = vmatprep.mubr.bf16.mxu0 0
        %2676 = vmatmul.mubr.bf16.gmra.mrb[0].mxu0 %v2447
        %v2677 = vpop.f32.mrb[0].mxu0
        %v2678 = vadd.f32 0.0, %v2677
        %v2679 = vpop.f32.mrb[0].mxu0
        %v2680 = vpop.f32.mrb[0].mxu0
        %v2681 = vadd.f32 0.0, %v2680
        %v2682 = vpop.f32.mrb[0].mxu0
        %2683 = vmatprep.mubr.bf16.mxu0 0
        %2684 = vmatmul.mubr.bf16.gmra.mrb[0].mxu0 %v2448
        %v2685 = vpop.f32.mrb[0].mxu0
        %v2686 = vadd.f32 0.0, %v2685
        %v2687 = vpop.f32.mrb[0].mxu0
        %v2688 = vpop.f32.mrb[0].mxu0
        %v2689 = vadd.f32 0.0, %v2688
        %v2690 = vpop.f32.mrb[0].mxu0
        %2691 = vmatprep.mubr.bf16.mxu0 0
        %2692 = vmatmul.mubr.bf16.gmra.mrb[0].mxu0 %v2449
        %v2693 = vpop.f32.mrb[0].mxu0
        %v2694 = vadd.f32 0.0, %v2693
        %v2695 = vpop.f32.mrb[0].mxu0
        %v2696 = vpop.f32.mrb[0].mxu0
        %v2697 = vadd.f32 0.0, %v2696
        %v2698 = vpop.f32.mrb[0].mxu0
        %2699 = vmatprep.mubr.bf16.mxu0 0
        %2700 = vmatmul.mubr.bf16.gmra.mrb[0].mxu0 %v2450
        %v2701 = vpop.f32.mrb[0].mxu0
        %v2702 = vadd.f32 0.0, %v2701
        %v2703 = vpop.f32.mrb[0].mxu0
        %v2704 = vpop.f32.mrb[0].mxu0
        %v2705 = vadd.f32 0.0, %v2704
        %v2706 = vpop.f32.mrb[0].mxu0
        %2707 = vdwg.mxu0
        %v2708 = vadd.f32 %v2451, %v2582
        %v2709 = vadd.f32 %v2452, %v2585
        %v2710 = vadd.f32 %v2453, %v2590
        %v2711 = vadd.f32 %v2454, %v2593
        %v2712 = vadd.f32 %v2455, %v2598
        %v2713 = vadd.f32 %v2456, %v2601
        %v2714 = vadd.f32 %v2457, %v2606
        %v2715 = vadd.f32 %v2458, %v2609
        %v2716 = vadd.f32 %v2459, %v2614
        %v2717 = vadd.f32 %v2460, %v2617
        %v2718 = vadd.f32 %v2461, %v2622
        %v2719 = vadd.f32 %v2462, %v2625
        %v2720 = vadd.f32 %v2463, %v2630
        %v2721 = vadd.f32 %v2464, %v2633
        %v2722 = vadd.f32 %v2465, %v2638
        %v2723 = vadd.f32 %v2466, %v2641
        %v2724 = vadd.f32 %v2467, %v2646
        %v2725 = vadd.f32 %v2468, %v2649
        %v2726 = vadd.f32 %v2469, %v2654
        %v2727 = vadd.f32 %v2470, %v2657
        %v2728 = vadd.f32 %v2471, %v2662
        %v2729 = vadd.f32 %v2472, %v2665
        %v2730 = vadd.f32 %v2473, %v2670
        %v2731 = vadd.f32 %v2474, %v2673
        %v2732 = vadd.f32 %v2475, %v2678
        %v2733 = vadd.f32 %v2476, %v2681
        %v2734 = vadd.f32 %v2477, %v2686
        %v2735 = vadd.f32 %v2478, %v2689
        %v2736 = vadd.f32 %v2479, %v2694
        %v2737 = vadd.f32 %v2480, %v2697
        %v2738 = vadd.f32 %v2481, %v2702
        %v2739 = vadd.f32 %v2482, %v2705
        %2740 = vst.msk [vmem:[%s499] sm:$0xff] %vm1930, %v2708
        %2741 = vst.msk [vmem:[%s499 + $0x8] sm:$0xff] %vm1930, %v2709
        %2742 = vst.msk [vmem:[%s499 + $0x10] sm:$0xff] %vm1930, %v2710
        %2743 = vst.msk [vmem:[%s499 + $0x18] sm:$0xff] %vm1930, %v2711
        %2744 = vst.msk [vmem:[%s499 + $0x20] sm:$0xff] %vm1930, %v2712
        %2745 = vst.msk [vmem:[%s499 + $0x28] sm:$0xff] %vm1930, %v2713
        %2746 = vst.msk [vmem:[%s499 + $0x30] sm:$0xff] %vm1930, %v2714
        %2747 = vst.msk [vmem:[%s499 + $0x38] sm:$0xff] %vm1930, %v2715
        %2748 = vst.msk [vmem:[%s499 + $0x40] sm:$0xff] %vm1930, %v2716
        %2749 = vst.msk [vmem:[%s499 + $0x48] sm:$0xff] %vm1930, %v2717
        %2750 = vst.msk [vmem:[%s499 + $0x50] sm:$0xff] %vm1930, %v2718
        %2751 = vst.msk [vmem:[%s499 + $0x58] sm:$0xff] %vm1930, %v2719
        %2752 = vst.msk [vmem:[%s499 + $0x60] sm:$0xff] %vm1930, %v2720
        %2753 = vst.msk [vmem:[%s499 + $0x68] sm:$0xff] %vm1930, %v2721
        %2754 = vst.msk [vmem:[%s499 + $0x70] sm:$0xff] %vm1930, %v2722
        %2755 = vst.msk [vmem:[%s499 + $0x78] sm:$0xff] %vm1930, %v2723
        %2756 = vst.msk [vmem:[%s499 + $0x80] sm:$0xff] %vm1930, %v2724
        %2757 = vst.msk [vmem:[%s499 + $0x88] sm:$0xff] %vm1930, %v2725
        %2758 = vst.msk [vmem:[%s499 + $0x90] sm:$0xff] %vm1930, %v2726
        %2759 = vst.msk [vmem:[%s499 + $0x98] sm:$0xff] %vm1930, %v2727
        %2760 = vst.msk [vmem:[%s499 + $0xa0] sm:$0xff] %vm1930, %v2728
        %2761 = vst.msk [vmem:[%s499 + $0xa8] sm:$0xff] %vm1930, %v2729
        %2762 = vst.msk [vmem:[%s499 + $0xb0] sm:$0xff] %vm1930, %v2730
        %2763 = vst.msk [vmem:[%s499 + $0xb8] sm:$0xff] %vm1930, %v2731
        %2764 = vst.msk [vmem:[%s499 + $0xc0] sm:$0xff] %vm1930, %v2732
        %2765 = vst.msk [vmem:[%s499 + $0xc8] sm:$0xff] %vm1930, %v2733
        %2766 = vst.msk [vmem:[%s499 + $0xd0] sm:$0xff] %vm1930, %v2734
        %2767 = vst.msk [vmem:[%s499 + $0xd8] sm:$0xff] %vm1930, %v2735
        %2768 = vst.msk [vmem:[%s499 + $0xe0] sm:$0xff] %vm1930, %v2736
        %2769 = vst.msk [vmem:[%s499 + $0xe8] sm:$0xff] %vm1930, %v2737
        %2770 = vst.msk [vmem:[%s499 + $0xf0] sm:$0xff] %vm1930, %v2738
        %2771 = vst.msk [vmem:[%s499 + $0xf8] sm:$0xff] %vm1930, %v2739
        %s2772 = smul.u32 32, %s25
        %p2773 = scmp.lt.s32.totalorder %s2772, 63
        %s2774 = scalar_select %p2773, %s2772, 63
        %s2775 = smul.addr %s2774, 8
        %s2776 = scalar_lea.vmem %s10, %s2775
        // Predicated region
        $region106: #{tpu_custom_call.1} parent=96 // pred_check
          %p2777 = pneg %p286
        $region107: #{tpu_custom_call.1} parent=96 // pred_check_branch
          %2779 = sbr.rel (%p2777) target = $region109
        $region108: #{tpu_custom_call.1} parent=96 // pred_region
          %s2780 = smul.u32 32, %s25
        $region109: #{tpu_custom_call.1} parent=96 // pred_fallthru
          _
      $region97: #{tpu_custom_call.1} parent=5 // pred_fallthru
        _
      %p2781 = scmp.le.s32.totalorder 2, %s16
      // Predicated region
      $region110: #{tpu_custom_call.1} parent=5 // pred_check
        %p2782 = pneg %p2781
      $region111: #{tpu_custom_call.1} parent=5 // pred_check_branch
        %2784 = sbr.rel (%p2782) target = $region113
      $region112: #{tpu_custom_call.1} parent=5 // pred_region
        %s2785 = ssub.s32 %s16, 2
        // Predicated region
        $region114: #{tpu_custom_call.1} parent=112 // pred_check
          %p2786 = pneg %p292
        $region115: #{tpu_custom_call.1} parent=112 // pred_check_branch
          %2788 = sbr.rel (%p2786) target = $region117
        $region116: #{tpu_custom_call.1} parent=112 // pred_region
          %s2789 = smul.u32 32, %s27
          %p2790 = scmp.lt.s32.totalorder %s2789, 63
          %s2791 = scalar_select %p2790, %s2789, 63
          %s2792 = smul.addr %s2791, 8
          %s2793 = scalar_lea.vmem %s10, %s2792
        $region117: #{tpu_custom_call.1} parent=112 // pred_fallthru
          _
      $region113: #{tpu_custom_call.1} parent=5 // pred_fallthru
        _
    $region6: #{tpu_custom_call.1} parent=1 // loop_footer
      %s20 = sadd.s32 1, %s16
    $region7: #{tpu_custom_call.1} parent=1 // loop_footer_branch
      %15 = sbr.rel target = $region3
    $region8: #{tpu_custom_call.1} parent=1 // loop_exit
      _

// kernel: tpu_custom_call.1
$region0: #{tpu_custom_call.1}
  #allocation0 [shape = 'u32[]', space=smem, size = 0x4, offset = 0x4, fixed_abs, tag = 'smem constant byte address 0x4 - core index']
  #allocation1 [shape = 'u32[144,128]{1,0:T(1,128)}', space=vmem, size = 0x12000, scoped, tag = 'internal scratch']
  #allocation2 [shape = 'f32[256,4]{1,0:T(8,128)}', space=vmem, size = 0x20000, scoped, tag = 'scratch operand']
  %s0 = inlined_call_operand.vmem [shape: bf16[512,32], index: 0, kind: input, shape index: {}]
  %s1 = inlined_call_operand.vmem [shape: bf16[32,256], index: 1, kind: input, shape index: {}]
  %s2 = inlined_call_operand.vmem [shape: f32[1,256], index: 2, kind: input, shape index: {}]
  %s3 = inlined_call_operand.vmem [shape: bf16[256,32], index: 3, kind: input, shape index: {}]
  %s4 = inlined_call_operand.vmem [shape: bf16[4,256], index: 4, kind: input, shape index: {}]
  %s5 = inlined_call_operand.vmem [shape: bf16[4,32], index: 5, kind: input, shape index: {}]
  %s6 = inlined_call_operand.vmem [shape: bf16[32,64], index: 6, kind: input, shape index: {}]
  %s7 = inlined_call_operand.vmem [shape: f32[1,64], index: 7, kind: input, shape index: {}]
  %s8 = inlined_call_operand.vmem [shape: bf16[64,4], index: 8, kind: input, shape index: {}]
  %s9 = inlined_call_operand.vmem [shape: f32[1,4], index: 9, kind: input, shape index: {}]
  %s10 = inlined_call_operand.vmem [shape: f32[512,32], index: 10, kind: output, shape index: {}]
  %s11 = sld [smem:[#allocation0]]
  $region118: #{tpu_custom_call.1} parent=0
    _
  %s13 = ssub.s32 1, %s11
  %s14 = scalar_select 0, %s13, %s11
  $region1: #{tpu_custom_call.1} parent=0
    #allocation3 [shape = 'u8[16384]{0}', space=vmem, size = 0x4000, scoped, tag = 'input window, operand 1']
    loop: start=0, step=1, limit=6
    $region2: #{tpu_custom_call.1} parent=1 // loop_pre_header
      _
    $region3: #{tpu_custom_call.1} parent=1 // loop_header
      %s16 = sphi 0, %s20
      %p17 = scmp.ge.s32.totalorder %s16, 6
      %s23 = sphi 0, %s35
      %s24 = sphi 0, %s31
      %s25 = sphi 0, %s23
      %s26 = sphi 0, %s24
      %s27 = sphi 0, %s25
      %s28 = sphi 0, %s26
      %s38 = sphi 0, %s40
      %s41 = sphi 0, %s38
      %s42 = sphi 0, %s41
      %s58 = sphi 0, %s42
      %s64 = sphi 0, %s66
      %s67 = sphi 0, %s64
      %s68 = sphi 0, %s67
      %s84 = sphi 0, %s68
      %s90 = sphi 0, %s92
      %s93 = sphi 0, %s90
      %s94 = sphi 0, %s93
      %s110 = sphi 0, %s94
      %s116 = sphi 0, %s118
      %s119 = sphi 0, %s116
      %s120 = sphi 0, %s119
      %s136 = sphi 0, %s120
      %s142 = sphi 0, %s144
      %s145 = sphi 0, %s142
      %s146 = sphi 0, %s145
      %s162 = sphi 0, %s146
      %s166 = sphi 0, %s166
      %s168 = sphi 0, %s166
      %s169 = sphi 0, %s168
      %s183 = sphi 0, %s169
      %s187 = sphi 0, %s187
      %s189 = sphi 0, %s187
      %s190 = sphi 0, %s189
      %s204 = sphi 0, %s190
      %s208 = sphi 0, %s208
      %s210 = sphi 0, %s208
      %s211 = sphi 0, %s210
      %s225 = sphi 0, %s211
      %s229 = sphi 0, %s229
      %s231 = sphi 0, %s229
      %s232 = sphi 0, %s231
      %s246 = sphi 0, %s232
      %s250 = sphi 0, %s250
      %s252 = sphi 0, %s250
      %s253 = sphi 0, %s252
      %s267 = sphi 0, %s253
      %s273 = sphi 0, %s275
      %s276 = sphi 0, %s273
      %s277 = sphi 0, %s276
      %s293 = sphi 0, %s277
    $region4: #{tpu_custom_call.1} parent=1 // loop_header_branch
      %19 = sbr.rel (%p17) target = $region8
    $region5: #{tpu_custom_call.1} parent=1 // loop_body
      %s21 = ssub.s32 %s16, 1
      %s22 = ssub.s32 %s16, 2
      %s29 = sadd.s32 1, %s24
      %p30 = scmp.ge.s32.totalorder %s29, 2
      %s31 = scalar_select %p30, 0, %s29
      %s32 = sadd.s32 1, %s23
      %s33 = scalar_select %p30, %s32, %s23
      %p34 = scmp.ge.s32.totalorder %s33, 2
      %s35 = scalar_select %p34, 0, %s33
      %s36 = ssub.s32 %s23, %s35
      %p37 = scmp.eq.s32.totalorder %s36, 0
      %s39 = sadd.s32 %s38, 1
      %s40 = scalar_select %p37, %s38, %s39
      %p43 = pneg %p37
      %p44 = scmp.eq.s32.totalorder %s16, 3
      %p45 = por %p43, %p44
      %p46 = scmp.ne.s32.totalorder %s38, %s41
      %p47 = scmp.eq.s32.totalorder %s16, 0
      %p48 = por %p46, %p47
      %p49 = scmp.ne.s32.totalorder %s38, %s41
      %p50 = scmp.eq.s32.totalorder %s21, 3
      %p51 = por %p49, %p50
      %p52 = scmp.ne.s32.totalorder %s41, %s42
      %p53 = scmp.eq.s32.totalorder %s21, 0
      %p54 = por %p52, %p53
      %p55 = scmp.ne.s32.totalorder %s41, %s42
      %p56 = scmp.eq.s32.totalorder %s22, 3
      %p57 = por %p55, %p56
      %p59 = scmp.ne.s32.totalorder %s42, %s58
      %p60 = scmp.eq.s32.totalorder %s22, 0
      %p61 = por %p59, %p60
      %s62 = ssub.s32 %s24, %s31
      %p63 = scmp.eq.s32.totalorder %s62, 0
      %s65 = sadd.s32 %s64, 1
      %s66 = scalar_select %p63, %s64, %s65
      %p69 = pneg %p63
      %p70 = scmp.eq.s32.totalorder %s16, 3
      %p71 = por %p69, %p70
      %p72 = scmp.ne.s32.totalorder %s64, %s67
      %p73 = scmp.eq.s32.totalorder %s16, 0
      %p74 = por %p72, %p73
      %p75 = scmp.ne.s32.totalorder %s64, %s67
      %p76 = scmp.eq.s32.totalorder %s21, 3
      %p77 = por %p75, %p76
      %p78 = scmp.ne.s32.totalorder %s67, %s68
      %p79 = scmp.eq.s32.totalorder %s21, 0
      %p80 = por %p78, %p79
      %p81 = scmp.ne.s32.totalorder %s67, %s68
      %p82 = scmp.eq.s32.totalorder %s22, 3
      %p83 = por %p81, %p82
      %p85 = scmp.ne.s32.totalorder %s68, %s84
      %p86 = scmp.eq.s32.totalorder %s22, 0
      %p87 = por %p85, %p86
      %s88 = ssub.s32 %s24, %s31
      %p89 = scmp.eq.s32.totalorder %s88, 0
      %s91 = sadd.s32 %s90, 1
      %s92 = scalar_select %p89, %s90, %s91
      %p95 = pneg %p89
      %p96 = scmp.eq.s32.totalorder %s16, 3
      %p97 = por %p95, %p96
      %p98 = scmp.ne.s32.totalorder %s90, %s93
      %p99 = scmp.eq.s32.totalorder %s16, 0
      %p100 = por %p98, %p99
      %p101 = scmp.ne.s32.totalorder %s90, %s93
      %p102 = scmp.eq.s32.totalorder %s21, 3
      %p103 = por %p101, %p102
      %p104 = scmp.ne.s32.totalorder %s93, %s94
      %p105 = scmp.eq.s32.totalorder %s21, 0
      %p106 = por %p104, %p105
      %p107 = scmp.ne.s32.totalorder %s93, %s94
      %p108 = scmp.eq.s32.totalorder %s22, 3
      %p109 = por %p107, %p108
      %p111 = scmp.ne.s32.totalorder %s94, %s110
      %p112 = scmp.eq.s32.totalorder %s22, 0
      %p113 = por %p111, %p112
      %s114 = ssub.s32 %s24, %s31
      %p115 = scmp.eq.s32.totalorder %s114, 0
      %s117 = sadd.s32 %s116, 1
      %s118 = scalar_select %p115, %s116, %s117
      %p121 = pneg %p115
      %p122 = scmp.eq.s32.totalorder %s16, 3
      %p123 = por %p121, %p122
      %p124 = scmp.ne.s32.totalorder %s116, %s119
      %p125 = scmp.eq.s32.totalorder %s16, 0
      %p126 = por %p124, %p125
      %p127 = scmp.ne.s32.totalorder %s116, %s119
      %p128 = scmp.eq.s32.totalorder %s21, 3
      %p129 = por %p127, %p128
      %p130 = scmp.ne.s32.totalorder %s119, %s120
      %p131 = scmp.eq.s32.totalorder %s21, 0
      %p132 = por %p130, %p131
      %p133 = scmp.ne.s32.totalorder %s119, %s120
      %p134 = scmp.eq.s32.totalorder %s22, 3
      %p135 = por %p133, %p134
      %p137 = scmp.ne.s32.totalorder %s120, %s136
      %p138 = scmp.eq.s32.totalorder %s22, 0
      %p139 = por %p137, %p138
      %s140 = ssub.s32 %s24, %s31
      %p141 = scmp.eq.s32.totalorder %s140, 0
      %s143 = sadd.s32 %s142, 1
      %s144 = scalar_select %p141, %s142, %s143
      %p147 = pneg %p141
      %p148 = scmp.eq.s32.totalorder %s16, 3
      %p149 = por %p147, %p148
      %p150 = scmp.ne.s32.totalorder %s142, %s145
      %p151 = scmp.eq.s32.totalorder %s16, 0
      %p152 = por %p150, %p151
      %p153 = scmp.ne.s32.totalorder %s142, %s145
      %p154 = scmp.eq.s32.totalorder %s21, 3
      %p155 = por %p153, %p154
      %p156 = scmp.ne.s32.totalorder %s145, %s146
      %p157 = scmp.eq.s32.totalorder %s21, 0
      %p158 = por %p156, %p157
      %p159 = scmp.ne.s32.totalorder %s145, %s146
      %p160 = scmp.eq.s32.totalorder %s22, 3
      %p161 = por %p159, %p160
      %p163 = scmp.ne.s32.totalorder %s146, %s162
      %p164 = scmp.eq.s32.totalorder %s22, 0
      %p165 = por %p163, %p164
      %s167 = sadd.s32 %s166, 1
      %p170 = scmp.eq.s32.totalorder %s16, 3
      %p171 = scmp.ne.s32.totalorder %s166, %s168
      %p172 = scmp.eq.s32.totalorder %s16, 0
      %p173 = por %p171, %p172
      %p174 = scmp.ne.s32.totalorder %s166, %s168
      %p175 = scmp.eq.s32.totalorder %s21, 3
      %p176 = por %p174, %p175
      %p177 = scmp.ne.s32.totalorder %s168, %s169
      %p178 = scmp.eq.s32.totalorder %s21, 0
      %p179 = por %p177, %p178
      %p180 = scmp.ne.s32.totalorder %s168, %s169
      %p181 = scmp.eq.s32.totalorder %s22, 3
      %p182 = por %p180, %p181
      %p184 = scmp.ne.s32.totalorder %s169, %s183
      %p185 = scmp.eq.s32.totalorder %s22, 0
      %p186 = por %p184, %p185
      %s188 = sadd.s32 %s187, 1
      %p191 = scmp.eq.s32.totalorder %s16, 3
      %p192 = scmp.ne.s32.totalorder %s187, %s189
      %p193 = scmp.eq.s32.totalorder %s16, 0
      %p194 = por %p192, %p193
      %p195 = scmp.ne.s32.totalorder %s187, %s189
      %p196 = scmp.eq.s32.totalorder %s21, 3
      %p197 = por %p195, %p196
      %p198 = scmp.ne.s32.totalorder %s189, %s190
      %p199 = scmp.eq.s32.totalorder %s21, 0
      %p200 = por %p198, %p199
      %p201 = scmp.ne.s32.totalorder %s189, %s190
      %p202 = scmp.eq.s32.totalorder %s22, 3
      %p203 = por %p201, %p202
      %p205 = scmp.ne.s32.totalorder %s190, %s204
      %p206 = scmp.eq.s32.totalorder %s22, 0
      %p207 = por %p205, %p206
      %s209 = sadd.s32 %s208, 1
      %p212 = scmp.eq.s32.totalorder %s16, 3
      %p213 = scmp.ne.s32.totalorder %s208, %s210
      %p214 = scmp.eq.s32.totalorder %s16, 0
      %p215 = por %p213, %p214
      %p216 = scmp.ne.s32.totalorder %s208, %s210
      %p217 = scmp.eq.s32.totalorder %s21, 3
      %p218 = por %p216, %p217
      %p219 = scmp.ne.s32.totalorder %s210, %s211
      %p220 = scmp.eq.s32.totalorder %s21, 0
      %p221 = por %p219, %p220
      %p222 = scmp.ne.s32.totalorder %s210, %s211
      %p223 = scmp.eq.s32.totalorder %s22, 3
      %p224 = por %p222, %p223
      %p226 = scmp.ne.s32.totalorder %s211, %s225
      %p227 = scmp.eq.s32.totalorder %s22, 0
      %p228 = por %p226, %p227
      %s230 = sadd.s32 %s229, 1
      %p233 = scmp.eq.s32.totalorder %s16, 3
      %p234 = scmp.ne.s32.totalorder %s229, %s231
      %p235 = scmp.eq.s32.totalorder %s16, 0
      %p236 = por %p234, %p235
      %p237 = scmp.ne.s32.totalorder %s229, %s231
      %p238 = scmp.eq.s32.totalorder %s21, 3
      %p239 = por %p237, %p238
      %p240 = scmp.ne.s32.totalorder %s231, %s232
      %p241 = scmp.eq.s32.totalorder %s21, 0
      %p242 = por %p240, %p241
      %p243 = scmp.ne.s32.totalorder %s231, %s232
      %p244 = scmp.eq.s32.totalorder %s22, 3
      %p245 = por %p243, %p244
      %p247 = scmp.ne.s32.totalorder %s232, %s246
      %p248 = scmp.eq.s32.totalorder %s22, 0
      %p249 = por %p247, %p248
      %s251 = sadd.s32 %s250, 1
      %p254 = scmp.eq.s32.totalorder %s16, 3
      %p255 = scmp.ne.s32.totalorder %s250, %s252
      %p256 = scmp.eq.s32.totalorder %s16, 0
      %p257 = por %p255, %p256
      %p258 = scmp.ne.s32.totalorder %s250, %s252
      %p259 = scmp.eq.s32.totalorder %s21, 3
      %p260 = por %p258, %p259
      %p261 = scmp.ne.s32.totalorder %s252, %s253
      %p262 = scmp.eq.s32.totalorder %s21, 0
      %p263 = por %p261, %p262
      %p264 = scmp.ne.s32.totalorder %s252, %s253
      %p265 = scmp.eq.s32.totalorder %s22, 3
      %p266 = por %p264, %p265
      %p268 = scmp.ne.s32.totalorder %s253, %s267
      %p269 = scmp.eq.s32.totalorder %s22, 0
      %p270 = por %p268, %p269
      %s271 = ssub.s32 %s23, %s35
      %p272 = scmp.eq.s32.totalorder %s271, 0
      %s274 = sadd.s32 %s273, 1
      %s275 = scalar_select %p272, %s273, %s274
      %p278 = pneg %p272
      %p279 = scmp.eq.s32.totalorder %s16, 3
      %p280 = por %p278, %p279
      %p281 = scmp.ne.s32.totalorder %s273, %s276
      %p282 = scmp.eq.s32.totalorder %s16, 0
      %p283 = por %p281, %p282
      %p284 = scmp.ne.s32.totalorder %s273, %s276
      %p285 = scmp.eq.s32.totalorder %s21, 3
      %p286 = por %p284, %p285
      %p287 = scmp.ne.s32.totalorder %s276, %s277
      %p288 = scmp.eq.s32.totalorder %s21, 0
      %p289 = por %p287, %p288
      %p290 = scmp.ne.s32.totalorder %s276, %s277
      %p291 = scmp.eq.s32.totalorder %s22, 3
      %p292 = por %p290, %p291
      %p294 = scmp.ne.s32.totalorder %s277, %s293
      %p295 = scmp.eq.s32.totalorder %s22, 0
      %p296 = por %p294, %p295
      %p297 = scmp.le.s32.totalorder 1, %s16
      %p298 = scmp.lt.s32.totalorder %s16, 5
      %p299 = pnand %p297, %p298
      %p300 = pneg %p299
      // Predicated region
      $region9: #{tpu_custom_call.1} parent=5 // pred_check
        _
      $region10: #{tpu_custom_call.1} parent=5 // pred_check_branch
        %302 = sbr.rel (%p299) target = $region12
      $region11: #{tpu_custom_call.1} parent=5 // pred_region
        %s303 = ssub.s32 %s16, 1
        // Predicated region
        $region13: #{tpu_custom_call.1} parent=11 // pred_check
          %p304 = pneg %p179
        $region14: #{tpu_custom_call.1} parent=11 // pred_check_branch
          %306 = sbr.rel (%p304) target = $region16
        $region15: #{tpu_custom_call.1} parent=11 // pred_region
          _
        $region16: #{tpu_custom_call.1} parent=11 // pred_fallthru
          _
        // Predicated region
        $region17: #{tpu_custom_call.1} parent=11 // pred_check
          %p307 = pneg %p200
        $region18: #{tpu_custom_call.1} parent=11 // pred_check_branch
          %309 = sbr.rel (%p307) target = $region20
        $region19: #{tpu_custom_call.1} parent=11 // pred_region
          _
        $region20: #{tpu_custom_call.1} parent=11 // pred_fallthru
          _
        // Predicated region
        $region21: #{tpu_custom_call.1} parent=11 // pred_check
          %p310 = pneg %p221
        $region22: #{tpu_custom_call.1} parent=11 // pred_check_branch
          %312 = sbr.rel (%p310) target = $region24
        $region23: #{tpu_custom_call.1} parent=11 // pred_region
          _
        $region24: #{tpu_custom_call.1} parent=11 // pred_fallthru
          _
        // Predicated region
        $region25: #{tpu_custom_call.1} parent=11 // pred_check
          %p313 = pneg %p242
        $region26: #{tpu_custom_call.1} parent=11 // pred_check_branch
          %315 = sbr.rel (%p313) target = $region28
        $region27: #{tpu_custom_call.1} parent=11 // pred_region
          _
        $region28: #{tpu_custom_call.1} parent=11 // pred_fallthru
          _
        // Predicated region
        $region29: #{tpu_custom_call.1} parent=11 // pred_check
          %p316 = pneg %p263
        $region30: #{tpu_custom_call.1} parent=11 // pred_check_branch
          %318 = sbr.rel (%p316) target = $region32
        $region31: #{tpu_custom_call.1} parent=11 // pred_region
          _
        $region32: #{tpu_custom_call.1} parent=11 // pred_fallthru
          _
      $region12: #{tpu_custom_call.1} parent=5 // pred_fallthru
        _
      %p319 = scmp.lt.s32.totalorder %s16, 4
      // Predicated region
      $region33: #{tpu_custom_call.1} parent=5 // pred_check
        %p320 = pneg %p319
      $region34: #{tpu_custom_call.1} parent=5 // pred_check_branch
        %322 = sbr.rel (%p320) target = $region36
      $region35: #{tpu_custom_call.1} parent=5 // pred_region
        // Predicated region
        $region37: #{tpu_custom_call.1} parent=35 // pred_check
          %p323 = pneg %p48
        $region38: #{tpu_custom_call.1} parent=35 // pred_check_branch
          %325 = sbr.rel (%p323) target = $region40
        $region39: #{tpu_custom_call.1} parent=35 // pred_region
          %s326 = smul.u32 32, %s23
          %p327 = scmp.lt.s32.totalorder %s326, 63
          %s328 = scalar_select %p327, %s326, 63
          %s329 = smul.addr %s328, 4
          %s330 = scalar_lea.vmem %s0, %s329
          %s331 = smul.u32 32, %s23
        $region40: #{tpu_custom_call.1} parent=35 // pred_fallthru
          _
        // Predicated region
        $region41: #{tpu_custom_call.1} parent=35 // pred_check
          %p332 = pneg %p74
        $region42: #{tpu_custom_call.1} parent=35 // pred_check_branch
          %334 = sbr.rel (%p332) target = $region44
        $region43: #{tpu_custom_call.1} parent=35 // pred_region
          %s335 = sand.u32 %s64, 1
          %s336 = sand.u32 %s64, 1
          %s337 = smul.addr %s336, 16
          %s338 = scalar_lea.vmem [#allocation3], %s337
          %s339 = smul.addr %s24, 4
          %s340 = scalar_lea.vmem %s1, %s339
          // Predicated region
          $region45: #{tpu_custom_call.1} parent=43 // pred_check
            _
          $region46: #{tpu_custom_call.1} parent=43 // pred_check_branch
            %342 = sbr.rel (0) target = $region48
          $region47: #{tpu_custom_call.1} parent=43 // pred_region
            // Predicated region
            $region49: #{tpu_custom_call.1} parent=47 // pred_check
              _
            $region50: #{tpu_custom_call.1} parent=47 // pred_check_branch
              %344 = sbr.rel target = $region52
            $region51: #{tpu_custom_call.1} parent=47 // pred_region
              // Predicated region
              $region64: #{tpu_custom_call.1} parent=51 // pred_check
                _
              $region65: #{tpu_custom_call.1} parent=51 // pred_check_branch
                %365 = sbr.rel (0) target = $region67
              $region66: #{tpu_custom_call.1} parent=51 // pred_region
                loop: start=0, step=1, limit=1
                $region68: #{tpu_custom_call.1} parent=66 // loop_pre_header
                  _
                $region69: #{tpu_custom_call.1} parent=66 // loop_header
                  %s367 = sphi 0, %s371
                  %p368 = scmp.ge.s32.totalorder %s367, 1
                  %s372 = sphi %s340, %s340
                  %s373 = sphi %s338, %s338
                $region70: #{tpu_custom_call.1} parent=66 // loop_header_branch
                  %370 = sbr.rel (%p368) target = $region74
                $region71: #{tpu_custom_call.1} parent=66 // loop_body
                  _
                $region72: #{tpu_custom_call.1} parent=66 // loop_footer
                  %s371 = sadd.s32 1, %s367
                $region73: #{tpu_custom_call.1} parent=66 // loop_footer_branch
                  %366 = sbr.rel target = $region69
                $region74: #{tpu_custom_call.1} parent=66 // loop_exit
                  _
                loop: start=0, step=1, limit=1
                $region75: #{tpu_custom_call.1} parent=66 // loop_pre_header
                  _
                $region76: #{tpu_custom_call.1} parent=66 // loop_header
                  %s376 = sphi 0, %s380
                  %p377 = scmp.ge.s32.totalorder %s376, 1
                  %s381 = sphi %s340, %s340
                  %s382 = sphi %s338, %s338
                $region77: #{tpu_custom_call.1} parent=66 // loop_header_branch
                  %379 = sbr.rel (%p377) target = $region81
                $region78: #{tpu_custom_call.1} parent=66 // loop_body
                  %v383 = vld [vmem:[%s381] sm:$0xf]
                  %384 = vst [vmem:[%s382] sm:$0xf] %v383
                  %v385 = vld [vmem:[%s381 + $0x8] sm:$0xf]
                  %386 = vst [vmem:[%s382 + $0x4] sm:$0xf] %v385
                  %v387 = vld [vmem:[%s381 + $0x10] sm:$0xf]
                  %388 = vst [vmem:[%s382 + $0x8] sm:$0xf] %v387
                  %v389 = vld [vmem:[%s381 + $0x18] sm:$0xf]
                  %390 = vst [vmem:[%s382 + $0xc] sm:$0xf] %v389
                $region79: #{tpu_custom_call.1} parent=66 // loop_footer
                  %s380 = sadd.s32 1, %s376
                $region80: #{tpu_custom_call.1} parent=66 // loop_footer_branch
                  %375 = sbr.rel target = $region76
                $region81: #{tpu_custom_call.1} parent=66 // loop_exit
                  _
              $region67: #{tpu_custom_call.1} parent=51 // pred_fallthru
                _
            $region52: #{tpu_custom_call.1} parent=47 // pred_fallthru
              _
            // Predicated region
            $region53: #{tpu_custom_call.1} parent=47 // pred_check
              _
            $region54: #{tpu_custom_call.1} parent=47 // pred_check_branch
              %346 = sbr.rel (0) target = $region56
            $region55: #{tpu_custom_call.1} parent=47 // pred_region
              loop: start=0, step=1, limit=1
              $region57: #{tpu_custom_call.1} parent=55 // loop_pre_header
                _
              $region58: #{tpu_custom_call.1} parent=55 // loop_header
                %s349 = sphi 0, %s353
                %p350 = scmp.ge.s32.totalorder %s349, 1
                %s354 = sphi %s340, %s340
                %s355 = sphi %s338, %s338
              $region59: #{tpu_custom_call.1} parent=55 // loop_header_branch
                %352 = sbr.rel (%p350) target = $region63
              $region60: #{tpu_custom_call.1} parent=55 // loop_body
                %v356 = vld [vmem:[%s354] sm:$0xf]
                %357 = vst [vmem:[%s355] sm:$0xf] %v356
                %v358 = vld [vmem:[%s354 + $0x8] sm:$0xf]
                %359 = vst [vmem:[%s355 + $0x4] sm:$0xf] %v358
                %v360 = vld [vmem:[%s354 + $0x10] sm:$0xf]
                %361 = vst [vmem:[%s355 + $0x8] sm:$0xf] %v360
                %v362 = vld [vmem:[%s354 + $0x18] sm:$0xf]
                %363 = vst [vmem:[%s355 + $0xc] sm:$0xf] %v362
              $region61: #{tpu_custom_call.1} parent=55 // loop_footer
                %s353 = sadd.s32 1, %s349
              $region62: #{tpu_custom_call.1} parent=55 // loop_footer_branch
                %348 = sbr.rel target = $region58
              $region63: #{tpu_custom_call.1} parent=55 // loop_exit
                _
            $region56: #{tpu_custom_call.1} parent=47 // pred_fallthru
              _
          $region48: #{tpu_custom_call.1} parent=43 // pred_fallthru
            _
          %391 = vnop
        $region44: #{tpu_custom_call.1} parent=35 // pred_fallthru
          _
        // Predicated region
        $region82: #{tpu_custom_call.1} parent=35 // pred_check
          %p392 = pneg %p100
        $region83: #{tpu_custom_call.1} parent=35 // pred_check_branch
          %394 = sbr.rel (%p392) target = $region85
        $region84: #{tpu_custom_call.1} parent=35 // pred_region
          %p395 = scmp.lt.s32.totalorder %s24, 1
          %s396 = scalar_select %p395, %s24, 1
          %s397 = scalar_lea.vmem %s2, %s396
        $region85: #{tpu_custom_call.1} parent=35 // pred_fallthru
          _
        // Predicated region
        $region86: #{tpu_custom_call.1} parent=35 // pred_check
          %p398 = pneg %p126
        $region87: #{tpu_custom_call.1} parent=35 // pred_check_branch
          %400 = sbr.rel (%p398) target = $region89
        $region88: #{tpu_custom_call.1} parent=35 // pred_region
          %s401 = smul.u32 16, %s24
          %p402 = scmp.lt.s32.totalorder %s401, 31
          %s403 = scalar_select %p402, %s401, 31
          %s404 = smul.addr %s403, 4
          %s405 = scalar_lea.vmem %s3, %s404
          %s406 = smul.u32 16, %s24
        $region89: #{tpu_custom_call.1} parent=35 // pred_fallthru
          _
        // Predicated region
        $region90: #{tpu_custom_call.1} parent=35 // pred_check
          %p407 = pneg %p152
        $region91: #{tpu_custom_call.1} parent=35 // pred_check_branch
          %409 = sbr.rel (%p407) target = $region93
        $region92: #{tpu_custom_call.1} parent=35 // pred_region
          %p410 = scmp.lt.s32.totalorder %s24, 1
          %s411 = scalar_select %p410, %s24, 1
          %s412 = smul.addr %s411, 2
          %s413 = scalar_lea.vmem %s4, %s412
        $region93: #{tpu_custom_call.1} parent=35 // pred_fallthru
          _
      $region36: #{tpu_custom_call.1} parent=5 // pred_fallthru
        _
      %p414 = scmp.le.s32.totalorder 1, %s16
      %p415 = scmp.lt.s32.totalorder %s16, 5
      %p416 = pnand %p414, %p415
      %p417 = pneg %p416
      // Predicated region
      $region94: #{tpu_custom_call.1} parent=5 // pred_check
        _
      $region95: #{tpu_custom_call.1} parent=5 // pred_check_branch
        %419 = sbr.rel (%p416) target = $region97
      $region96: #{tpu_custom_call.1} parent=5 // pred_region
        %s420 = ssub.s32 %s16, 1
        %s421 = sand.u32 %s67, 1
        %s422 = sand.u32 %s67, 1
        %s423 = smul.addr %s422, 16
        %s424 = scalar_lea.vmem [#allocation3], %s423
        // Predicated region
        $region98: #{tpu_custom_call.1} parent=96 // pred_check
          %p425 = pneg %p80
        $region99: #{tpu_custom_call.1} parent=96 // pred_check_branch
          %427 = sbr.rel (%p425) target = $region101
        $region100: #{tpu_custom_call.1} parent=96 // pred_region
          _
        $region101: #{tpu_custom_call.1} parent=96 // pred_fallthru
          _
        %s428 = smul.u32 32, %s25
        %p429 = scmp.lt.s32.totalorder %s428, 63
        %s430 = scalar_select %p429, %s428, 63
        %s431 = smul.addr %s430, 4
        %s432 = scalar_lea.vmem %s0, %s431
        %p433 = pneg %p54
        %p434 = pneg %p51
        %s435 = sand.u32 %s67, 1
        %s436 = sand.u32 %s67, 1
        %s437 = smul.addr %s436, 16
        %s438 = scalar_lea.vmem [#allocation3], %s437
        %p439 = pneg %p80
        %p440 = pneg %p77
        %p441 = scmp.lt.s32.totalorder %s26, 1
        %s442 = scalar_select %p441, %s26, 1
        %s443 = scalar_lea.vmem %s2, %s442
        %p444 = pneg %p106
        %p445 = pneg %p103
        %s446 = smul.u32 16, %s26
        %p447 = scmp.lt.s32.totalorder %s446, 31
        %s448 = scalar_select %p447, %s446, 31
        %s449 = smul.addr %s448, 4
        %s450 = scalar_lea.vmem %s3, %s449
        %p451 = pneg %p132
        %p452 = pneg %p129
        %p453 = scmp.lt.s32.totalorder %s26, 1
        %s454 = scalar_select %p453, %s26, 1
        %s455 = smul.addr %s454, 2
        %s456 = scalar_lea.vmem %s4, %s455
        %p457 = pneg %p158
        %p458 = pneg %p155
        %p459 = pneg %p179
        %p460 = pneg %p176
        %p461 = pneg %p200
        %p462 = pneg %p197
        %p463 = pneg %p221
        %p464 = pneg %p218
        %p465 = pneg %p242
        %p466 = pneg %p239
        %p467 = pneg %p263
        %p468 = pneg %p260
        %p469 = pneg %p289
        %p470 = pneg %p286
        %s471 = smul.u32 32, %s25
        %p472 = scmp.lt.s32.totalorder %s471, 63
        %s473 = scalar_select %p472, %s471, 63
        %s474 = smul.addr %s473, 8
        %s475 = scalar_lea.vmem %s10, %s474
        %s476 = smul.u32 32, %s25
        %p477 = scmp.lt.s32.totalorder %s476, 63
        %s478 = scalar_select %p477, %s476, 63
        %s479 = smul.addr %s478, 4
        %s480 = scalar_lea.vmem %s0, %s479
        %s481 = smul.u32 32, %s25
        %p482 = scmp.lt.s32.totalorder %s26, 1
        %s483 = scalar_select %p482, %s26, 1
        %s484 = scalar_lea.vmem %s2, %s483
        %s485 = smul.u32 16, %s26
        %p486 = scmp.lt.s32.totalorder %s485, 31
        %s487 = scalar_select %p486, %s485, 31
        %s488 = smul.addr %s487, 4
        %s489 = scalar_lea.vmem %s3, %s488
        %s490 = smul.u32 16, %s26
        %p491 = scmp.lt.s32.totalorder %s26, 1
        %s492 = scalar_select %p491, %s26, 1
        %s493 = smul.addr %s492, 2
        %s494 = scalar_lea.vmem %s4, %s493
        %s495 = smul.u32 32, %s25
        %p496 = scmp.lt.s32.totalorder %s495, 63
        %s497 = scalar_select %p496, %s495, 63
        %s498 = smul.addr %s497, 8
        %s499 = scalar_lea.vmem %s10, %s498
        %s500 = smul.u32 32, %s25
        %v502 = vld [vmem:[%s480] sm:$0xf]
        %v503 = vld [vmem:[%s480 + $0x4] sm:$0xf]
        %v504 = vld [vmem:[%s480 + $0x8] sm:$0xf]
        %v505 = vld [vmem:[%s480 + $0xc] sm:$0xf]
        %v506 = vld [vmem:[%s480 + $0x10] sm:$0xf]
        %v507 = vld [vmem:[%s480 + $0x14] sm:$0xf]
        %v508 = vld [vmem:[%s480 + $0x18] sm:$0xf]
        %v509 = vld [vmem:[%s480 + $0x1c] sm:$0xf]
        %v510 = vld [vmem:[%s480 + $0x20] sm:$0xf]
        %v511 = vld [vmem:[%s480 + $0x24] sm:$0xf]
        %v512 = vld [vmem:[%s480 + $0x28] sm:$0xf]
        %v513 = vld [vmem:[%s480 + $0x2c] sm:$0xf]
        %v514 = vld [vmem:[%s480 + $0x30] sm:$0xf]
        %v515 = vld [vmem:[%s480 + $0x34] sm:$0xf]
        %v516 = vld [vmem:[%s480 + $0x38] sm:$0xf]
        %v517 = vld [vmem:[%s480 + $0x3c] sm:$0xf]
        %v518 = vld [vmem:[%s480 + $0x40] sm:$0xf]
        %v519 = vld [vmem:[%s480 + $0x44] sm:$0xf]
        %v520 = vld [vmem:[%s480 + $0x48] sm:$0xf]
        %v521 = vld [vmem:[%s480 + $0x4c] sm:$0xf]
        %v522 = vld [vmem:[%s480 + $0x50] sm:$0xf]
        %v523 = vld [vmem:[%s480 + $0x54] sm:$0xf]
        %v524 = vld [vmem:[%s480 + $0x58] sm:$0xf]
        %v525 = vld [vmem:[%s480 + $0x5c] sm:$0xf]
        %v526 = vld [vmem:[%s480 + $0x60] sm:$0xf]
        %v527 = vld [vmem:[%s480 + $0x64] sm:$0xf]
        %v528 = vld [vmem:[%s480 + $0x68] sm:$0xf]
        %v529 = vld [vmem:[%s480 + $0x6c] sm:$0xf]
        %v530 = vld [vmem:[%s480 + $0x70] sm:$0xf]
        %v531 = vld [vmem:[%s480 + $0x74] sm:$0xf]
        %v532 = vld [vmem:[%s480 + $0x78] sm:$0xf]
        %v533 = vld [vmem:[%s480 + $0x7c] sm:$0xf]
        %p534 = scmp.eq.s32.totalorder %s26, 0
        // Predicated region
        $region102: #{tpu_custom_call.1} parent=96 // pred_check
          %p535 = pneg %p534
        $region103: #{tpu_custom_call.1} parent=96 // pred_check_branch
          %537 = sbr.rel (%p535) target = $region105
        $region104: #{tpu_custom_call.1} parent=96 // pred_region
          %v538 = vld [vmem:[%s6] sm:$0xf]
          %v539 = vld [vmem:[%s6 + $0x4] sm:$0xf]
          %v540 = vld [vmem:[%s6 + $0x8] sm:$0xf]
          %v541 = vld [vmem:[%s6 + $0xc] sm:$0xf]
          %v542 = vld [vmem:[%s7] sm:$0x1]
          %v544 = vlaneseq
          %v545 = vshrl.u32 %v544, 7
          %v546 = vsub.s32 0, %v545
          %v547 = vrot.slane %v542, %v546
          %v581 = vunpack.c.l.b16 %v502
          %v582 = vunpack.c.l.b16 %v503
          %v583 = vunpack.c.l.b16 %v504
          %v584 = vunpack.c.l.b16 %v505
          %v585 = vunpack.c.l.b16 %v506
          %v586 = vunpack.c.l.b16 %v507
          %v587 = vunpack.c.l.b16 %v508
          %v588 = vunpack.c.l.b16 %v509
          %v589 = vunpack.c.l.b16 %v510
          %v590 = vunpack.c.l.b16 %v511
          %v591 = vunpack.c.l.b16 %v512
          %v592 = vunpack.c.l.b16 %v513
          %v593 = vunpack.c.l.b16 %v514
          %v594 = vunpack.c.l.b16 %v515
          %v595 = vunpack.c.l.b16 %v516
          %v596 = vunpack.c.l.b16 %v517
          %v597 = vunpack.c.l.b16 %v518
          %v598 = vunpack.c.l.b16 %v519
          %v599 = vunpack.c.l.b16 %v520
          %v600 = vunpack.c.l.b16 %v521
          %v601 = vunpack.c.l.b16 %v522
          %v602 = vunpack.c.l.b16 %v523
          %v603 = vunpack.c.l.b16 %v524
          %v604 = vunpack.c.l.b16 %v525
          %v605 = vunpack.c.l.b16 %v526
          %v606 = vunpack.c.l.b16 %v527
          %v607 = vunpack.c.l.b16 %v528
          %v608 = vunpack.c.l.b16 %v529
          %v609 = vunpack.c.l.b16 %v530
          %v610 = vunpack.c.l.b16 %v531
          %v611 = vunpack.c.l.b16 %v532
          %v612 = vunpack.c.l.b16 %v533
          %v613 = vpack.c.b16 %v582, %v581
          %v614 = vpack.c.b16 %v584, %v583
          %v615 = vpack.c.b16 %v586, %v585
          %v616 = vpack.c.b16 %v588, %v587
          %v617 = vpack.c.b16 %v590, %v589
          %v618 = vpack.c.b16 %v592, %v591
          %v619 = vpack.c.b16 %v594, %v593
          %v620 = vpack.c.b16 %v596, %v595
          %v621 = vpack.c.b16 %v598, %v597
          %v622 = vpack.c.b16 %v600, %v599
          %v623 = vpack.c.b16 %v602, %v601
          %v624 = vpack.c.b16 %v604, %v603
          %v625 = vpack.c.b16 %v606, %v605
          %v626 = vpack.c.b16 %v608, %v607
          %v627 = vpack.c.b16 %v610, %v609
          %v628 = vpack.c.b16 %v612, %v611
          %v633 = vunpack.c.l.b16 %v538
          %v634 = vunpack.c.l.b16 %v539
          %v635 = vunpack.c.l.b16 %v540
          %v636 = vunpack.c.l.b16 %v541
          %v637 = vpack.c.b16 %v634, %v633
          %v638 = vpack.c.b16 %v636, %v635
          %vm641 = vcmask 261120
          %v643 = vsel %vm641, %v613, 0
          %v646 = vsel %vm641, %v614, 0
          %v649 = vsel %vm641, %v615, 0
          %v652 = vsel %vm641, %v616, 0
          %v655 = vsel %vm641, %v617, 0
          %v658 = vsel %vm641, %v618, 0
          %v661 = vsel %vm641, %v619, 0
          %v664 = vsel %vm641, %v620, 0
          %v667 = vsel %vm641, %v621, 0
          %v670 = vsel %vm641, %v622, 0
          %v673 = vsel %vm641, %v623, 0
          %v676 = vsel %vm641, %v624, 0
          %v679 = vsel %vm641, %v625, 0
          %v682 = vsel %vm641, %v626, 0
          %v685 = vsel %vm641, %v627, 0
          %v688 = vsel %vm641, %v628, 0
          %690 = vmatprep.subr.bf16.mxu0 0
          %691 = vmatpush1.bf16.msra.mxu0 %v637
          %692 = vmatprep.subr.bf16.mxu0 0
          %693 = vmatpush1.bf16.msra.mxu0 %v638
          %694 = vmatprep.subr.bf16.mxu0 0
          %695 = vmatpush1.bf16.msra.mxu0 0
          %696 = vmatprep.subr.bf16.mxu0 0
          %697 = vmatpush1.bf16.msra.mxu0 0
          %698 = vmatprep.subr.bf16.mxu0 0
          %699 = vmatpush1.bf16.msra.mxu0 0
          %700 = vmatprep.subr.bf16.mxu0 0
          %701 = vmatpush1.bf16.msra.mxu0 0
          %702 = vmatprep.subr.bf16.mxu0 0
          %703 = vmatpush1.bf16.msra.mxu0 0
          %704 = vmatprep.subr.bf16.mxu0 0
          %705 = vmatpush1.bf16.msra.mxu0 0
          %706 = vmatprep.subr.bf16.mxu0 0
          %707 = vmatpush1.bf16.msra.mxu0 0
          %708 = vmatprep.subr.bf16.mxu0 0
          %709 = vmatpush1.bf16.msra.mxu0 0
          %710 = vmatprep.subr.bf16.mxu0 0
          %711 = vmatpush1.bf16.msra.mxu0 0
          %712 = vmatprep.subr.bf16.mxu0 0
          %713 = vmatpush1.bf16.msra.mxu0 0
          %714 = vmatprep.subr.bf16.mxu0 0
          %715 = vmatpush1.bf16.msra.mxu0 0
          %716 = vmatprep.subr.bf16.mxu0 0
          %717 = vmatpush1.bf16.msra.mxu0 0
          %718 = vmatprep.subr.bf16.mxu0 0
          %719 = vmatpush1.bf16.msra.mxu0 0
          %720 = vmatprep.subr.bf16.mxu0 0
          %721 = vmatpush1.bf16.msra.mxu0 0
          %722 = vmatprep.mubr.bf16.mxu0 0
          %723 = vmatmul.mubr.bf16.gmra.mrb[0].mxu0 %v643
          %v724 = vpop.f32.mrb[0].mxu0
          %v725 = vadd.f32 %v547, %v724
          %v726 = vpop.f32.mrb[0].mxu0
          %v727 = vpop.f32.mrb[0].mxu0
          %v728 = vadd.f32 %v547, %v727
          %v729 = vpop.f32.mrb[0].mxu0
          %730 = vmatprep.mubr.bf16.mxu0 0
          %731 = vmatmul.mubr.bf16.gmra.mrb[0].mxu0 %v646
          %v732 = vpop.f32.mrb[0].mxu0
          %v733 = vadd.f32 %v547, %v732
          %v734 = vpop.f32.mrb[0].mxu0
          %v735 = vpop.f32.mrb[0].mxu0
          %v736 = vadd.f32 %v547, %v735
          %v737 = vpop.f32.mrb[0].mxu0
          %738 = vmatprep.mubr.bf16.mxu0 0
          %739 = vmatmul.mubr.bf16.gmra.mrb[0].mxu0 %v649
          %v740 = vpop.f32.mrb[0].mxu0
          %v741 = vadd.f32 %v547, %v740
          %v742 = vpop.f32.mrb[0].mxu0
          %v743 = vpop.f32.mrb[0].mxu0
          %v744 = vadd.f32 %v547, %v743
          %v745 = vpop.f32.mrb[0].mxu0
          %746 = vmatprep.mubr.bf16.mxu0 0
          %747 = vmatmul.mubr.bf16.gmra.mrb[0].mxu0 %v652
          %v748 = vpop.f32.mrb[0].mxu0
          %v749 = vadd.f32 %v547, %v748
          %v750 = vpop.f32.mrb[0].mxu0
          %v751 = vpop.f32.mrb[0].mxu0
          %v752 = vadd.f32 %v547, %v751
          %v753 = vpop.f32.mrb[0].mxu0
          %754 = vmatprep.mubr.bf16.mxu0 0
          %755 = vmatmul.mubr.bf16.gmra.mrb[0].mxu0 %v655
          %v756 = vpop.f32.mrb[0].mxu0
          %v757 = vadd.f32 %v547, %v756
          %v758 = vpop.f32.mrb[0].mxu0
          %v759 = vpop.f32.mrb[0].mxu0
          %v760 = vadd.f32 %v547, %v759
          %v761 = vpop.f32.mrb[0].mxu0
          %762 = vmatprep.mubr.bf16.mxu0 0
          %763 = vmatmul.mubr.bf16.gmra.mrb[0].mxu0 %v658
          %v764 = vpop.f32.mrb[0].mxu0
          %v765 = vadd.f32 %v547, %v764
          %v766 = vpop.f32.mrb[0].mxu0
          %v767 = vpop.f32.mrb[0].mxu0
          %v768 = vadd.f32 %v547, %v767
          %v769 = vpop.f32.mrb[0].mxu0
          %770 = vmatprep.mubr.bf16.mxu0 0
          %771 = vmatmul.mubr.bf16.gmra.mrb[0].mxu0 %v661
          %v772 = vpop.f32.mrb[0].mxu0
          %v773 = vadd.f32 %v547, %v772
          %v774 = vpop.f32.mrb[0].mxu0
          %v775 = vpop.f32.mrb[0].mxu0
          %v776 = vadd.f32 %v547, %v775
          %v777 = vpop.f32.mrb[0].mxu0
          %778 = vmatprep.mubr.bf16.mxu0 0
          %779 = vmatmul.mubr.bf16.gmra.mrb[0].mxu0 %v664
          %v780 = vpop.f32.mrb[0].mxu0
          %v781 = vadd.f32 %v547, %v780
          %v782 = vpop.f32.mrb[0].mxu0
          %v783 = vpop.f32.mrb[0].mxu0
          %v784 = vadd.f32 %v547, %v783
          %v785 = vpop.f32.mrb[0].mxu0
          %786 = vmatprep.mubr.bf16.mxu0 0
          %787 = vmatmul.mubr.bf16.gmra.mrb[0].mxu0 %v667
          %v788 = vpop.f32.mrb[0].mxu0
          %v789 = vadd.f32 %v547, %v788
          %v790 = vpop.f32.mrb[0].mxu0
          %v791 = vpop.f32.mrb[0].mxu0
          %v792 = vadd.f32 %v547, %v791
          %v793 = vpop.f32.mrb[0].mxu0
          %794 = vmatprep.mubr.bf16.mxu0 0
          %795 = vmatmul.mubr.bf16.gmra.mrb[0].mxu0 %v670
          %v796 = vpop.f32.mrb[0].mxu0
          %v797 = vadd.f32 %v547, %v796
          %v798 = vpop.f32.mrb[0].mxu0
          %v799 = vpop.f32.mrb[0].mxu0
          %v800 = vadd.f32 %v547, %v799
          %v801 = vpop.f32.mrb[0].mxu0
          %802 = vmatprep.mubr.bf16.mxu0 0
          %803 = vmatmul.mubr.bf16.gmra.mrb[0].mxu0 %v673
          %v804 = vpop.f32.mrb[0].mxu0
          %v805 = vadd.f32 %v547, %v804
          %v806 = vpop.f32.mrb[0].mxu0
          %v807 = vpop.f32.mrb[0].mxu0
          %v808 = vadd.f32 %v547, %v807
          %v809 = vpop.f32.mrb[0].mxu0
          %810 = vmatprep.mubr.bf16.mxu0 0
          %811 = vmatmul.mubr.bf16.gmra.mrb[0].mxu0 %v676
          %v812 = vpop.f32.mrb[0].mxu0
          %v813 = vadd.f32 %v547, %v812
          %v814 = vpop.f32.mrb[0].mxu0
          %v815 = vpop.f32.mrb[0].mxu0
          %v816 = vadd.f32 %v547, %v815
          %v817 = vpop.f32.mrb[0].mxu0
          %818 = vmatprep.mubr.bf16.mxu0 0
          %819 = vmatmul.mubr.bf16.gmra.mrb[0].mxu0 %v679
          %v820 = vpop.f32.mrb[0].mxu0
          %v821 = vadd.f32 %v547, %v820
          %v822 = vpop.f32.mrb[0].mxu0
          %v823 = vpop.f32.mrb[0].mxu0
          %v824 = vadd.f32 %v547, %v823
          %v825 = vpop.f32.mrb[0].mxu0
          %826 = vmatprep.mubr.bf16.mxu0 0
          %827 = vmatmul.mubr.bf16.gmra.mrb[0].mxu0 %v682
          %v828 = vpop.f32.mrb[0].mxu0
          %v829 = vadd.f32 %v547, %v828
          %v830 = vpop.f32.mrb[0].mxu0
          %v831 = vpop.f32.mrb[0].mxu0
          %v832 = vadd.f32 %v547, %v831
          %v833 = vpop.f32.mrb[0].mxu0
          %834 = vmatprep.mubr.bf16.mxu0 0
          %835 = vmatmul.mubr.bf16.gmra.mrb[0].mxu0 %v685
          %v836 = vpop.f32.mrb[0].mxu0
          %v837 = vadd.f32 %v547, %v836
          %v838 = vpop.f32.mrb[0].mxu0
          %v839 = vpop.f32.mrb[0].mxu0
          %v840 = vadd.f32 %v547, %v839
          %v841 = vpop.f32.mrb[0].mxu0
          %842 = vmatprep.mubr.bf16.mxu0 0
          %843 = vmatmul.mubr.bf16.gmra.mrb[0].mxu0 %v688
          %v844 = vpop.f32.mrb[0].mxu0
          %v845 = vadd.f32 %v547, %v844
          %v846 = vpop.f32.mrb[0].mxu0
          %v847 = vpop.f32.mrb[0].mxu0
          %v848 = vadd.f32 %v547, %v847
          %v849 = vpop.f32.mrb[0].mxu0
          %850 = vdwg.mxu0
          %v851 = vmax.f32 %v725, 0.0
          %v852 = vmax.f32 %v728, 0.0
          %v853 = vmax.f32 %v733, 0.0
          %v854 = vmax.f32 %v736, 0.0
          %v855 = vmax.f32 %v741, 0.0
          %v856 = vmax.f32 %v744, 0.0
          %v857 = vmax.f32 %v749, 0.0
          %v858 = vmax.f32 %v752, 0.0
          %v859 = vmax.f32 %v757, 0.0
          %v860 = vmax.f32 %v760, 0.0
          %v861 = vmax.f32 %v765, 0.0
          %v862 = vmax.f32 %v768, 0.0
          %v863 = vmax.f32 %v773, 0.0
          %v864 = vmax.f32 %v776, 0.0
          %v865 = vmax.f32 %v781, 0.0
          %v866 = vmax.f32 %v784, 0.0
          %v867 = vmax.f32 %v789, 0.0
          %v868 = vmax.f32 %v792, 0.0
          %v869 = vmax.f32 %v797, 0.0
          %v870 = vmax.f32 %v800, 0.0
          %v871 = vmax.f32 %v805, 0.0
          %v872 = vmax.f32 %v808, 0.0
          %v873 = vmax.f32 %v813, 0.0
          %v874 = vmax.f32 %v816, 0.0
          %v875 = vmax.f32 %v821, 0.0
          %v876 = vmax.f32 %v824, 0.0
          %v877 = vmax.f32 %v829, 0.0
          %v878 = vmax.f32 %v832, 0.0
          %v879 = vmax.f32 %v837, 0.0
          %v880 = vmax.f32 %v840, 0.0
          %v881 = vmax.f32 %v845, 0.0
          %v882 = vmax.f32 %v848, 0.0
          %v883 = vpack.c.bf16 %v852, %v851
          %v884 = vpack.c.bf16 %v854, %v853
          %v885 = vpack.c.bf16 %v856, %v855
          %v886 = vpack.c.bf16 %v858, %v857
          %v887 = vpack.c.bf16 %v860, %v859
          %v888 = vpack.c.bf16 %v862, %v861
          %v889 = vpack.c.bf16 %v864, %v863
          %v890 = vpack.c.bf16 %v866, %v865
          %v891 = vpack.c.bf16 %v868, %v867
          %v892 = vpack.c.bf16 %v870, %v869
          %v893 = vpack.c.bf16 %v872, %v871
          %v894 = vpack.c.bf16 %v874, %v873
          %v895 = vpack.c.bf16 %v876, %v875
          %v896 = vpack.c.bf16 %v878, %v877
          %v897 = vpack.c.bf16 %v880, %v879
          %v898 = vpack.c.bf16 %v882, %v881
          %v899 = vld [vmem:[%s8] sm:$0xf]
          %v900 = vld [vmem:[%s8 + $0x4] sm:$0xf]
          %v901 = vld [vmem:[%s8 + $0x8] sm:$0xf]
          %v902 = vld [vmem:[%s8 + $0xc] sm:$0xf]
          %v903 = vld [vmem:[%s8 + $0x10] sm:$0xf]
          %v904 = vld [vmem:[%s8 + $0x14] sm:$0xf]
          %v905 = vld [vmem:[%s8 + $0x18] sm:$0xf]
          %v906 = vld [vmem:[%s8 + $0x1c] sm:$0xf]
          %v907 = vld [vmem:[%s9] sm:$0x1]
          %v909 = vlaneseq
          %v910 = vshrl.u32 %v909, 7
          %v911 = vsub.s32 0, %v910
          %v912 = vrot.slane %v907, %v911
          %v922 = vunpack.c.l.b16 %v899
          %v923 = vunpack.c.l.b16 %v900
          %v924 = vunpack.c.l.b16 %v901
          %v925 = vunpack.c.l.b16 %v902
          %v926 = vunpack.c.l.b16 %v903
          %v927 = vunpack.c.l.b16 %v904
          %v928 = vunpack.c.l.b16 %v905
          %v929 = vunpack.c.l.b16 %v906
          %v930 = vpack.c.b16 %v923, %v922
          %v931 = vpack.c.b16 %v925, %v924
          %v932 = vpack.c.b16 %v927, %v926
          %v933 = vpack.c.b16 %v929, %v928
          %vm938 = vcmask 523264
          %v940 = vsel %vm938, %v883, 0
          %v943 = vsel %vm938, %v884, 0
          %v946 = vsel %vm938, %v885, 0
          %v949 = vsel %vm938, %v886, 0
          %v952 = vsel %vm938, %v887, 0
          %v955 = vsel %vm938, %v888, 0
          %v958 = vsel %vm938, %v889, 0
          %v961 = vsel %vm938, %v890, 0
          %v964 = vsel %vm938, %v891, 0
          %v967 = vsel %vm938, %v892, 0
          %v970 = vsel %vm938, %v893, 0
          %v973 = vsel %vm938, %v894, 0
          %v976 = vsel %vm938, %v895, 0
          %v979 = vsel %vm938, %v896, 0
          %v982 = vsel %vm938, %v897, 0
          %v985 = vsel %vm938, %v898, 0
          %987 = vmatprep.subr.bf16.mxu0 0
          %988 = vmatpush1.bf16.msra.mxu0 %v930
          %989 = vmatprep.subr.bf16.mxu0 0
          %990 = vmatpush1.bf16.msra.mxu0 %v931
          %991 = vmatprep.subr.bf16.mxu0 0
          %992 = vmatpush1.bf16.msra.mxu0 %v932
          %993 = vmatprep.subr.bf16.mxu0 0
          %994 = vmatpush1.bf16.msra.mxu0 %v933
          %995 = vmatprep.subr.bf16.mxu0 0
          %996 = vmatpush1.bf16.msra.mxu0 0
          %997 = vmatprep.subr.bf16.mxu0 0
          %998 = vmatpush1.bf16.msra.mxu0 0
          %999 = vmatprep.subr.bf16.mxu0 0
          %1000 = vmatpush1.bf16.msra.mxu0 0
          %1001 = vmatprep.subr.bf16.mxu0 0
          %1002 = vmatpush1.bf16.msra.mxu0 0
          %1003 = vmatprep.subr.bf16.mxu0 0
          %1004 = vmatpush1.bf16.msra.mxu0 0
          %1005 = vmatprep.subr.bf16.mxu0 0
          %1006 = vmatpush1.bf16.msra.mxu0 0
          %1007 = vmatprep.subr.bf16.mxu0 0
          %1008 = vmatpush1.bf16.msra.mxu0 0
          %1009 = vmatprep.subr.bf16.mxu0 0
          %1010 = vmatpush1.bf16.msra.mxu0 0
          %1011 = vmatprep.subr.bf16.mxu0 0
          %1012 = vmatpush1.bf16.msra.mxu0 0
          %1013 = vmatprep.subr.bf16.mxu0 0
          %1014 = vmatpush1.bf16.msra.mxu0 0
          %1015 = vmatprep.subr.bf16.mxu0 0
          %1016 = vmatpush1.bf16.msra.mxu0 0
          %1017 = vmatprep.subr.bf16.mxu0 0
          %1018 = vmatpush1.bf16.msra.mxu0 0
          %1019 = vmatprep.mubr.bf16.mxu0 0
          %1020 = vmatmul.mubr.bf16.gmra.mrb[0].mxu0 %v940
          %v1021 = vpop.f32.mrb[0].mxu0
          %v1022 = vadd.f32 %v912, %v1021
          %v1023 = vpop.f32.mrb[0].mxu0
          %v1024 = vpop.f32.mrb[0].mxu0
          %v1025 = vadd.f32 %v912, %v1024
          %v1026 = vpop.f32.mrb[0].mxu0
          %1027 = vmatprep.mubr.bf16.mxu0 0
          %1028 = vmatmul.mubr.bf16.gmra.mrb[0].mxu0 %v943
          %v1029 = vpop.f32.mrb[0].mxu0
          %v1030 = vadd.f32 %v912, %v1029
          %v1031 = vpop.f32.mrb[0].mxu0
          %v1032 = vpop.f32.mrb[0].mxu0
          %v1033 = vadd.f32 %v912, %v1032
          %v1034 = vpop.f32.mrb[0].mxu0
          %1035 = vmatprep.mubr.bf16.mxu0 0
          %1036 = vmatmul.mubr.bf16.gmra.mrb[0].mxu0 %v946
          %v1037 = vpop.f32.mrb[0].mxu0
          %v1038 = vadd.f32 %v912, %v1037
          %v1039 = vpop.f32.mrb[0].mxu0
          %v1040 = vpop.f32.mrb[0].mxu0
          %v1041 = vadd.f32 %v912, %v1040
          %v1042 = vpop.f32.mrb[0].mxu0
          %1043 = vmatprep.mubr.bf16.mxu0 0
          %1044 = vmatmul.mubr.bf16.gmra.mrb[0].mxu0 %v949
          %v1045 = vpop.f32.mrb[0].mxu0
          %v1046 = vadd.f32 %v912, %v1045
          %v1047 = vpop.f32.mrb[0].mxu0
          %v1048 = vpop.f32.mrb[0].mxu0
          %v1049 = vadd.f32 %v912, %v1048
          %v1050 = vpop.f32.mrb[0].mxu0
          %1051 = vmatprep.mubr.bf16.mxu0 0
          %1052 = vmatmul.mubr.bf16.gmra.mrb[0].mxu0 %v952
          %v1053 = vpop.f32.mrb[0].mxu0
          %v1054 = vadd.f32 %v912, %v1053
          %v1055 = vpop.f32.mrb[0].mxu0
          %v1056 = vpop.f32.mrb[0].mxu0
          %v1057 = vadd.f32 %v912, %v1056
          %v1058 = vpop.f32.mrb[0].mxu0
          %1059 = vmatprep.mubr.bf16.mxu0 0
          %1060 = vmatmul.mubr.bf16.gmra.mrb[0].mxu0 %v955
          %v1061 = vpop.f32.mrb[0].mxu0
          %v1062 = vadd.f32 %v912, %v1061
          %v1063 = vpop.f32.mrb[0].mxu0
          %v1064 = vpop.f32.mrb[0].mxu0
          %v1065 = vadd.f32 %v912, %v1064
          %v1066 = vpop.f32.mrb[0].mxu0
          %1067 = vmatprep.mubr.bf16.mxu0 0
          %1068 = vmatmul.mubr.bf16.gmra.mrb[0].mxu0 %v958
          %v1069 = vpop.f32.mrb[0].mxu0
          %v1070 = vadd.f32 %v912, %v1069
          %v1071 = vpop.f32.mrb[0].mxu0
          %v1072 = vpop.f32.mrb[0].mxu0
          %v1073 = vadd.f32 %v912, %v1072
          %v1074 = vpop.f32.mrb[0].mxu0
          %1075 = vmatprep.mubr.bf16.mxu0 0
          %1076 = vmatmul.mubr.bf16.gmra.mrb[0].mxu0 %v961
          %v1077 = vpop.f32.mrb[0].mxu0
          %v1078 = vadd.f32 %v912, %v1077
          %v1079 = vpop.f32.mrb[0].mxu0
          %v1080 = vpop.f32.mrb[0].mxu0
          %v1081 = vadd.f32 %v912, %v1080
          %v1082 = vpop.f32.mrb[0].mxu0
          %1083 = vmatprep.mubr.bf16.mxu0 0
          %1084 = vmatmul.mubr.bf16.gmra.mrb[0].mxu0 %v964
          %v1085 = vpop.f32.mrb[0].mxu0
          %v1086 = vadd.f32 %v912, %v1085
          %v1087 = vpop.f32.mrb[0].mxu0
          %v1088 = vpop.f32.mrb[0].mxu0
          %v1089 = vadd.f32 %v912, %v1088
          %v1090 = vpop.f32.mrb[0].mxu0
          %1091 = vmatprep.mubr.bf16.mxu0 0
          %1092 = vmatmul.mubr.bf16.gmra.mrb[0].mxu0 %v967
          %v1093 = vpop.f32.mrb[0].mxu0
          %v1094 = vadd.f32 %v912, %v1093
          %v1095 = vpop.f32.mrb[0].mxu0
          %v1096 = vpop.f32.mrb[0].mxu0
          %v1097 = vadd.f32 %v912, %v1096
          %v1098 = vpop.f32.mrb[0].mxu0
          %1099 = vmatprep.mubr.bf16.mxu0 0
          %1100 = vmatmul.mubr.bf16.gmra.mrb[0].mxu0 %v970
          %v1101 = vpop.f32.mrb[0].mxu0
          %v1102 = vadd.f32 %v912, %v1101
          %v1103 = vpop.f32.mrb[0].mxu0
          %v1104 = vpop.f32.mrb[0].mxu0
          %v1105 = vadd.f32 %v912, %v1104
          %v1106 = vpop.f32.mrb[0].mxu0
          %1107 = vmatprep.mubr.bf16.mxu0 0
          %1108 = vmatmul.mubr.bf16.gmra.mrb[0].mxu0 %v973
          %v1109 = vpop.f32.mrb[0].mxu0
          %v1110 = vadd.f32 %v912, %v1109
          %v1111 = vpop.f32.mrb[0].mxu0
          %v1112 = vpop.f32.mrb[0].mxu0
          %v1113 = vadd.f32 %v912, %v1112
          %v1114 = vpop.f32.mrb[0].mxu0
          %1115 = vmatprep.mubr.bf16.mxu0 0
          %1116 = vmatmul.mubr.bf16.gmra.mrb[0].mxu0 %v976
          %v1117 = vpop.f32.mrb[0].mxu0
          %v1118 = vadd.f32 %v912, %v1117
          %v1119 = vpop.f32.mrb[0].mxu0
          %v1120 = vpop.f32.mrb[0].mxu0
          %v1121 = vadd.f32 %v912, %v1120
          %v1122 = vpop.f32.mrb[0].mxu0
          %1123 = vmatprep.mubr.bf16.mxu0 0
          %1124 = vmatmul.mubr.bf16.gmra.mrb[0].mxu0 %v979
          %v1125 = vpop.f32.mrb[0].mxu0
          %v1126 = vadd.f32 %v912, %v1125
          %v1127 = vpop.f32.mrb[0].mxu0
          %v1128 = vpop.f32.mrb[0].mxu0
          %v1129 = vadd.f32 %v912, %v1128
          %v1130 = vpop.f32.mrb[0].mxu0
          %1131 = vmatprep.mubr.bf16.mxu0 0
          %1132 = vmatmul.mubr.bf16.gmra.mrb[0].mxu0 %v982
          %v1133 = vpop.f32.mrb[0].mxu0
          %v1134 = vadd.f32 %v912, %v1133
          %v1135 = vpop.f32.mrb[0].mxu0
          %v1136 = vpop.f32.mrb[0].mxu0
          %v1137 = vadd.f32 %v912, %v1136
          %v1138 = vpop.f32.mrb[0].mxu0
          %1139 = vmatprep.mubr.bf16.mxu0 0
          %1140 = vmatmul.mubr.bf16.gmra.mrb[0].mxu0 %v985
          %v1141 = vpop.f32.mrb[0].mxu0
          %v1142 = vadd.f32 %v912, %v1141
          %v1143 = vpop.f32.mrb[0].mxu0
          %v1144 = vpop.f32.mrb[0].mxu0
          %v1145 = vadd.f32 %v912, %v1144
          %v1146 = vpop.f32.mrb[0].mxu0
          %1147 = vdwg.mxu0
          %vm1148 = vcmask 31744
          %v1149 = vsel %vm1148, %v1022, -inf
          %1150 = vmax.xlane.f32.xlu0 %v1149
          %v1151 = vpop.xlane.xlu0 %1150
          %v1152 = vsel %vm1148, %v1025, -inf
          %1153 = vmax.xlane.f32.xlu0 %v1152
          %v1154 = vpop.xlane.xlu0 %1153
          %v1155 = vsel %vm1148, %v1030, -inf
          %1156 = vmax.xlane.f32.xlu0 %v1155
          %v1157 = vpop.xlane.xlu0 %1156
          %v1158 = vsel %vm1148, %v1033, -inf
          %1159 = vmax.xlane.f32.xlu0 %v1158
          %v1160 = vpop.xlane.xlu0 %1159
          %v1161 = vsel %vm1148, %v1038, -inf
          %1162 = vmax.xlane.f32.xlu0 %v1161
          %v1163 = vpop.xlane.xlu0 %1162
          %v1164 = vsel %vm1148, %v1041, -inf
          %1165 = vmax.xlane.f32.xlu0 %v1164
          %v1166 = vpop.xlane.xlu0 %1165
          %v1167 = vsel %vm1148, %v1046, -inf
          %1168 = vmax.xlane.f32.xlu0 %v1167
          %v1169 = vpop.xlane.xlu0 %1168
          %v1170 = vsel %vm1148, %v1049, -inf
          %1171 = vmax.xlane.f32.xlu0 %v1170
          %v1172 = vpop.xlane.xlu0 %1171
          %v1173 = vsel %vm1148, %v1054, -inf
          %1174 = vmax.xlane.f32.xlu0 %v1173
          %v1175 = vpop.xlane.xlu0 %1174
          %v1176 = vsel %vm1148, %v1057, -inf
          %1177 = vmax.xlane.f32.xlu0 %v1176
          %v1178 = vpop.xlane.xlu0 %1177
          %v1179 = vsel %vm1148, %v1062, -inf
          %1180 = vmax.xlane.f32.xlu0 %v1179
          %v1181 = vpop.xlane.xlu0 %1180
          %v1182 = vsel %vm1148, %v1065, -inf
          %1183 = vmax.xlane.f32.xlu0 %v1182
          %v1184 = vpop.xlane.xlu0 %1183
          %v1185 = vsel %vm1148, %v1070, -inf
          %1186 = vmax.xlane.f32.xlu0 %v1185
          %v1187 = vpop.xlane.xlu0 %1186
          %v1188 = vsel %vm1148, %v1073, -inf
          %1189 = vmax.xlane.f32.xlu0 %v1188
          %v1190 = vpop.xlane.xlu0 %1189
          %v1191 = vsel %vm1148, %v1078, -inf
          %1192 = vmax.xlane.f32.xlu0 %v1191
          %v1193 = vpop.xlane.xlu0 %1192
          %v1194 = vsel %vm1148, %v1081, -inf
          %1195 = vmax.xlane.f32.xlu0 %v1194
          %v1196 = vpop.xlane.xlu0 %1195
          %v1197 = vsel %vm1148, %v1086, -inf
          %1198 = vmax.xlane.f32.xlu0 %v1197
          %v1199 = vpop.xlane.xlu0 %1198
          %v1200 = vsel %vm1148, %v1089, -inf
          %1201 = vmax.xlane.f32.xlu0 %v1200
          %v1202 = vpop.xlane.xlu0 %1201
          %v1203 = vsel %vm1148, %v1094, -inf
          %1204 = vmax.xlane.f32.xlu0 %v1203
          %v1205 = vpop.xlane.xlu0 %1204
          %v1206 = vsel %vm1148, %v1097, -inf
          %1207 = vmax.xlane.f32.xlu0 %v1206
          %v1208 = vpop.xlane.xlu0 %1207
          %v1209 = vsel %vm1148, %v1102, -inf
          %1210 = vmax.xlane.f32.xlu0 %v1209
          %v1211 = vpop.xlane.xlu0 %1210
          %v1212 = vsel %vm1148, %v1105, -inf
          %1213 = vmax.xlane.f32.xlu0 %v1212
          %v1214 = vpop.xlane.xlu0 %1213
          %v1215 = vsel %vm1148, %v1110, -inf
          %1216 = vmax.xlane.f32.xlu0 %v1215
          %v1217 = vpop.xlane.xlu0 %1216
          %v1218 = vsel %vm1148, %v1113, -inf
          %1219 = vmax.xlane.f32.xlu0 %v1218
          %v1220 = vpop.xlane.xlu0 %1219
          %v1221 = vsel %vm1148, %v1118, -inf
          %1222 = vmax.xlane.f32.xlu0 %v1221
          %v1223 = vpop.xlane.xlu0 %1222
          %v1224 = vsel %vm1148, %v1121, -inf
          %1225 = vmax.xlane.f32.xlu0 %v1224
          %v1226 = vpop.xlane.xlu0 %1225
          %v1227 = vsel %vm1148, %v1126, -inf
          %1228 = vmax.xlane.f32.xlu0 %v1227
          %v1229 = vpop.xlane.xlu0 %1228
          %v1230 = vsel %vm1148, %v1129, -inf
          %1231 = vmax.xlane.f32.xlu0 %v1230
          %v1232 = vpop.xlane.xlu0 %1231
          %v1233 = vsel %vm1148, %v1134, -inf
          %1234 = vmax.xlane.f32.xlu0 %v1233
          %v1235 = vpop.xlane.xlu0 %1234
          %v1236 = vsel %vm1148, %v1137, -inf
          %1237 = vmax.xlane.f32.xlu0 %v1236
          %v1238 = vpop.xlane.xlu0 %1237
          %v1239 = vsel %vm1148, %v1142, -inf
          %1240 = vmax.xlane.f32.xlu0 %v1239
          %v1241 = vpop.xlane.xlu0 %1240
          %v1242 = vsel %vm1148, %v1145, -inf
          %1243 = vmax.xlane.f32.xlu0 %v1242
          %v1244 = vpop.xlane.xlu0 %1243
          %v1245 = vsub.f32 %v1022, %v1151
          %v1246 = vsub.f32 %v1025, %v1154
          %v1247 = vsub.f32 %v1030, %v1157
          %v1248 = vsub.f32 %v1033, %v1160
          %v1249 = vsub.f32 %v1038, %v1163
          %v1250 = vsub.f32 %v1041, %v1166
          %v1251 = vsub.f32 %v1046, %v1169
          %v1252 = vsub.f32 %v1049, %v1172
          %v1253 = vsub.f32 %v1054, %v1175
          %v1254 = vsub.f32 %v1057, %v1178
          %v1255 = vsub.f32 %v1062, %v1181
          %v1256 = vsub.f32 %v1065, %v1184
          %v1257 = vsub.f32 %v1070, %v1187
          %v1258 = vsub.f32 %v1073, %v1190
          %v1259 = vsub.f32 %v1078, %v1193
          %v1260 = vsub.f32 %v1081, %v1196
          %v1261 = vsub.f32 %v1086, %v1199
          %v1262 = vsub.f32 %v1089, %v1202
          %v1263 = vsub.f32 %v1094, %v1205
          %v1264 = vsub.f32 %v1097, %v1208
          %v1265 = vsub.f32 %v1102, %v1211
          %v1266 = vsub.f32 %v1105, %v1214
          %v1267 = vsub.f32 %v1110, %v1217
          %v1268 = vsub.f32 %v1113, %v1220
          %v1269 = vsub.f32 %v1118, %v1223
          %v1270 = vsub.f32 %v1121, %v1226
          %v1271 = vsub.f32 %v1126, %v1229
          %v1272 = vsub.f32 %v1129, %v1232
          %v1273 = vsub.f32 %v1134, %v1235
          %v1274 = vsub.f32 %v1137, %v1238
          %v1275 = vsub.f32 %v1142, %v1241
          %v1276 = vsub.f32 %v1145, %v1244
          %v1277 = vmul.f32 %v1245, 1.442695
          %v1278 = vpow.pop %v1277
          %v1279 = vmul.f32 %v1246, 1.442695
          %v1280 = vpow.pop %v1279
          %v1281 = vmul.f32 %v1247, 1.442695
          %v1282 = vpow.pop %v1281
          %v1283 = vmul.f32 %v1248, 1.442695
          %v1284 = vpow.pop %v1283
          %v1285 = vmul.f32 %v1249, 1.442695
          %v1286 = vpow.pop %v1285
          %v1287 = vmul.f32 %v1250, 1.442695
          %v1288 = vpow.pop %v1287
          %v1289 = vmul.f32 %v1251, 1.442695
          %v1290 = vpow.pop %v1289
          %v1291 = vmul.f32 %v1252, 1.442695
          %v1292 = vpow.pop %v1291
          %v1293 = vmul.f32 %v1253, 1.442695
          %v1294 = vpow.pop %v1293
          %v1295 = vmul.f32 %v1254, 1.442695
          %v1296 = vpow.pop %v1295
          %v1297 = vmul.f32 %v1255, 1.442695
          %v1298 = vpow.pop %v1297
          %v1299 = vmul.f32 %v1256, 1.442695
          %v1300 = vpow.pop %v1299
          %v1301 = vmul.f32 %v1257, 1.442695
          %v1302 = vpow.pop %v1301
          %v1303 = vmul.f32 %v1258, 1.442695
          %v1304 = vpow.pop %v1303
          %v1305 = vmul.f32 %v1259, 1.442695
          %v1306 = vpow.pop %v1305
          %v1307 = vmul.f32 %v1260, 1.442695
          %v1308 = vpow.pop %v1307
          %v1309 = vmul.f32 %v1261, 1.442695
          %v1310 = vpow.pop %v1309
          %v1311 = vmul.f32 %v1262, 1.442695
          %v1312 = vpow.pop %v1311
          %v1313 = vmul.f32 %v1263, 1.442695
          %v1314 = vpow.pop %v1313
          %v1315 = vmul.f32 %v1264, 1.442695
          %v1316 = vpow.pop %v1315
          %v1317 = vmul.f32 %v1265, 1.442695
          %v1318 = vpow.pop %v1317
          %v1319 = vmul.f32 %v1266, 1.442695
          %v1320 = vpow.pop %v1319
          %v1321 = vmul.f32 %v1267, 1.442695
          %v1322 = vpow.pop %v1321
          %v1323 = vmul.f32 %v1268, 1.442695
          %v1324 = vpow.pop %v1323
          %v1325 = vmul.f32 %v1269, 1.442695
          %v1326 = vpow.pop %v1325
          %v1327 = vmul.f32 %v1270, 1.442695
          %v1328 = vpow.pop %v1327
          %v1329 = vmul.f32 %v1271, 1.442695
          %v1330 = vpow.pop %v1329
          %v1331 = vmul.f32 %v1272, 1.442695
          %v1332 = vpow.pop %v1331
          %v1333 = vmul.f32 %v1273, 1.442695
          %v1334 = vpow.pop %v1333
          %v1335 = vmul.f32 %v1274, 1.442695
          %v1336 = vpow.pop %v1335
          %v1337 = vmul.f32 %v1275, 1.442695
          %v1338 = vpow.pop %v1337
          %v1339 = vmul.f32 %v1276, 1.442695
          %v1340 = vpow.pop %v1339
          %v1341 = vsel %vm1148, %v1278, 0.0
          %1342 = vadd.xlane.f32.xlu0 %v1341
          %v1343 = vpop.xlane.xlu0 %1342
          %v1344 = vsel %vm1148, %v1280, 0.0
          %1345 = vadd.xlane.f32.xlu0 %v1344
          %v1346 = vpop.xlane.xlu0 %1345
          %v1347 = vsel %vm1148, %v1282, 0.0
          %1348 = vadd.xlane.f32.xlu0 %v1347
          %v1349 = vpop.xlane.xlu0 %1348
          %v1350 = vsel %vm1148, %v1284, 0.0
          %1351 = vadd.xlane.f32.xlu0 %v1350
          %v1352 = vpop.xlane.xlu0 %1351
          %v1353 = vsel %vm1148, %v1286, 0.0
          %1354 = vadd.xlane.f32.xlu0 %v1353
          %v1355 = vpop.xlane.xlu0 %1354
          %v1356 = vsel %vm1148, %v1288, 0.0
          %1357 = vadd.xlane.f32.xlu0 %v1356
          %v1358 = vpop.xlane.xlu0 %1357
          %v1359 = vsel %vm1148, %v1290, 0.0
          %1360 = vadd.xlane.f32.xlu0 %v1359
          %v1361 = vpop.xlane.xlu0 %1360
          %v1362 = vsel %vm1148, %v1292, 0.0
          %1363 = vadd.xlane.f32.xlu0 %v1362
          %v1364 = vpop.xlane.xlu0 %1363
          %v1365 = vsel %vm1148, %v1294, 0.0
          %1366 = vadd.xlane.f32.xlu0 %v1365
          %v1367 = vpop.xlane.xlu0 %1366
          %v1368 = vsel %vm1148, %v1296, 0.0
          %1369 = vadd.xlane.f32.xlu0 %v1368
          %v1370 = vpop.xlane.xlu0 %1369
          %v1371 = vsel %vm1148, %v1298, 0.0
          %1372 = vadd.xlane.f32.xlu0 %v1371
          %v1373 = vpop.xlane.xlu0 %1372
          %v1374 = vsel %vm1148, %v1300, 0.0
          %1375 = vadd.xlane.f32.xlu0 %v1374
          %v1376 = vpop.xlane.xlu0 %1375
          %v1377 = vsel %vm1148, %v1302, 0.0
          %1378 = vadd.xlane.f32.xlu0 %v1377
          %v1379 = vpop.xlane.xlu0 %1378
          %v1380 = vsel %vm1148, %v1304, 0.0
          %1381 = vadd.xlane.f32.xlu0 %v1380
          %v1382 = vpop.xlane.xlu0 %1381
          %v1383 = vsel %vm1148, %v1306, 0.0
          %1384 = vadd.xlane.f32.xlu0 %v1383
          %v1385 = vpop.xlane.xlu0 %1384
          %v1386 = vsel %vm1148, %v1308, 0.0
          %1387 = vadd.xlane.f32.xlu0 %v1386
          %v1388 = vpop.xlane.xlu0 %1387
          %v1389 = vsel %vm1148, %v1310, 0.0
          %1390 = vadd.xlane.f32.xlu0 %v1389
          %v1391 = vpop.xlane.xlu0 %1390
          %v1392 = vsel %vm1148, %v1312, 0.0
          %1393 = vadd.xlane.f32.xlu0 %v1392
          %v1394 = vpop.xlane.xlu0 %1393
          %v1395 = vsel %vm1148, %v1314, 0.0
          %1396 = vadd.xlane.f32.xlu0 %v1395
          %v1397 = vpop.xlane.xlu0 %1396
          %v1398 = vsel %vm1148, %v1316, 0.0
          %1399 = vadd.xlane.f32.xlu0 %v1398
          %v1400 = vpop.xlane.xlu0 %1399
          %v1401 = vsel %vm1148, %v1318, 0.0
          %1402 = vadd.xlane.f32.xlu0 %v1401
          %v1403 = vpop.xlane.xlu0 %1402
          %v1404 = vsel %vm1148, %v1320, 0.0
          %1405 = vadd.xlane.f32.xlu0 %v1404
          %v1406 = vpop.xlane.xlu0 %1405
          %v1407 = vsel %vm1148, %v1322, 0.0
          %1408 = vadd.xlane.f32.xlu0 %v1407
          %v1409 = vpop.xlane.xlu0 %1408
          %v1410 = vsel %vm1148, %v1324, 0.0
          %1411 = vadd.xlane.f32.xlu0 %v1410
          %v1412 = vpop.xlane.xlu0 %1411
          %v1413 = vsel %vm1148, %v1326, 0.0
          %1414 = vadd.xlane.f32.xlu0 %v1413
          %v1415 = vpop.xlane.xlu0 %1414
          %v1416 = vsel %vm1148, %v1328, 0.0
          %1417 = vadd.xlane.f32.xlu0 %v1416
          %v1418 = vpop.xlane.xlu0 %1417
          %v1419 = vsel %vm1148, %v1330, 0.0
          %1420 = vadd.xlane.f32.xlu0 %v1419
          %v1421 = vpop.xlane.xlu0 %1420
          %v1422 = vsel %vm1148, %v1332, 0.0
          %1423 = vadd.xlane.f32.xlu0 %v1422
          %v1424 = vpop.xlane.xlu0 %1423
          %v1425 = vsel %vm1148, %v1334, 0.0
          %1426 = vadd.xlane.f32.xlu0 %v1425
          %v1427 = vpop.xlane.xlu0 %1426
          %v1428 = vsel %vm1148, %v1336, 0.0
          %1429 = vadd.xlane.f32.xlu0 %v1428
          %v1430 = vpop.xlane.xlu0 %1429
          %v1431 = vsel %vm1148, %v1338, 0.0
          %1432 = vadd.xlane.f32.xlu0 %v1431
          %v1433 = vpop.xlane.xlu0 %1432
          %v1434 = vsel %vm1148, %v1340, 0.0
          %1435 = vadd.xlane.f32.xlu0 %v1434
          %v1436 = vpop.xlane.xlu0 %1435
          %v1437 = vrcp.pop %v1343
          %v1438 = vrcp.pop %v1346
          %v1439 = vrcp.pop %v1349
          %v1440 = vrcp.pop %v1352
          %v1441 = vrcp.pop %v1355
          %v1442 = vrcp.pop %v1358
          %v1443 = vrcp.pop %v1361
          %v1444 = vrcp.pop %v1364
          %v1445 = vrcp.pop %v1367
          %v1446 = vrcp.pop %v1370
          %v1447 = vrcp.pop %v1373
          %v1448 = vrcp.pop %v1376
          %v1449 = vrcp.pop %v1379
          %v1450 = vrcp.pop %v1382
          %v1451 = vrcp.pop %v1385
          %v1452 = vrcp.pop %v1388
          %v1453 = vrcp.pop %v1391
          %v1454 = vrcp.pop %v1394
          %v1455 = vrcp.pop %v1397
          %v1456 = vrcp.pop %v1400
          %v1457 = vrcp.pop %v1403
          %v1458 = vrcp.pop %v1406
          %v1459 = vrcp.pop %v1409
          %v1460 = vrcp.pop %v1412
          %v1461 = vrcp.pop %v1415
          %v1462 = vrcp.pop %v1418
          %v1463 = vrcp.pop %v1421
          %v1464 = vrcp.pop %v1424
          %v1465 = vrcp.pop %v1427
          %v1466 = vrcp.pop %v1430
          %v1467 = vrcp.pop %v1433
          %v1468 = vrcp.pop %v1436
          %v1469 = vmul.f32 %v1278, %v1437
          %v1470 = vmul.f32 %v1280, %v1438
          %v1471 = vmul.f32 %v1282, %v1439
          %v1472 = vmul.f32 %v1284, %v1440
          %v1473 = vmul.f32 %v1286, %v1441
          %v1474 = vmul.f32 %v1288, %v1442
          %v1475 = vmul.f32 %v1290, %v1443
          %v1476 = vmul.f32 %v1292, %v1444
          %v1477 = vmul.f32 %v1294, %v1445
          %v1478 = vmul.f32 %v1296, %v1446
          %v1479 = vmul.f32 %v1298, %v1447
          %v1480 = vmul.f32 %v1300, %v1448
          %v1481 = vmul.f32 %v1302, %v1449
          %v1482 = vmul.f32 %v1304, %v1450
          %v1483 = vmul.f32 %v1306, %v1451
          %v1484 = vmul.f32 %v1308, %v1452
          %v1485 = vmul.f32 %v1310, %v1453
          %v1486 = vmul.f32 %v1312, %v1454
          %v1487 = vmul.f32 %v1314, %v1455
          %v1488 = vmul.f32 %v1316, %v1456
          %v1489 = vmul.f32 %v1318, %v1457
          %v1490 = vmul.f32 %v1320, %v1458
          %v1491 = vmul.f32 %v1322, %v1459
          %v1492 = vmul.f32 %v1324, %v1460
          %v1493 = vmul.f32 %v1326, %v1461
          %v1494 = vmul.f32 %v1328, %v1462
          %v1495 = vmul.f32 %v1330, %v1463
          %v1496 = vmul.f32 %v1332, %v1464
          %v1497 = vmul.f32 %v1334, %v1465
          %v1498 = vmul.f32 %v1336, %v1466
          %v1499 = vmul.f32 %v1338, %v1467
          %v1500 = vmul.f32 %v1340, %v1468
          %1501 = vst.msk [vmem:[#allocation2] sm:$0xff] %vm1148, %v1469
          %1502 = vst.msk [vmem:[#allocation2 + $0x8] sm:$0xff] %vm1148, %v1470
          %1503 = vst.msk [vmem:[#allocation2 + $0x10] sm:$0xff] %vm1148, %v1471
          %1504 = vst.msk [vmem:[#allocation2 + $0x18] sm:$0xff] %vm1148, %v1472
          %1505 = vst.msk [vmem:[#allocation2 + $0x20] sm:$0xff] %vm1148, %v1473
          %1506 = vst.msk [vmem:[#allocation2 + $0x28] sm:$0xff] %vm1148, %v1474
          %1507 = vst.msk [vmem:[#allocation2 + $0x30] sm:$0xff] %vm1148, %v1475
          %1508 = vst.msk [vmem:[#allocation2 + $0x38] sm:$0xff] %vm1148, %v1476
          %1509 = vst.msk [vmem:[#allocation2 + $0x40] sm:$0xff] %vm1148, %v1477
          %1510 = vst.msk [vmem:[#allocation2 + $0x48] sm:$0xff] %vm1148, %v1478
          %1511 = vst.msk [vmem:[#allocation2 + $0x50] sm:$0xff] %vm1148, %v1479
          %1512 = vst.msk [vmem:[#allocation2 + $0x58] sm:$0xff] %vm1148, %v1480
          %1513 = vst.msk [vmem:[#allocation2 + $0x60] sm:$0xff] %vm1148, %v1481
          %1514 = vst.msk [vmem:[#allocation2 + $0x68] sm:$0xff] %vm1148, %v1482
          %1515 = vst.msk [vmem:[#allocation2 + $0x70] sm:$0xff] %vm1148, %v1483
          %1516 = vst.msk [vmem:[#allocation2 + $0x78] sm:$0xff] %vm1148, %v1484
          %1517 = vst.msk [vmem:[#allocation2 + $0x80] sm:$0xff] %vm1148, %v1485
          %1518 = vst.msk [vmem:[#allocation2 + $0x88] sm:$0xff] %vm1148, %v1486
          %1519 = vst.msk [vmem:[#allocation2 + $0x90] sm:$0xff] %vm1148, %v1487
          %1520 = vst.msk [vmem:[#allocation2 + $0x98] sm:$0xff] %vm1148, %v1488
          %1521 = vst.msk [vmem:[#allocation2 + $0xa0] sm:$0xff] %vm1148, %v1489
          %1522 = vst.msk [vmem:[#allocation2 + $0xa8] sm:$0xff] %vm1148, %v1490
          %1523 = vst.msk [vmem:[#allocation2 + $0xb0] sm:$0xff] %vm1148, %v1491
          %1524 = vst.msk [vmem:[#allocation2 + $0xb8] sm:$0xff] %vm1148, %v1492
          %1525 = vst.msk [vmem:[#allocation2 + $0xc0] sm:$0xff] %vm1148, %v1493
          %1526 = vst.msk [vmem:[#allocation2 + $0xc8] sm:$0xff] %vm1148, %v1494
          %1527 = vst.msk [vmem:[#allocation2 + $0xd0] sm:$0xff] %vm1148, %v1495
          %1528 = vst.msk [vmem:[#allocation2 + $0xd8] sm:$0xff] %vm1148, %v1496
          %1529 = vst.msk [vmem:[#allocation2 + $0xe0] sm:$0xff] %vm1148, %v1497
          %1530 = vst.msk [vmem:[#allocation2 + $0xe8] sm:$0xff] %vm1148, %v1498
          %1531 = vst.msk [vmem:[#allocation2 + $0xf0] sm:$0xff] %vm1148, %v1499
          %1532 = vst.msk [vmem:[#allocation2 + $0xf8] sm:$0xff] %vm1148, %v1500
          %v1533 = vpack.c.bf16 %v1470, %v1469
          %v1534 = vpack.c.bf16 %v1472, %v1471
          %v1535 = vpack.c.bf16 %v1474, %v1473
          %v1536 = vpack.c.bf16 %v1476, %v1475
          %v1537 = vpack.c.bf16 %v1478, %v1477
          %v1538 = vpack.c.bf16 %v1480, %v1479
          %v1539 = vpack.c.bf16 %v1482, %v1481
          %v1540 = vpack.c.bf16 %v1484, %v1483
          %v1541 = vpack.c.bf16 %v1486, %v1485
          %v1542 = vpack.c.bf16 %v1488, %v1487
          %v1543 = vpack.c.bf16 %v1490, %v1489
          %v1544 = vpack.c.bf16 %v1492, %v1491
          %v1545 = vpack.c.bf16 %v1494, %v1493
          %v1546 = vpack.c.bf16 %v1496, %v1495
          %v1547 = vpack.c.bf16 %v1498, %v1497
          %v1548 = vpack.c.bf16 %v1500, %v1499
          %v1549 = vld [vmem:[%s5] sm:$0x3]
          %v1551 = vsel %vm1148, %v1533, 0
          %v1554 = vsel %vm1148, %v1534, 0
          %v1557 = vsel %vm1148, %v1535, 0
          %v1560 = vsel %vm1148, %v1536, 0
          %v1563 = vsel %vm1148, %v1537, 0
          %v1566 = vsel %vm1148, %v1538, 0
          %v1569 = vsel %vm1148, %v1539, 0
          %v1572 = vsel %vm1148, %v1540, 0
          %v1575 = vsel %vm1148, %v1541, 0
          %v1578 = vsel %vm1148, %v1542, 0
          %v1581 = vsel %vm1148, %v1543, 0
          %v1584 = vsel %vm1148, %v1544, 0
          %v1587 = vsel %vm1148, %v1545, 0
          %v1590 = vsel %vm1148, %v1546, 0
          %v1593 = vsel %vm1148, %v1547, 0
          %v1596 = vsel %vm1148, %v1548, 0
          %vm1598 = vcmask 1041408
          %v1600 = vsel %vm1598, %v1549, 0
          %1602 = vmatprep.subr.bf16.mxu0 0
          %1603 = vmatpush1.bf16.msra.mxu0 %v1600
          %1604 = vmatprep.subr.bf16.mxu0 0
          %1605 = vmatpush1.bf16.msra.mxu0 0
          %1606 = vmatprep.subr.bf16.mxu0 0
          %1607 = vmatpush1.bf16.msra.mxu0 0
          %1608 = vmatprep.subr.bf16.mxu0 0
          %1609 = vmatpush1.bf16.msra.mxu0 0
          %1610 = vmatprep.subr.bf16.mxu0 0
          %1611 = vmatpush1.bf16.msra.mxu0 0
          %1612 = vmatprep.subr.bf16.mxu0 0
          %1613 = vmatpush1.bf16.msra.mxu0 0
          %1614 = vmatprep.subr.bf16.mxu0 0
          %1615 = vmatpush1.bf16.msra.mxu0 0
          %1616 = vmatprep.subr.bf16.mxu0 0
          %1617 = vmatpush1.bf16.msra.mxu0 0
          %1618 = vmatprep.subr.bf16.mxu0 0
          %1619 = vmatpush1.bf16.msra.mxu0 0
          %1620 = vmatprep.subr.bf16.mxu0 0
          %1621 = vmatpush1.bf16.msra.mxu0 0
          %1622 = vmatprep.subr.bf16.mxu0 0
          %1623 = vmatpush1.bf16.msra.mxu0 0
          %1624 = vmatprep.subr.bf16.mxu0 0
          %1625 = vmatpush1.bf16.msra.mxu0 0
          %1626 = vmatprep.subr.bf16.mxu0 0
          %1627 = vmatpush1.bf16.msra.mxu0 0
          %1628 = vmatprep.subr.bf16.mxu0 0
          %1629 = vmatpush1.bf16.msra.mxu0 0
          %1630 = vmatprep.subr.bf16.mxu0 0
          %1631 = vmatpush1.bf16.msra.mxu0 0
          %1632 = vmatprep.subr.bf16.mxu0 0
          %1633 = vmatpush1.bf16.msra.mxu0 0
          %1634 = vmatprep.mubr.bf16.mxu0 0
          %1635 = vmatmul.mubr.bf16.gmra.mrb[0].mxu0 %v1551
          %v1636 = vpop.f32.mrb[0].mxu0
          %v1637 = vadd.f32 0.0, %v1636
          %v1638 = vpop.f32.mrb[0].mxu0
          %v1639 = vpop.f32.mrb[0].mxu0
          %v1640 = vadd.f32 0.0, %v1639
          %v1641 = vpop.f32.mrb[0].mxu0
          %1642 = vmatprep.mubr.bf16.mxu0 0
          %1643 = vmatmul.mubr.bf16.gmra.mrb[0].mxu0 %v1554
          %v1644 = vpop.f32.mrb[0].mxu0
          %v1645 = vadd.f32 0.0, %v1644
          %v1646 = vpop.f32.mrb[0].mxu0
          %v1647 = vpop.f32.mrb[0].mxu0
          %v1648 = vadd.f32 0.0, %v1647
          %v1649 = vpop.f32.mrb[0].mxu0
          %1650 = vmatprep.mubr.bf16.mxu0 0
          %1651 = vmatmul.mubr.bf16.gmra.mrb[0].mxu0 %v1557
          %v1652 = vpop.f32.mrb[0].mxu0
          %v1653 = vadd.f32 0.0, %v1652
          %v1654 = vpop.f32.mrb[0].mxu0
          %v1655 = vpop.f32.mrb[0].mxu0
          %v1656 = vadd.f32 0.0, %v1655
          %v1657 = vpop.f32.mrb[0].mxu0
          %1658 = vmatprep.mubr.bf16.mxu0 0
          %1659 = vmatmul.mubr.bf16.gmra.mrb[0].mxu0 %v1560
          %v1660 = vpop.f32.mrb[0].mxu0
          %v1661 = vadd.f32 0.0, %v1660
          %v1662 = vpop.f32.mrb[0].mxu0
          %v1663 = vpop.f32.mrb[0].mxu0
          %v1664 = vadd.f32 0.0, %v1663
          %v1665 = vpop.f32.mrb[0].mxu0
          %1666 = vmatprep.mubr.bf16.mxu0 0
          %1667 = vmatmul.mubr.bf16.gmra.mrb[0].mxu0 %v1563
          %v1668 = vpop.f32.mrb[0].mxu0
          %v1669 = vadd.f32 0.0, %v1668
          %v1670 = vpop.f32.mrb[0].mxu0
          %v1671 = vpop.f32.mrb[0].mxu0
          %v1672 = vadd.f32 0.0, %v1671
          %v1673 = vpop.f32.mrb[0].mxu0
          %1674 = vmatprep.mubr.bf16.mxu0 0
          %1675 = vmatmul.mubr.bf16.gmra.mrb[0].mxu0 %v1566
          %v1676 = vpop.f32.mrb[0].mxu0
          %v1677 = vadd.f32 0.0, %v1676
          %v1678 = vpop.f32.mrb[0].mxu0
          %v1679 = vpop.f32.mrb[0].mxu0
          %v1680 = vadd.f32 0.0, %v1679
          %v1681 = vpop.f32.mrb[0].mxu0
          %1682 = vmatprep.mubr.bf16.mxu0 0
          %1683 = vmatmul.mubr.bf16.gmra.mrb[0].mxu0 %v1569
          %v1684 = vpop.f32.mrb[0].mxu0
          %v1685 = vadd.f32 0.0, %v1684
          %v1686 = vpop.f32.mrb[0].mxu0
          %v1687 = vpop.f32.mrb[0].mxu0
          %v1688 = vadd.f32 0.0, %v1687
          %v1689 = vpop.f32.mrb[0].mxu0
          %1690 = vmatprep.mubr.bf16.mxu0 0
          %1691 = vmatmul.mubr.bf16.gmra.mrb[0].mxu0 %v1572
          %v1692 = vpop.f32.mrb[0].mxu0
          %v1693 = vadd.f32 0.0, %v1692
          %v1694 = vpop.f32.mrb[0].mxu0
          %v1695 = vpop.f32.mrb[0].mxu0
          %v1696 = vadd.f32 0.0, %v1695
          %v1697 = vpop.f32.mrb[0].mxu0
          %1698 = vmatprep.mubr.bf16.mxu0 0
          %1699 = vmatmul.mubr.bf16.gmra.mrb[0].mxu0 %v1575
          %v1700 = vpop.f32.mrb[0].mxu0
          %v1701 = vadd.f32 0.0, %v1700
          %v1702 = vpop.f32.mrb[0].mxu0
          %v1703 = vpop.f32.mrb[0].mxu0
          %v1704 = vadd.f32 0.0, %v1703
          %v1705 = vpop.f32.mrb[0].mxu0
          %1706 = vmatprep.mubr.bf16.mxu0 0
          %1707 = vmatmul.mubr.bf16.gmra.mrb[0].mxu0 %v1578
          %v1708 = vpop.f32.mrb[0].mxu0
          %v1709 = vadd.f32 0.0, %v1708
          %v1710 = vpop.f32.mrb[0].mxu0
          %v1711 = vpop.f32.mrb[0].mxu0
          %v1712 = vadd.f32 0.0, %v1711
          %v1713 = vpop.f32.mrb[0].mxu0
          %1714 = vmatprep.mubr.bf16.mxu0 0
          %1715 = vmatmul.mubr.bf16.gmra.mrb[0].mxu0 %v1581
          %v1716 = vpop.f32.mrb[0].mxu0
          %v1717 = vadd.f32 0.0, %v1716
          %v1718 = vpop.f32.mrb[0].mxu0
          %v1719 = vpop.f32.mrb[0].mxu0
          %v1720 = vadd.f32 0.0, %v1719
          %v1721 = vpop.f32.mrb[0].mxu0
          %1722 = vmatprep.mubr.bf16.mxu0 0
          %1723 = vmatmul.mubr.bf16.gmra.mrb[0].mxu0 %v1584
          %v1724 = vpop.f32.mrb[0].mxu0
          %v1725 = vadd.f32 0.0, %v1724
          %v1726 = vpop.f32.mrb[0].mxu0
          %v1727 = vpop.f32.mrb[0].mxu0
          %v1728 = vadd.f32 0.0, %v1727
          %v1729 = vpop.f32.mrb[0].mxu0
          %1730 = vmatprep.mubr.bf16.mxu0 0
          %1731 = vmatmul.mubr.bf16.gmra.mrb[0].mxu0 %v1587
          %v1732 = vpop.f32.mrb[0].mxu0
          %v1733 = vadd.f32 0.0, %v1732
          %v1734 = vpop.f32.mrb[0].mxu0
          %v1735 = vpop.f32.mrb[0].mxu0
          %v1736 = vadd.f32 0.0, %v1735
          %v1737 = vpop.f32.mrb[0].mxu0
          %1738 = vmatprep.mubr.bf16.mxu0 0
          %1739 = vmatmul.mubr.bf16.gmra.mrb[0].mxu0 %v1590
          %v1740 = vpop.f32.mrb[0].mxu0
          %v1741 = vadd.f32 0.0, %v1740
          %v1742 = vpop.f32.mrb[0].mxu0
          %v1743 = vpop.f32.mrb[0].mxu0
          %v1744 = vadd.f32 0.0, %v1743
          %v1745 = vpop.f32.mrb[0].mxu0
          %1746 = vmatprep.mubr.bf16.mxu0 0
          %1747 = vmatmul.mubr.bf16.gmra.mrb[0].mxu0 %v1593
          %v1748 = vpop.f32.mrb[0].mxu0
          %v1749 = vadd.f32 0.0, %v1748
          %v1750 = vpop.f32.mrb[0].mxu0
          %v1751 = vpop.f32.mrb[0].mxu0
          %v1752 = vadd.f32 0.0, %v1751
          %v1753 = vpop.f32.mrb[0].mxu0
          %1754 = vmatprep.mubr.bf16.mxu0 0
          %1755 = vmatmul.mubr.bf16.gmra.mrb[0].mxu0 %v1596
          %v1756 = vpop.f32.mrb[0].mxu0
          %v1757 = vadd.f32 0.0, %v1756
          %v1758 = vpop.f32.mrb[0].mxu0
          %v1759 = vpop.f32.mrb[0].mxu0
          %v1760 = vadd.f32 0.0, %v1759
          %v1761 = vpop.f32.mrb[0].mxu0
          %1762 = vdwg.mxu0
          %1763 = vst.msk [vmem:[%s499] sm:$0xff] %vm641, %v1637
          %1764 = vst.msk [vmem:[%s499 + $0x8] sm:$0xff] %vm641, %v1640
          %1765 = vst.msk [vmem:[%s499 + $0x10] sm:$0xff] %vm641, %v1645
          %1766 = vst.msk [vmem:[%s499 + $0x18] sm:$0xff] %vm641, %v1648
          %1767 = vst.msk [vmem:[%s499 + $0x20] sm:$0xff] %vm641, %v1653
          %1768 = vst.msk [vmem:[%s499 + $0x28] sm:$0xff] %vm641, %v1656
          %1769 = vst.msk [vmem:[%s499 + $0x30] sm:$0xff] %vm641, %v1661
          %1770 = vst.msk [vmem:[%s499 + $0x38] sm:$0xff] %vm641, %v1664
          %1771 = vst.msk [vmem:[%s499 + $0x40] sm:$0xff] %vm641, %v1669
          %1772 = vst.msk [vmem:[%s499 + $0x48] sm:$0xff] %vm641, %v1672
          %1773 = vst.msk [vmem:[%s499 + $0x50] sm:$0xff] %vm641, %v1677
          %1774 = vst.msk [vmem:[%s499 + $0x58] sm:$0xff] %vm641, %v1680
          %1775 = vst.msk [vmem:[%s499 + $0x60] sm:$0xff] %vm641, %v1685
          %1776 = vst.msk [vmem:[%s499 + $0x68] sm:$0xff] %vm641, %v1688
          %1777 = vst.msk [vmem:[%s499 + $0x70] sm:$0xff] %vm641, %v1693
          %1778 = vst.msk [vmem:[%s499 + $0x78] sm:$0xff] %vm641, %v1696
          %1779 = vst.msk [vmem:[%s499 + $0x80] sm:$0xff] %vm641, %v1701
          %1780 = vst.msk [vmem:[%s499 + $0x88] sm:$0xff] %vm641, %v1704
          %1781 = vst.msk [vmem:[%s499 + $0x90] sm:$0xff] %vm641, %v1709
          %1782 = vst.msk [vmem:[%s499 + $0x98] sm:$0xff] %vm641, %v1712
          %1783 = vst.msk [vmem:[%s499 + $0xa0] sm:$0xff] %vm641, %v1717
          %1784 = vst.msk [vmem:[%s499 + $0xa8] sm:$0xff] %vm641, %v1720
          %1785 = vst.msk [vmem:[%s499 + $0xb0] sm:$0xff] %vm641, %v1725
          %1786 = vst.msk [vmem:[%s499 + $0xb8] sm:$0xff] %vm641, %v1728
          %1787 = vst.msk [vmem:[%s499 + $0xc0] sm:$0xff] %vm641, %v1733
          %1788 = vst.msk [vmem:[%s499 + $0xc8] sm:$0xff] %vm641, %v1736
          %1789 = vst.msk [vmem:[%s499 + $0xd0] sm:$0xff] %vm641, %v1741
          %1790 = vst.msk [vmem:[%s499 + $0xd8] sm:$0xff] %vm641, %v1744
          %1791 = vst.msk [vmem:[%s499 + $0xe0] sm:$0xff] %vm641, %v1749
          %1792 = vst.msk [vmem:[%s499 + $0xe8] sm:$0xff] %vm641, %v1752
          %1793 = vst.msk [vmem:[%s499 + $0xf0] sm:$0xff] %vm641, %v1757
          %1794 = vst.msk [vmem:[%s499 + $0xf8] sm:$0xff] %vm641, %v1760
        $region105: #{tpu_custom_call.1} parent=96 // pred_fallthru
          _
        %v1795 = vld [vmem:[#allocation2] sm:$0xff]
        %v1796 = vld [vmem:[#allocation2 + $0x8] sm:$0xff]
        %v1797 = vld [vmem:[#allocation2 + $0x10] sm:$0xff]
        %v1798 = vld [vmem:[#allocation2 + $0x18] sm:$0xff]
        %v1799 = vld [vmem:[#allocation2 + $0x20] sm:$0xff]
        %v1800 = vld [vmem:[#allocation2 + $0x28] sm:$0xff]
        %v1801 = vld [vmem:[#allocation2 + $0x30] sm:$0xff]
        %v1802 = vld [vmem:[#allocation2 + $0x38] sm:$0xff]
        %v1803 = vld [vmem:[#allocation2 + $0x40] sm:$0xff]
        %v1804 = vld [vmem:[#allocation2 + $0x48] sm:$0xff]
        %v1805 = vld [vmem:[#allocation2 + $0x50] sm:$0xff]
        %v1806 = vld [vmem:[#allocation2 + $0x58] sm:$0xff]
        %v1807 = vld [vmem:[#allocation2 + $0x60] sm:$0xff]
        %v1808 = vld [vmem:[#allocation2 + $0x68] sm:$0xff]
        %v1809 = vld [vmem:[#allocation2 + $0x70] sm:$0xff]
        %v1810 = vld [vmem:[#allocation2 + $0x78] sm:$0xff]
        %v1811 = vld [vmem:[#allocation2 + $0x80] sm:$0xff]
        %v1812 = vld [vmem:[#allocation2 + $0x88] sm:$0xff]
        %v1813 = vld [vmem:[#allocation2 + $0x90] sm:$0xff]
        %v1814 = vld [vmem:[#allocation2 + $0x98] sm:$0xff]
        %v1815 = vld [vmem:[#allocation2 + $0xa0] sm:$0xff]
        %v1816 = vld [vmem:[#allocation2 + $0xa8] sm:$0xff]
        %v1817 = vld [vmem:[#allocation2 + $0xb0] sm:$0xff]
        %v1818 = vld [vmem:[#allocation2 + $0xb8] sm:$0xff]
        %v1819 = vld [vmem:[#allocation2 + $0xc0] sm:$0xff]
        %v1820 = vld [vmem:[#allocation2 + $0xc8] sm:$0xff]
        %v1821 = vld [vmem:[#allocation2 + $0xd0] sm:$0xff]
        %v1822 = vld [vmem:[#allocation2 + $0xd8] sm:$0xff]
        %v1823 = vld [vmem:[#allocation2 + $0xe0] sm:$0xff]
        %v1824 = vld [vmem:[#allocation2 + $0xe8] sm:$0xff]
        %v1825 = vld [vmem:[#allocation2 + $0xf0] sm:$0xff]
        %v1826 = vld [vmem:[#allocation2 + $0xf8] sm:$0xff]
        %v1827 = vld [vmem:[%s424] sm:$0xf]
        %v1828 = vld [vmem:[%s424 + $0x4] sm:$0xf]
        %v1829 = vld [vmem:[%s424 + $0x8] sm:$0xf]
        %v1830 = vld [vmem:[%s424 + $0xc] sm:$0xf]
        %v1831 = vld [vmem:[%s484] sm:$0x1]
        %v1833 = vlaneseq
        %v1834 = vshrl.u32 %v1833, 7
        %v1835 = vsub.s32 0, %v1834
        %v1836 = vrot.slane %v1831, %v1835
        %v1870 = vunpack.c.l.b16 %v502
        %v1871 = vunpack.c.l.b16 %v503
        %v1872 = vunpack.c.l.b16 %v504
        %v1873 = vunpack.c.l.b16 %v505
        %v1874 = vunpack.c.l.b16 %v506
        %v1875 = vunpack.c.l.b16 %v507
        %v1876 = vunpack.c.l.b16 %v508
        %v1877 = vunpack.c.l.b16 %v509
        %v1878 = vunpack.c.l.b16 %v510
        %v1879 = vunpack.c.l.b16 %v511
        %v1880 = vunpack.c.l.b16 %v512
        %v1881 = vunpack.c.l.b16 %v513
        %v1882 = vunpack.c.l.b16 %v514
        %v1883 = vunpack.c.l.b16 %v515
        %v1884 = vunpack.c.l.b16 %v516
        %v1885 = vunpack.c.l.b16 %v517
        %v1886 = vunpack.c.l.b16 %v518
        %v1887 = vunpack.c.l.b16 %v519
        %v1888 = vunpack.c.l.b16 %v520
        %v1889 = vunpack.c.l.b16 %v521
        %v1890 = vunpack.c.l.b16 %v522
        %v1891 = vunpack.c.l.b16 %v523
        %v1892 = vunpack.c.l.b16 %v524
        %v1893 = vunpack.c.l.b16 %v525
        %v1894 = vunpack.c.l.b16 %v526
        %v1895 = vunpack.c.l.b16 %v527
        %v1896 = vunpack.c.l.b16 %v528
        %v1897 = vunpack.c.l.b16 %v529
        %v1898 = vunpack.c.l.b16 %v530
        %v1899 = vunpack.c.l.b16 %v531
        %v1900 = vunpack.c.l.b16 %v532
        %v1901 = vunpack.c.l.b16 %v533
        %v1902 = vpack.c.b16 %v1871, %v1870
        %v1903 = vpack.c.b16 %v1873, %v1872
        %v1904 = vpack.c.b16 %v1875, %v1874
        %v1905 = vpack.c.b16 %v1877, %v1876
        %v1906 = vpack.c.b16 %v1879, %v1878
        %v1907 = vpack.c.b16 %v1881, %v1880
        %v1908 = vpack.c.b16 %v1883, %v1882
        %v1909 = vpack.c.b16 %v1885, %v1884
        %v1910 = vpack.c.b16 %v1887, %v1886
        %v1911 = vpack.c.b16 %v1889, %v1888
        %v1912 = vpack.c.b16 %v1891, %v1890
        %v1913 = vpack.c.b16 %v1893, %v1892
        %v1914 = vpack.c.b16 %v1895, %v1894
        %v1915 = vpack.c.b16 %v1897, %v1896
        %v1916 = vpack.c.b16 %v1899, %v1898
        %v1917 = vpack.c.b16 %v1901, %v1900
        %v1922 = vunpack.c.l.b16 %v1827
        %v1923 = vunpack.c.l.b16 %v1828
        %v1924 = vunpack.c.l.b16 %v1829
        %v1925 = vunpack.c.l.b16 %v1830
        %v1926 = vpack.c.b16 %v1923, %v1922
        %v1927 = vpack.c.b16 %v1925, %v1924
        %vm1930 = vcmask 261120
        %v1932 = vsel %vm1930, %v1902, 0
        %v1935 = vsel %vm1930, %v1903, 0
        %v1938 = vsel %vm1930, %v1904, 0
        %v1941 = vsel %vm1930, %v1905, 0
        %v1944 = vsel %vm1930, %v1906, 0
        %v1947 = vsel %vm1930, %v1907, 0
        %v1950 = vsel %vm1930, %v1908, 0
        %v1953 = vsel %vm1930, %v1909, 0
        %v1956 = vsel %vm1930, %v1910, 0
        %v1959 = vsel %vm1930, %v1911, 0
        %v1962 = vsel %vm1930, %v1912, 0
        %v1965 = vsel %vm1930, %v1913, 0
        %v1968 = vsel %vm1930, %v1914, 0
        %v1971 = vsel %vm1930, %v1915, 0
        %v1974 = vsel %vm1930, %v1916, 0
        %v1977 = vsel %vm1930, %v1917, 0
        %1979 = vmatprep.subr.bf16.mxu0 0
        %1980 = vmatpush1.bf16.msra.mxu0 %v1926
        %1981 = vmatprep.subr.bf16.mxu0 0
        %1982 = vmatpush1.bf16.msra.mxu0 %v1927
        %1983 = vmatprep.subr.bf16.mxu0 0
        %1984 = vmatpush1.bf16.msra.mxu0 0
        %1985 = vmatprep.subr.bf16.mxu0 0
        %1986 = vmatpush1.bf16.msra.mxu0 0
        %1987 = vmatprep.subr.bf16.mxu0 0
        %1988 = vmatpush1.bf16.msra.mxu0 0
        %1989 = vmatprep.subr.bf16.mxu0 0
        %1990 = vmatpush1.bf16.msra.mxu0 0
        %1991 = vmatprep.subr.bf16.mxu0 0
        %1992 = vmatpush1.bf16.msra.mxu0 0
        %1993 = vmatprep.subr.bf16.mxu0 0
        %1994 = vmatpush1.bf16.msra.mxu0 0
        %1995 = vmatprep.subr.bf16.mxu0 0
        %1996 = vmatpush1.bf16.msra.mxu0 0
        %1997 = vmatprep.subr.bf16.mxu0 0
        %1998 = vmatpush1.bf16.msra.mxu0 0
        %1999 = vmatprep.subr.bf16.mxu0 0
        %2000 = vmatpush1.bf16.msra.mxu0 0
        %2001 = vmatprep.subr.bf16.mxu0 0
        %2002 = vmatpush1.bf16.msra.mxu0 0
        %2003 = vmatprep.subr.bf16.mxu0 0
        %2004 = vmatpush1.bf16.msra.mxu0 0
        %2005 = vmatprep.subr.bf16.mxu0 0
        %2006 = vmatpush1.bf16.msra.mxu0 0
        %2007 = vmatprep.subr.bf16.mxu0 0
        %2008 = vmatpush1.bf16.msra.mxu0 0
        %2009 = vmatprep.subr.bf16.mxu0 0
        %2010 = vmatpush1.bf16.msra.mxu0 0
        %2011 = vmatprep.mubr.bf16.mxu0 0
        %2012 = vmatmul.mubr.bf16.gmra.mrb[0].mxu0 %v1932
        %v2013 = vpop.f32.mrb[0].mxu0
        %v2014 = vadd.f32 %v1836, %v2013
        %v2015 = vpop.f32.mrb[0].mxu0
        %v2016 = vpop.f32.mrb[0].mxu0
        %v2017 = vadd.f32 %v1836, %v2016
        %v2018 = vpop.f32.mrb[0].mxu0
        %2019 = vmatprep.mubr.bf16.mxu0 0
        %2020 = vmatmul.mubr.bf16.gmra.mrb[0].mxu0 %v1935
        %v2021 = vpop.f32.mrb[0].mxu0
        %v2022 = vadd.f32 %v1836, %v2021
        %v2023 = vpop.f32.mrb[0].mxu0
        %v2024 = vpop.f32.mrb[0].mxu0
        %v2025 = vadd.f32 %v1836, %v2024
        %v2026 = vpop.f32.mrb[0].mxu0
        %2027 = vmatprep.mubr.bf16.mxu0 0
        %2028 = vmatmul.mubr.bf16.gmra.mrb[0].mxu0 %v1938
        %v2029 = vpop.f32.mrb[0].mxu0
        %v2030 = vadd.f32 %v1836, %v2029
        %v2031 = vpop.f32.mrb[0].mxu0
        %v2032 = vpop.f32.mrb[0].mxu0
        %v2033 = vadd.f32 %v1836, %v2032
        %v2034 = vpop.f32.mrb[0].mxu0
        %2035 = vmatprep.mubr.bf16.mxu0 0
        %2036 = vmatmul.mubr.bf16.gmra.mrb[0].mxu0 %v1941
        %v2037 = vpop.f32.mrb[0].mxu0
        %v2038 = vadd.f32 %v1836, %v2037
        %v2039 = vpop.f32.mrb[0].mxu0
        %v2040 = vpop.f32.mrb[0].mxu0
        %v2041 = vadd.f32 %v1836, %v2040
        %v2042 = vpop.f32.mrb[0].mxu0
        %2043 = vmatprep.mubr.bf16.mxu0 0
        %2044 = vmatmul.mubr.bf16.gmra.mrb[0].mxu0 %v1944
        %v2045 = vpop.f32.mrb[0].mxu0
        %v2046 = vadd.f32 %v1836, %v2045
        %v2047 = vpop.f32.mrb[0].mxu0
        %v2048 = vpop.f32.mrb[0].mxu0
        %v2049 = vadd.f32 %v1836, %v2048
        %v2050 = vpop.f32.mrb[0].mxu0
        %2051 = vmatprep.mubr.bf16.mxu0 0
        %2052 = vmatmul.mubr.bf16.gmra.mrb[0].mxu0 %v1947
        %v2053 = vpop.f32.mrb[0].mxu0
        %v2054 = vadd.f32 %v1836, %v2053
        %v2055 = vpop.f32.mrb[0].mxu0
        %v2056 = vpop.f32.mrb[0].mxu0
        %v2057 = vadd.f32 %v1836, %v2056
        %v2058 = vpop.f32.mrb[0].mxu0
        %2059 = vmatprep.mubr.bf16.mxu0 0
        %2060 = vmatmul.mubr.bf16.gmra.mrb[0].mxu0 %v1950
        %v2061 = vpop.f32.mrb[0].mxu0
        %v2062 = vadd.f32 %v1836, %v2061
        %v2063 = vpop.f32.mrb[0].mxu0
        %v2064 = vpop.f32.mrb[0].mxu0
        %v2065 = vadd.f32 %v1836, %v2064
        %v2066 = vpop.f32.mrb[0].mxu0
        %2067 = vmatprep.mubr.bf16.mxu0 0
        %2068 = vmatmul.mubr.bf16.gmra.mrb[0].mxu0 %v1953
        %v2069 = vpop.f32.mrb[0].mxu0
        %v2070 = vadd.f32 %v1836, %v2069
        %v2071 = vpop.f32.mrb[0].mxu0
        %v2072 = vpop.f32.mrb[0].mxu0
        %v2073 = vadd.f32 %v1836, %v2072
        %v2074 = vpop.f32.mrb[0].mxu0
        %2075 = vmatprep.mubr.bf16.mxu0 0
        %2076 = vmatmul.mubr.bf16.gmra.mrb[0].mxu0 %v1956
        %v2077 = vpop.f32.mrb[0].mxu0
        %v2078 = vadd.f32 %v1836, %v2077
        %v2079 = vpop.f32.mrb[0].mxu0
        %v2080 = vpop.f32.mrb[0].mxu0
        %v2081 = vadd.f32 %v1836, %v2080
        %v2082 = vpop.f32.mrb[0].mxu0
        %2083 = vmatprep.mubr.bf16.mxu0 0
        %2084 = vmatmul.mubr.bf16.gmra.mrb[0].mxu0 %v1959
        %v2085 = vpop.f32.mrb[0].mxu0
        %v2086 = vadd.f32 %v1836, %v2085
        %v2087 = vpop.f32.mrb[0].mxu0
        %v2088 = vpop.f32.mrb[0].mxu0
        %v2089 = vadd.f32 %v1836, %v2088
        %v2090 = vpop.f32.mrb[0].mxu0
        %2091 = vmatprep.mubr.bf16.mxu0 0
        %2092 = vmatmul.mubr.bf16.gmra.mrb[0].mxu0 %v1962
        %v2093 = vpop.f32.mrb[0].mxu0
        %v2094 = vadd.f32 %v1836, %v2093
        %v2095 = vpop.f32.mrb[0].mxu0
        %v2096 = vpop.f32.mrb[0].mxu0
        %v2097 = vadd.f32 %v1836, %v2096
        %v2098 = vpop.f32.mrb[0].mxu0
        %2099 = vmatprep.mubr.bf16.mxu0 0
        %2100 = vmatmul.mubr.bf16.gmra.mrb[0].mxu0 %v1965
        %v2101 = vpop.f32.mrb[0].mxu0
        %v2102 = vadd.f32 %v1836, %v2101
        %v2103 = vpop.f32.mrb[0].mxu0
        %v2104 = vpop.f32.mrb[0].mxu0
        %v2105 = vadd.f32 %v1836, %v2104
        %v2106 = vpop.f32.mrb[0].mxu0
        %2107 = vmatprep.mubr.bf16.mxu0 0
        %2108 = vmatmul.mubr.bf16.gmra.mrb[0].mxu0 %v1968
        %v2109 = vpop.f32.mrb[0].mxu0
        %v2110 = vadd.f32 %v1836, %v2109
        %v2111 = vpop.f32.mrb[0].mxu0
        %v2112 = vpop.f32.mrb[0].mxu0
        %v2113 = vadd.f32 %v1836, %v2112
        %v2114 = vpop.f32.mrb[0].mxu0
        %2115 = vmatprep.mubr.bf16.mxu0 0
        %2116 = vmatmul.mubr.bf16.gmra.mrb[0].mxu0 %v1971
        %v2117 = vpop.f32.mrb[0].mxu0
        %v2118 = vadd.f32 %v1836, %v2117
        %v2119 = vpop.f32.mrb[0].mxu0
        %v2120 = vpop.f32.mrb[0].mxu0
        %v2121 = vadd.f32 %v1836, %v2120
        %v2122 = vpop.f32.mrb[0].mxu0
        %2123 = vmatprep.mubr.bf16.mxu0 0
        %2124 = vmatmul.mubr.bf16.gmra.mrb[0].mxu0 %v1974
        %v2125 = vpop.f32.mrb[0].mxu0
        %v2126 = vadd.f32 %v1836, %v2125
        %v2127 = vpop.f32.mrb[0].mxu0
        %v2128 = vpop.f32.mrb[0].mxu0
        %v2129 = vadd.f32 %v1836, %v2128
        %v2130 = vpop.f32.mrb[0].mxu0
        %2131 = vmatprep.mubr.bf16.mxu0 0
        %2132 = vmatmul.mubr.bf16.gmra.mrb[0].mxu0 %v1977
        %v2133 = vpop.f32.mrb[0].mxu0
        %v2134 = vadd.f32 %v1836, %v2133
        %v2135 = vpop.f32.mrb[0].mxu0
        %v2136 = vpop.f32.mrb[0].mxu0
        %v2137 = vadd.f32 %v1836, %v2136
        %v2138 = vpop.f32.mrb[0].mxu0
        %2139 = vdwg.mxu0
        %v2140 = vmax.f32 %v2014, 0.0
        %v2141 = vmax.f32 %v2017, 0.0
        %v2142 = vmax.f32 %v2022, 0.0
        %v2143 = vmax.f32 %v2025, 0.0
        %v2144 = vmax.f32 %v2030, 0.0
        %v2145 = vmax.f32 %v2033, 0.0
        %v2146 = vmax.f32 %v2038, 0.0
        %v2147 = vmax.f32 %v2041, 0.0
        %v2148 = vmax.f32 %v2046, 0.0
        %v2149 = vmax.f32 %v2049, 0.0
        %v2150 = vmax.f32 %v2054, 0.0
        %v2151 = vmax.f32 %v2057, 0.0
        %v2152 = vmax.f32 %v2062, 0.0
        %v2153 = vmax.f32 %v2065, 0.0
        %v2154 = vmax.f32 %v2070, 0.0
        %v2155 = vmax.f32 %v2073, 0.0
        %v2156 = vmax.f32 %v2078, 0.0
        %v2157 = vmax.f32 %v2081, 0.0
        %v2158 = vmax.f32 %v2086, 0.0
        %v2159 = vmax.f32 %v2089, 0.0
        %v2160 = vmax.f32 %v2094, 0.0
        %v2161 = vmax.f32 %v2097, 0.0
        %v2162 = vmax.f32 %v2102, 0.0
        %v2163 = vmax.f32 %v2105, 0.0
        %v2164 = vmax.f32 %v2110, 0.0
        %v2165 = vmax.f32 %v2113, 0.0
        %v2166 = vmax.f32 %v2118, 0.0
        %v2167 = vmax.f32 %v2121, 0.0
        %v2168 = vmax.f32 %v2126, 0.0
        %v2169 = vmax.f32 %v2129, 0.0
        %v2170 = vmax.f32 %v2134, 0.0
        %v2171 = vmax.f32 %v2137, 0.0
        %v2172 = vpack.c.bf16 %v1796, %v1795
        %v2173 = vpack.c.bf16 %v1798, %v1797
        %v2174 = vpack.c.bf16 %v1800, %v1799
        %v2175 = vpack.c.bf16 %v1802, %v1801
        %v2176 = vpack.c.bf16 %v1804, %v1803
        %v2177 = vpack.c.bf16 %v1806, %v1805
        %v2178 = vpack.c.bf16 %v1808, %v1807
        %v2179 = vpack.c.bf16 %v1810, %v1809
        %v2180 = vpack.c.bf16 %v1812, %v1811
        %v2181 = vpack.c.bf16 %v1814, %v1813
        %v2182 = vpack.c.bf16 %v1816, %v1815
        %v2183 = vpack.c.bf16 %v1818, %v1817
        %v2184 = vpack.c.bf16 %v1820, %v1819
        %v2185 = vpack.c.bf16 %v1822, %v1821
        %v2186 = vpack.c.bf16 %v1824, %v1823
        %v2187 = vpack.c.bf16 %v1826, %v1825
        %v2188 = vld [vmem:[%s494] sm:$0x3]
        %vm2189 = vcmask 31744
        %v2191 = vsel %vm2189, %v2172, 0
        %v2194 = vsel %vm2189, %v2173, 0
        %v2197 = vsel %vm2189, %v2174, 0
        %v2200 = vsel %vm2189, %v2175, 0
        %v2203 = vsel %vm2189, %v2176, 0
        %v2206 = vsel %vm2189, %v2177, 0
        %v2209 = vsel %vm2189, %v2178, 0
        %v2212 = vsel %vm2189, %v2179, 0
        %v2215 = vsel %vm2189, %v2180, 0
        %v2218 = vsel %vm2189, %v2181, 0
        %v2221 = vsel %vm2189, %v2182, 0
        %v2224 = vsel %vm2189, %v2183, 0
        %v2227 = vsel %vm2189, %v2184, 0
        %v2230 = vsel %vm2189, %v2185, 0
        %v2233 = vsel %vm2189, %v2186, 0
        %v2236 = vsel %vm2189, %v2187, 0
        %vm2238 = vcmask 1041408
        %v2240 = vsel %vm2238, %v2188, 0
        %2242 = vmatprep.subr.bf16.mxu0 0
        %2243 = vmatpush1.bf16.msra.mxu0 %v2240
        %2244 = vmatprep.subr.bf16.mxu0 0
        %2245 = vmatpush1.bf16.msra.mxu0 0
        %2246 = vmatprep.subr.bf16.mxu0 0
        %2247 = vmatpush1.bf16.msra.mxu0 0
        %2248 = vmatprep.subr.bf16.mxu0 0
        %2249 = vmatpush1.bf16.msra.mxu0 0
        %2250 = vmatprep.subr.bf16.mxu0 0
        %2251 = vmatpush1.bf16.msra.mxu0 0
        %2252 = vmatprep.subr.bf16.mxu0 0
        %2253 = vmatpush1.bf16.msra.mxu0 0
        %2254 = vmatprep.subr.bf16.mxu0 0
        %2255 = vmatpush1.bf16.msra.mxu0 0
        %2256 = vmatprep.subr.bf16.mxu0 0
        %2257 = vmatpush1.bf16.msra.mxu0 0
        %2258 = vmatprep.subr.bf16.mxu0 0
        %2259 = vmatpush1.bf16.msra.mxu0 0
        %2260 = vmatprep.subr.bf16.mxu0 0
        %2261 = vmatpush1.bf16.msra.mxu0 0
        %2262 = vmatprep.subr.bf16.mxu0 0
        %2263 = vmatpush1.bf16.msra.mxu0 0
        %2264 = vmatprep.subr.bf16.mxu0 0
        %2265 = vmatpush1.bf16.msra.mxu0 0
        %2266 = vmatprep.subr.bf16.mxu0 0
        %2267 = vmatpush1.bf16.msra.mxu0 0
        %2268 = vmatprep.subr.bf16.mxu0 0
        %2269 = vmatpush1.bf16.msra.mxu0 0
        %2270 = vmatprep.subr.bf16.mxu0 0
        %2271 = vmatpush1.bf16.msra.mxu0 0
        %2272 = vmatprep.subr.bf16.mxu0 0
        %2273 = vmatpush1.bf16.msra.mxu0 0
        %2274 = vmatprep.mubr.bf16.mxu0 0
        %2275 = vmatmul.mubr.bf16.gmra.mrb[0].mxu0 %v2191
        %v2276 = vpop.f32.mrb[0].mxu0
        %v2277 = vadd.f32 0.0, %v2276
        %v2278 = vpop.f32.mrb[0].mxu0
        %v2279 = vpop.f32.mrb[0].mxu0
        %v2280 = vadd.f32 0.0, %v2279
        %v2281 = vpop.f32.mrb[0].mxu0
        %2282 = vmatprep.mubr.bf16.mxu0 0
        %2283 = vmatmul.mubr.bf16.gmra.mrb[0].mxu0 %v2194
        %v2284 = vpop.f32.mrb[0].mxu0
        %v2285 = vadd.f32 0.0, %v2284
        %v2286 = vpop.f32.mrb[0].mxu0
        %v2287 = vpop.f32.mrb[0].mxu0
        %v2288 = vadd.f32 0.0, %v2287
        %v2289 = vpop.f32.mrb[0].mxu0
        %2290 = vmatprep.mubr.bf16.mxu0 0
        %2291 = vmatmul.mubr.bf16.gmra.mrb[0].mxu0 %v2197
        %v2292 = vpop.f32.mrb[0].mxu0
        %v2293 = vadd.f32 0.0, %v2292
        %v2294 = vpop.f32.mrb[0].mxu0
        %v2295 = vpop.f32.mrb[0].mxu0
        %v2296 = vadd.f32 0.0, %v2295
        %v2297 = vpop.f32.mrb[0].mxu0
        %2298 = vmatprep.mubr.bf16.mxu0 0
        %2299 = vmatmul.mubr.bf16.gmra.mrb[0].mxu0 %v2200
        %v2300 = vpop.f32.mrb[0].mxu0
        %v2301 = vadd.f32 0.0, %v2300
        %v2302 = vpop.f32.mrb[0].mxu0
        %v2303 = vpop.f32.mrb[0].mxu0
        %v2304 = vadd.f32 0.0, %v2303
        %v2305 = vpop.f32.mrb[0].mxu0
        %2306 = vmatprep.mubr.bf16.mxu0 0
        %2307 = vmatmul.mubr.bf16.gmra.mrb[0].mxu0 %v2203
        %v2308 = vpop.f32.mrb[0].mxu0
        %v2309 = vadd.f32 0.0, %v2308
        %v2310 = vpop.f32.mrb[0].mxu0
        %v2311 = vpop.f32.mrb[0].mxu0
        %v2312 = vadd.f32 0.0, %v2311
        %v2313 = vpop.f32.mrb[0].mxu0
        %2314 = vmatprep.mubr.bf16.mxu0 0
        %2315 = vmatmul.mubr.bf16.gmra.mrb[0].mxu0 %v2206
        %v2316 = vpop.f32.mrb[0].mxu0
        %v2317 = vadd.f32 0.0, %v2316
        %v2318 = vpop.f32.mrb[0].mxu0
        %v2319 = vpop.f32.mrb[0].mxu0
        %v2320 = vadd.f32 0.0, %v2319
        %v2321 = vpop.f32.mrb[0].mxu0
        %2322 = vmatprep.mubr.bf16.mxu0 0
        %2323 = vmatmul.mubr.bf16.gmra.mrb[0].mxu0 %v2209
        %v2324 = vpop.f32.mrb[0].mxu0
        %v2325 = vadd.f32 0.0, %v2324
        %v2326 = vpop.f32.mrb[0].mxu0
        %v2327 = vpop.f32.mrb[0].mxu0
        %v2328 = vadd.f32 0.0, %v2327
        %v2329 = vpop.f32.mrb[0].mxu0
        %2330 = vmatprep.mubr.bf16.mxu0 0
        %2331 = vmatmul.mubr.bf16.gmra.mrb[0].mxu0 %v2212
        %v2332 = vpop.f32.mrb[0].mxu0
        %v2333 = vadd.f32 0.0, %v2332
        %v2334 = vpop.f32.mrb[0].mxu0
        %v2335 = vpop.f32.mrb[0].mxu0
        %v2336 = vadd.f32 0.0, %v2335
        %v2337 = vpop.f32.mrb[0].mxu0
        %2338 = vmatprep.mubr.bf16.mxu0 0
        %2339 = vmatmul.mubr.bf16.gmra.mrb[0].mxu0 %v2215
        %v2340 = vpop.f32.mrb[0].mxu0
        %v2341 = vadd.f32 0.0, %v2340
        %v2342 = vpop.f32.mrb[0].mxu0
        %v2343 = vpop.f32.mrb[0].mxu0
        %v2344 = vadd.f32 0.0, %v2343
        %v2345 = vpop.f32.mrb[0].mxu0
        %2346 = vmatprep.mubr.bf16.mxu0 0
        %2347 = vmatmul.mubr.bf16.gmra.mrb[0].mxu0 %v2218
        %v2348 = vpop.f32.mrb[0].mxu0
        %v2349 = vadd.f32 0.0, %v2348
        %v2350 = vpop.f32.mrb[0].mxu0
        %v2351 = vpop.f32.mrb[0].mxu0
        %v2352 = vadd.f32 0.0, %v2351
        %v2353 = vpop.f32.mrb[0].mxu0
        %2354 = vmatprep.mubr.bf16.mxu0 0
        %2355 = vmatmul.mubr.bf16.gmra.mrb[0].mxu0 %v2221
        %v2356 = vpop.f32.mrb[0].mxu0
        %v2357 = vadd.f32 0.0, %v2356
        %v2358 = vpop.f32.mrb[0].mxu0
        %v2359 = vpop.f32.mrb[0].mxu0
        %v2360 = vadd.f32 0.0, %v2359
        %v2361 = vpop.f32.mrb[0].mxu0
        %2362 = vmatprep.mubr.bf16.mxu0 0
        %2363 = vmatmul.mubr.bf16.gmra.mrb[0].mxu0 %v2224
        %v2364 = vpop.f32.mrb[0].mxu0
        %v2365 = vadd.f32 0.0, %v2364
        %v2366 = vpop.f32.mrb[0].mxu0
        %v2367 = vpop.f32.mrb[0].mxu0
        %v2368 = vadd.f32 0.0, %v2367
        %v2369 = vpop.f32.mrb[0].mxu0
        %2370 = vmatprep.mubr.bf16.mxu0 0
        %2371 = vmatmul.mubr.bf16.gmra.mrb[0].mxu0 %v2227
        %v2372 = vpop.f32.mrb[0].mxu0
        %v2373 = vadd.f32 0.0, %v2372
        %v2374 = vpop.f32.mrb[0].mxu0
        %v2375 = vpop.f32.mrb[0].mxu0
        %v2376 = vadd.f32 0.0, %v2375
        %v2377 = vpop.f32.mrb[0].mxu0
        %2378 = vmatprep.mubr.bf16.mxu0 0
        %2379 = vmatmul.mubr.bf16.gmra.mrb[0].mxu0 %v2230
        %v2380 = vpop.f32.mrb[0].mxu0
        %v2381 = vadd.f32 0.0, %v2380
        %v2382 = vpop.f32.mrb[0].mxu0
        %v2383 = vpop.f32.mrb[0].mxu0
        %v2384 = vadd.f32 0.0, %v2383
        %v2385 = vpop.f32.mrb[0].mxu0
        %2386 = vmatprep.mubr.bf16.mxu0 0
        %2387 = vmatmul.mubr.bf16.gmra.mrb[0].mxu0 %v2233
        %v2388 = vpop.f32.mrb[0].mxu0
        %v2389 = vadd.f32 0.0, %v2388
        %v2390 = vpop.f32.mrb[0].mxu0
        %v2391 = vpop.f32.mrb[0].mxu0
        %v2392 = vadd.f32 0.0, %v2391
        %v2393 = vpop.f32.mrb[0].mxu0
        %2394 = vmatprep.mubr.bf16.mxu0 0
        %2395 = vmatmul.mubr.bf16.gmra.mrb[0].mxu0 %v2236
        %v2396 = vpop.f32.mrb[0].mxu0
        %v2397 = vadd.f32 0.0, %v2396
        %v2398 = vpop.f32.mrb[0].mxu0
        %v2399 = vpop.f32.mrb[0].mxu0
        %v2400 = vadd.f32 0.0, %v2399
        %v2401 = vpop.f32.mrb[0].mxu0
        %2402 = vdwg.mxu0
        %v2403 = vmul.f32 %v2140, %v2277
        %v2404 = vmul.f32 %v2141, %v2280
        %v2405 = vmul.f32 %v2142, %v2285
        %v2406 = vmul.f32 %v2143, %v2288
        %v2407 = vmul.f32 %v2144, %v2293
        %v2408 = vmul.f32 %v2145, %v2296
        %v2409 = vmul.f32 %v2146, %v2301
        %v2410 = vmul.f32 %v2147, %v2304
        %v2411 = vmul.f32 %v2148, %v2309
        %v2412 = vmul.f32 %v2149, %v2312
        %v2413 = vmul.f32 %v2150, %v2317
        %v2414 = vmul.f32 %v2151, %v2320
        %v2415 = vmul.f32 %v2152, %v2325
        %v2416 = vmul.f32 %v2153, %v2328
        %v2417 = vmul.f32 %v2154, %v2333
        %v2418 = vmul.f32 %v2155, %v2336
        %v2419 = vmul.f32 %v2156, %v2341
        %v2420 = vmul.f32 %v2157, %v2344
        %v2421 = vmul.f32 %v2158, %v2349
        %v2422 = vmul.f32 %v2159, %v2352
        %v2423 = vmul.f32 %v2160, %v2357
        %v2424 = vmul.f32 %v2161, %v2360
        %v2425 = vmul.f32 %v2162, %v2365
        %v2426 = vmul.f32 %v2163, %v2368
        %v2427 = vmul.f32 %v2164, %v2373
        %v2428 = vmul.f32 %v2165, %v2376
        %v2429 = vmul.f32 %v2166, %v2381
        %v2430 = vmul.f32 %v2167, %v2384
        %v2431 = vmul.f32 %v2168, %v2389
        %v2432 = vmul.f32 %v2169, %v2392
        %v2433 = vmul.f32 %v2170, %v2397
        %v2434 = vmul.f32 %v2171, %v2400
        %v2435 = vpack.c.bf16 %v2404, %v2403
        %v2436 = vpack.c.bf16 %v2406, %v2405
        %v2437 = vpack.c.bf16 %v2408, %v2407
        %v2438 = vpack.c.bf16 %v2410, %v2409
        %v2439 = vpack.c.bf16 %v2412, %v2411
        %v2440 = vpack.c.bf16 %v2414, %v2413
        %v2441 = vpack.c.bf16 %v2416, %v2415
        %v2442 = vpack.c.bf16 %v2418, %v2417
        %v2443 = vpack.c.bf16 %v2420, %v2419
        %v2444 = vpack.c.bf16 %v2422, %v2421
        %v2445 = vpack.c.bf16 %v2424, %v2423
        %v2446 = vpack.c.bf16 %v2426, %v2425
        %v2447 = vpack.c.bf16 %v2428, %v2427
        %v2448 = vpack.c.bf16 %v2430, %v2429
        %v2449 = vpack.c.bf16 %v2432, %v2431
        %v2450 = vpack.c.bf16 %v2434, %v2433
        %v2451 = vld [vmem:[%s499] sm:$0xff]
        %v2452 = vld [vmem:[%s499 + $0x8] sm:$0xff]
        %v2453 = vld [vmem:[%s499 + $0x10] sm:$0xff]
        %v2454 = vld [vmem:[%s499 + $0x18] sm:$0xff]
        %v2455 = vld [vmem:[%s499 + $0x20] sm:$0xff]
        %v2456 = vld [vmem:[%s499 + $0x28] sm:$0xff]
        %v2457 = vld [vmem:[%s499 + $0x30] sm:$0xff]
        %v2458 = vld [vmem:[%s499 + $0x38] sm:$0xff]
        %v2459 = vld [vmem:[%s499 + $0x40] sm:$0xff]
        %v2460 = vld [vmem:[%s499 + $0x48] sm:$0xff]
        %v2461 = vld [vmem:[%s499 + $0x50] sm:$0xff]
        %v2462 = vld [vmem:[%s499 + $0x58] sm:$0xff]
        %v2463 = vld [vmem:[%s499 + $0x60] sm:$0xff]
        %v2464 = vld [vmem:[%s499 + $0x68] sm:$0xff]
        %v2465 = vld [vmem:[%s499 + $0x70] sm:$0xff]
        %v2466 = vld [vmem:[%s499 + $0x78] sm:$0xff]
        %v2467 = vld [vmem:[%s499 + $0x80] sm:$0xff]
        %v2468 = vld [vmem:[%s499 + $0x88] sm:$0xff]
        %v2469 = vld [vmem:[%s499 + $0x90] sm:$0xff]
        %v2470 = vld [vmem:[%s499 + $0x98] sm:$0xff]
        %v2471 = vld [vmem:[%s499 + $0xa0] sm:$0xff]
        %v2472 = vld [vmem:[%s499 + $0xa8] sm:$0xff]
        %v2473 = vld [vmem:[%s499 + $0xb0] sm:$0xff]
        %v2474 = vld [vmem:[%s499 + $0xb8] sm:$0xff]
        %v2475 = vld [vmem:[%s499 + $0xc0] sm:$0xff]
        %v2476 = vld [vmem:[%s499 + $0xc8] sm:$0xff]
        %v2477 = vld [vmem:[%s499 + $0xd0] sm:$0xff]
        %v2478 = vld [vmem:[%s499 + $0xd8] sm:$0xff]
        %v2479 = vld [vmem:[%s499 + $0xe0] sm:$0xff]
        %v2480 = vld [vmem:[%s499 + $0xe8] sm:$0xff]
        %v2481 = vld [vmem:[%s499 + $0xf0] sm:$0xff]
        %v2482 = vld [vmem:[%s499 + $0xf8] sm:$0xff]
        %v2483 = vld [vmem:[%s489] sm:$0xf]
        %v2484 = vld [vmem:[%s489 + $0x4] sm:$0xf]
        %v2485 = vld [vmem:[%s489 + $0x8] sm:$0xf]
        %v2486 = vld [vmem:[%s489 + $0xc] sm:$0xf]
        %v2487 = vld [vmem:[%s489 + $0x10] sm:$0xf]
        %v2488 = vld [vmem:[%s489 + $0x14] sm:$0xf]
        %v2489 = vld [vmem:[%s489 + $0x18] sm:$0xf]
        %v2490 = vld [vmem:[%s489 + $0x1c] sm:$0xf]
        %v2491 = vld [vmem:[%s489 + $0x20] sm:$0xf]
        %v2492 = vld [vmem:[%s489 + $0x24] sm:$0xf]
        %v2493 = vld [vmem:[%s489 + $0x28] sm:$0xf]
        %v2494 = vld [vmem:[%s489 + $0x2c] sm:$0xf]
        %v2495 = vld [vmem:[%s489 + $0x30] sm:$0xf]
        %v2496 = vld [vmem:[%s489 + $0x34] sm:$0xf]
        %v2497 = vld [vmem:[%s489 + $0x38] sm:$0xf]
        %v2498 = vld [vmem:[%s489 + $0x3c] sm:$0xf]
        %v2515 = vunpack.c.l.b16 %v2483
        %v2516 = vunpack.c.l.b16 %v2484
        %v2517 = vunpack.c.l.b16 %v2485
        %v2518 = vunpack.c.l.b16 %v2486
        %v2519 = vunpack.c.l.b16 %v2487
        %v2520 = vunpack.c.l.b16 %v2488
        %v2521 = vunpack.c.l.b16 %v2489
        %v2522 = vunpack.c.l.b16 %v2490
        %v2523 = vunpack.c.l.b16 %v2491
        %v2524 = vunpack.c.l.b16 %v2492
        %v2525 = vunpack.c.l.b16 %v2493
        %v2526 = vunpack.c.l.b16 %v2494
        %v2527 = vunpack.c.l.b16 %v2495
        %v2528 = vunpack.c.l.b16 %v2496
        %v2529 = vunpack.c.l.b16 %v2497
        %v2530 = vunpack.c.l.b16 %v2498
        %v2531 = vpack.c.b16 %v2516, %v2515
        %v2532 = vpack.c.b16 %v2518, %v2517
        %v2533 = vpack.c.b16 %v2520, %v2519
        %v2534 = vpack.c.b16 %v2522, %v2521
        %v2535 = vpack.c.b16 %v2524, %v2523
        %v2536 = vpack.c.b16 %v2526, %v2525
        %v2537 = vpack.c.b16 %v2528, %v2527
        %v2538 = vpack.c.b16 %v2530, %v2529
        %2547 = vmatprep.subr.bf16.mxu0 0
        %2548 = vmatpush1.bf16.msra.mxu0 %v2531
        %2549 = vmatprep.subr.bf16.mxu0 0
        %2550 = vmatpush1.bf16.msra.mxu0 %v2532
        %2551 = vmatprep.subr.bf16.mxu0 0
        %2552 = vmatpush1.bf16.msra.mxu0 %v2533
        %2553 = vmatprep.subr.bf16.mxu0 0
        %2554 = vmatpush1.bf16.msra.mxu0 %v2534
        %2555 = vmatprep.subr.bf16.mxu0 0
        %2556 = vmatpush1.bf16.msra.mxu0 %v2535
        %2557 = vmatprep.subr.bf16.mxu0 0
        %2558 = vmatpush1.bf16.msra.mxu0 %v2536
        %2559 = vmatprep.subr.bf16.mxu0 0
        %2560 = vmatpush1.bf16.msra.mxu0 %v2537
        %2561 = vmatprep.subr.bf16.mxu0 0
        %2562 = vmatpush1.bf16.msra.mxu0 %v2538
        %2563 = vmatprep.subr.bf16.mxu0 0
        %2564 = vmatpush1.bf16.msra.mxu0 0
        %2565 = vmatprep.subr.bf16.mxu0 0
        %2566 = vmatpush1.bf16.msra.mxu0 0
        %2567 = vmatprep.subr.bf16.mxu0 0
        %2568 = vmatpush1.bf16.msra.mxu0 0
        %2569 = vmatprep.subr.bf16.mxu0 0
        %2570 = vmatpush1.bf16.msra.mxu0 0
        %2571 = vmatprep.subr.bf16.mxu0 0
        %2572 = vmatpush1.bf16.msra.mxu0 0
        %2573 = vmatprep.subr.bf16.mxu0 0
        %2574 = vmatpush1.bf16.msra.mxu0 0
        %2575 = vmatprep.subr.bf16.mxu0 0
        %2576 = vmatpush1.bf16.msra.mxu0 0
        %2577 = vmatprep.subr.bf16.mxu0 0
        %2578 = vmatpush1.bf16.msra.mxu0 0
        %2579 = vmatprep.mubr.bf16.mxu0 0
        %2580 = vmatmul.mubr.bf16.gmra.mrb[0].mxu0 %v2435
        %v2581 = vpop.f32.mrb[0].mxu0
        %v2582 = vadd.f32 0.0, %v2581
        %v2583 = vpop.f32.mrb[0].mxu0
        %v2584 = vpop.f32.mrb[0].mxu0
        %v2585 = vadd.f32 0.0, %v2584
        %v2586 = vpop.f32.mrb[0].mxu0
        %2587 = vmatprep.mubr.bf16.mxu0 0
        %2588 = vmatmul.mubr.bf16.gmra.mrb[0].mxu0 %v2436
        %v2589 = vpop.f32.mrb[0].mxu0
        %v2590 = vadd.f32 0.0, %v2589
        %v2591 = vpop.f32.mrb[0].mxu0
        %v2592 = vpop.f32.mrb[0].mxu0
        %v2593 = vadd.f32 0.0, %v2592
        %v2594 = vpop.f32.mrb[0].mxu0
        %2595 = vmatprep.mubr.bf16.mxu0 0
        %2596 = vmatmul.mubr.bf16.gmra.mrb[0].mxu0 %v2437
        %v2597 = vpop.f32.mrb[0].mxu0
        %v2598 = vadd.f32 0.0, %v2597
        %v2599 = vpop.f32.mrb[0].mxu0
        %v2600 = vpop.f32.mrb[0].mxu0
        %v2601 = vadd.f32 0.0, %v2600
        %v2602 = vpop.f32.mrb[0].mxu0
        %2603 = vmatprep.mubr.bf16.mxu0 0
        %2604 = vmatmul.mubr.bf16.gmra.mrb[0].mxu0 %v2438
        %v2605 = vpop.f32.mrb[0].mxu0
        %v2606 = vadd.f32 0.0, %v2605
        %v2607 = vpop.f32.mrb[0].mxu0
        %v2608 = vpop.f32.mrb[0].mxu0
        %v2609 = vadd.f32 0.0, %v2608
        %v2610 = vpop.f32.mrb[0].mxu0
        %2611 = vmatprep.mubr.bf16.mxu0 0
        %2612 = vmatmul.mubr.bf16.gmra.mrb[0].mxu0 %v2439
        %v2613 = vpop.f32.mrb[0].mxu0
        %v2614 = vadd.f32 0.0, %v2613
        %v2615 = vpop.f32.mrb[0].mxu0
        %v2616 = vpop.f32.mrb[0].mxu0
        %v2617 = vadd.f32 0.0, %v2616
        %v2618 = vpop.f32.mrb[0].mxu0
        %2619 = vmatprep.mubr.bf16.mxu0 0
        %2620 = vmatmul.mubr.bf16.gmra.mrb[0].mxu0 %v2440
        %v2621 = vpop.f32.mrb[0].mxu0
        %v2622 = vadd.f32 0.0, %v2621
        %v2623 = vpop.f32.mrb[0].mxu0
        %v2624 = vpop.f32.mrb[0].mxu0
        %v2625 = vadd.f32 0.0, %v2624
        %v2626 = vpop.f32.mrb[0].mxu0
        %2627 = vmatprep.mubr.bf16.mxu0 0
        %2628 = vmatmul.mubr.bf16.gmra.mrb[0].mxu0 %v2441
        %v2629 = vpop.f32.mrb[0].mxu0
        %v2630 = vadd.f32 0.0, %v2629
        %v2631 = vpop.f32.mrb[0].mxu0
        %v2632 = vpop.f32.mrb[0].mxu0
        %v2633 = vadd.f32 0.0, %v2632
        %v2634 = vpop.f32.mrb[0].mxu0
        %2635 = vmatprep.mubr.bf16.mxu0 0
        %2636 = vmatmul.mubr.bf16.gmra.mrb[0].mxu0 %v2442
        %v2637 = vpop.f32.mrb[0].mxu0
        %v2638 = vadd.f32 0.0, %v2637
        %v2639 = vpop.f32.mrb[0].mxu0
        %v2640 = vpop.f32.mrb[0].mxu0
        %v2641 = vadd.f32 0.0, %v2640
        %v2642 = vpop.f32.mrb[0].mxu0
        %2643 = vmatprep.mubr.bf16.mxu0 0
        %2644 = vmatmul.mubr.bf16.gmra.mrb[0].mxu0 %v2443
        %v2645 = vpop.f32.mrb[0].mxu0
        %v2646 = vadd.f32 0.0, %v2645
        %v2647 = vpop.f32.mrb[0].mxu0
        %v2648 = vpop.f32.mrb[0].mxu0
        %v2649 = vadd.f32 0.0, %v2648
        %v2650 = vpop.f32.mrb[0].mxu0
        %2651 = vmatprep.mubr.bf16.mxu0 0
        %2652 = vmatmul.mubr.bf16.gmra.mrb[0].mxu0 %v2444
        %v2653 = vpop.f32.mrb[0].mxu0
        %v2654 = vadd.f32 0.0, %v2653
        %v2655 = vpop.f32.mrb[0].mxu0
        %v2656 = vpop.f32.mrb[0].mxu0
        %v2657 = vadd.f32 0.0, %v2656
        %v2658 = vpop.f32.mrb[0].mxu0
        %2659 = vmatprep.mubr.bf16.mxu0 0
        %2660 = vmatmul.mubr.bf16.gmra.mrb[0].mxu0 %v2445
        %v2661 = vpop.f32.mrb[0].mxu0
        %v2662 = vadd.f32 0.0, %v2661
        %v2663 = vpop.f32.mrb[0].mxu0
        %v2664 = vpop.f32.mrb[0].mxu0
        %v2665 = vadd.f32 0.0, %v2664
        %v2666 = vpop.f32.mrb[0].mxu0
        %2667 = vmatprep.mubr.bf16.mxu0 0
        %2668 = vmatmul.mubr.bf16.gmra.mrb[0].mxu0 %v2446
        %v2669 = vpop.f32.mrb[0].mxu0
        %v2670 = vadd.f32 0.0, %v2669
        %v2671 = vpop.f32.mrb[0].mxu0
        %v2672 = vpop.f32.mrb[0].mxu0
        %v2673 = vadd.f32 0.0, %v2672
        %v2674 = vpop.f32.mrb[0].mxu0
        %2675 = vmatprep.mubr.bf16.mxu0 0
        %2676 = vmatmul.mubr.bf16.gmra.mrb[0].mxu0 %v2447
        %v2677 = vpop.f32.mrb[0].mxu0
        %v2678 = vadd.f32 0.0, %v2677
        %v2679 = vpop.f32.mrb[0].mxu0
        %v2680 = vpop.f32.mrb[0].mxu0
        %v2681 = vadd.f32 0.0, %v2680
        %v2682 = vpop.f32.mrb[0].mxu0
        %2683 = vmatprep.mubr.bf16.mxu0 0
        %2684 = vmatmul.mubr.bf16.gmra.mrb[0].mxu0 %v2448
        %v2685 = vpop.f32.mrb[0].mxu0
        %v2686 = vadd.f32 0.0, %v2685
        %v2687 = vpop.f32.mrb[0].mxu0
        %v2688 = vpop.f32.mrb[0].mxu0
        %v2689 = vadd.f32 0.0, %v2688
        %v2690 = vpop.f32.mrb[0].mxu0
        %2691 = vmatprep.mubr.bf16.mxu0 0
        %2692 = vmatmul.mubr.bf16.gmra.mrb[0].mxu0 %v2449
        %v2693 = vpop.f32.mrb[0].mxu0
        %v2694 = vadd.f32 0.0, %v2693
        %v2695 = vpop.f32.mrb[0].mxu0
        %v2696 = vpop.f32.mrb[0].mxu0
        %v2697 = vadd.f32 0.0, %v2696
        %v2698 = vpop.f32.mrb[0].mxu0
        %2699 = vmatprep.mubr.bf16.mxu0 0
        %2700 = vmatmul.mubr.bf16.gmra.mrb[0].mxu0 %v2450
        %v2701 = vpop.f32.mrb[0].mxu0
        %v2702 = vadd.f32 0.0, %v2701
        %v2703 = vpop.f32.mrb[0].mxu0
        %v2704 = vpop.f32.mrb[0].mxu0
        %v2705 = vadd.f32 0.0, %v2704
        %v2706 = vpop.f32.mrb[0].mxu0
        %2707 = vdwg.mxu0
        %v2708 = vadd.f32 %v2451, %v2582
        %v2709 = vadd.f32 %v2452, %v2585
        %v2710 = vadd.f32 %v2453, %v2590
        %v2711 = vadd.f32 %v2454, %v2593
        %v2712 = vadd.f32 %v2455, %v2598
        %v2713 = vadd.f32 %v2456, %v2601
        %v2714 = vadd.f32 %v2457, %v2606
        %v2715 = vadd.f32 %v2458, %v2609
        %v2716 = vadd.f32 %v2459, %v2614
        %v2717 = vadd.f32 %v2460, %v2617
        %v2718 = vadd.f32 %v2461, %v2622
        %v2719 = vadd.f32 %v2462, %v2625
        %v2720 = vadd.f32 %v2463, %v2630
        %v2721 = vadd.f32 %v2464, %v2633
        %v2722 = vadd.f32 %v2465, %v2638
        %v2723 = vadd.f32 %v2466, %v2641
        %v2724 = vadd.f32 %v2467, %v2646
        %v2725 = vadd.f32 %v2468, %v2649
        %v2726 = vadd.f32 %v2469, %v2654
        %v2727 = vadd.f32 %v2470, %v2657
        %v2728 = vadd.f32 %v2471, %v2662
        %v2729 = vadd.f32 %v2472, %v2665
        %v2730 = vadd.f32 %v2473, %v2670
        %v2731 = vadd.f32 %v2474, %v2673
        %v2732 = vadd.f32 %v2475, %v2678
        %v2733 = vadd.f32 %v2476, %v2681
        %v2734 = vadd.f32 %v2477, %v2686
        %v2735 = vadd.f32 %v2478, %v2689
        %v2736 = vadd.f32 %v2479, %v2694
        %v2737 = vadd.f32 %v2480, %v2697
        %v2738 = vadd.f32 %v2481, %v2702
        %v2739 = vadd.f32 %v2482, %v2705
        %2740 = vst.msk [vmem:[%s499] sm:$0xff] %vm1930, %v2708
        %2741 = vst.msk [vmem:[%s499 + $0x8] sm:$0xff] %vm1930, %v2709
        %2742 = vst.msk [vmem:[%s499 + $0x10] sm:$0xff] %vm1930, %v2710
        %2743 = vst.msk [vmem:[%s499 + $0x18] sm:$0xff] %vm1930, %v2711
        %2744 = vst.msk [vmem:[%s499 + $0x20] sm:$0xff] %vm1930, %v2712
        %2745 = vst.msk [vmem:[%s499 + $0x28] sm:$0xff] %vm1930, %v2713
        %2746 = vst.msk [vmem:[%s499 + $0x30] sm:$0xff] %vm1930, %v2714
        %2747 = vst.msk [vmem:[%s499 + $0x38] sm:$0xff] %vm1930, %v2715
        %2748 = vst.msk [vmem:[%s499 + $0x40] sm:$0xff] %vm1930, %v2716
        %2749 = vst.msk [vmem:[%s499 + $0x48] sm:$0xff] %vm1930, %v2717
        %2750 = vst.msk [vmem:[%s499 + $0x50] sm:$0xff] %vm1930, %v2718
        %2751 = vst.msk [vmem:[%s499 + $0x58] sm:$0xff] %vm1930, %v2719
        %2752 = vst.msk [vmem:[%s499 + $0x60] sm:$0xff] %vm1930, %v2720
        %2753 = vst.msk [vmem:[%s499 + $0x68] sm:$0xff] %vm1930, %v2721
        %2754 = vst.msk [vmem:[%s499 + $0x70] sm:$0xff] %vm1930, %v2722
        %2755 = vst.msk [vmem:[%s499 + $0x78] sm:$0xff] %vm1930, %v2723
        %2756 = vst.msk [vmem:[%s499 + $0x80] sm:$0xff] %vm1930, %v2724
        %2757 = vst.msk [vmem:[%s499 + $0x88] sm:$0xff] %vm1930, %v2725
        %2758 = vst.msk [vmem:[%s499 + $0x90] sm:$0xff] %vm1930, %v2726
        %2759 = vst.msk [vmem:[%s499 + $0x98] sm:$0xff] %vm1930, %v2727
        %2760 = vst.msk [vmem:[%s499 + $0xa0] sm:$0xff] %vm1930, %v2728
        %2761 = vst.msk [vmem:[%s499 + $0xa8] sm:$0xff] %vm1930, %v2729
        %2762 = vst.msk [vmem:[%s499 + $0xb0] sm:$0xff] %vm1930, %v2730
        %2763 = vst.msk [vmem:[%s499 + $0xb8] sm:$0xff] %vm1930, %v2731
        %2764 = vst.msk [vmem:[%s499 + $0xc0] sm:$0xff] %vm1930, %v2732
        %2765 = vst.msk [vmem:[%s499 + $0xc8] sm:$0xff] %vm1930, %v2733
        %2766 = vst.msk [vmem:[%s499 + $0xd0] sm:$0xff] %vm1930, %v2734
        %2767 = vst.msk [vmem:[%s499 + $0xd8] sm:$0xff] %vm1930, %v2735
        %2768 = vst.msk [vmem:[%s499 + $0xe0] sm:$0xff] %vm1930, %v2736
        %2769 = vst.msk [vmem:[%s499 + $0xe8] sm:$0xff] %vm1930, %v2737
        %2770 = vst.msk [vmem:[%s499 + $0xf0] sm:$0xff] %vm1930, %v2738
        %2771 = vst.msk [vmem:[%s499 + $0xf8] sm:$0xff] %vm1930, %v2739
        %s2772 = smul.u32 32, %s25
        %p2773 = scmp.lt.s32.totalorder %s2772, 63
        %s2774 = scalar_select %p2773, %s2772, 63
        %s2775 = smul.addr %s2774, 8
        %s2776 = scalar_lea.vmem %s10, %s2775
        // Predicated region
        $region106: #{tpu_custom_call.1} parent=96 // pred_check
          %p2777 = pneg %p286
        $region107: #{tpu_custom_call.1} parent=96 // pred_check_branch
          %2779 = sbr.rel (%p2777) target = $region109
        $region108: #{tpu_custom_call.1} parent=96 // pred_region
          %s2780 = smul.u32 32, %s25
        $region109: #{tpu_custom_call.1} parent=96 // pred_fallthru
          _
      $region97: #{tpu_custom_call.1} parent=5 // pred_fallthru
        _
      %p2781 = scmp.le.s32.totalorder 2, %s16
      // Predicated region
      $region110: #{tpu_custom_call.1} parent=5 // pred_check
        %p2782 = pneg %p2781
      $region111: #{tpu_custom_call.1} parent=5 // pred_check_branch
        %2784 = sbr.rel (%p2782) target = $region113
      $region112: #{tpu_custom_call.1} parent=5 // pred_region
        %s2785 = ssub.s32 %s16, 2
        // Predicated region
        $region114: #{tpu_custom_call.1} parent=112 // pred_check
          %p2786 = pneg %p292
        $region115: #{tpu_custom_call.1} parent=112 // pred_check_branch
          %2788 = sbr.rel (%p2786) target = $region117
        $region116: #{tpu_custom_call.1} parent=112 // pred_region
          %s2789 = smul.u32 32, %s27
          %p2790 = scmp.lt.s32.totalorder %s2789, 63
          %s2791 = scalar_select %p2790, %s2789, 63
          %s2792 = smul.addr %s2791, 8
          %s2793 = scalar_lea.vmem %s10, %s2792
        $region117: #{tpu_custom_call.1} parent=112 // pred_fallthru
          _
      $region113: #{tpu_custom_call.1} parent=5 // pred_fallthru
        _
    $region6: #{tpu_custom_call.1} parent=1 // loop_footer
      %s20 = sadd.s32 1, %s16
    $region7: #{tpu_custom_call.1} parent=1 // loop_footer_branch
      %15 = sbr.rel target = $region3
    $region8: #{tpu_custom_call.1} parent=1 // loop_exit
      _

</llo_original>
